<compile_context>
chip_gen: v7x
topology: tpu7x:2x2x1
jax: 0.10.0
libtpu: 0.0.40
codegen_flags: <defaults>
</compile_context>

<pallas_src>
import math

import jax
import jax.numpy as jnp
import numpy as np
from jax.experimental import pallas as pl
from jax.experimental.pallas import tpu as pltpu


LEAKY_SLOPE = 0.01

# (K, Ci, Co, pad, maxpool-after?)  -- exactly CNN_small's nn.Sequential
_LAYER_CFG = [
    (7, 1, 8, 3, False),
    (5, 8, 16, 4, True),
    (5, 16, 16, 2, True),
    (4, 16, 32, 2, False),
    (3, 32, 32, 0, True),
    (3, 32, 32, 1, False),
]


def _round_up(x, m):
    return (x + m - 1) // m * m


def _layer_plan(D, W):
    """Static per-layer geometry.  Row stride (wrow) is 8-aligned."""
    plan = []
    win = W
    for (K, Ci, Co, pad, pool) in _LAYER_CFG:
        wpad = win + 2 * pad
        wout = wpad - K + 1
        wrow = _round_up(wpad, 8)            # 8-aligned per-row stride
        plan.append(dict(K=K, Ci=Ci, Co=Co, pad=pad, pool=pool,
                         win=win, wpad=wpad, wout=wout, wrow=wrow))
        if pool:
            assert wout % 2 == 0
            win = wout // 2
        else:
            win = wout
    return plan, win                          # win == final per-day width (6 for W=48)


def cnn_small_forward(x_nchw, params):
    B, C, D, W = x_nchw.shape
    assert C == 1
    plan, Wf = _layer_plan(D, W)
    n_layers = len(plan)
    Cf = plan[-1]["Co"]

    wfc, bfc = params["fc"]                   # wfc: (OUT, Cf*D*Wf), torch (out,in) layout
    OUT = wfc.shape[0]
    assert wfc.shape[1] == Cf * D * Wf

    # ---- batch folding: keep 2 parallel grid steps when possible (v7x: 2 TCs),
    #      fold the remaining batch into the matmul M dimension.
    if B >= 2 and B % 2 == 0:
        n_steps, BB = 2, B // 2
    else:
        n_steps, BB = B, 1
    R = BB * D                                # folded rows per grid step

    # ---- host-side layout plumbing (no compute hoisted):
    # layer-1 padded, 8-aligned flat input: element (b, d, t) -> flat (b*D+d)*wrow0 + t
    c0 = plan[0]
    x_rows = x_nchw.reshape(B, D, W).astype(jnp.float32)
    x_pad = jnp.pad(x_rows, ((0, 0), (0, 0), (c0["pad"], c0["wrow"] - W - c0["pad"])))
    x_in = x_pad.reshape(n_steps, R * c0["wrow"], 1)

    # conv weights -> im2col layout (K*Ci, Co); biases -> (1, Co)
    conv_w2 = [w.reshape(cfg["K"] * cfg["Ci"], cfg["Co"])
               for (w, _), cfg in zip(params["conv"], plan)]
    conv_b2 = [b.reshape(1, cfg["Co"]) for (_, b), cfg in zip(params["conv"], plan)]

    # FC weight relaid so column index == kernel gather order (d, w, c):
    #   wfc2[(d*Wf + w)*Cf + c, o] == wfc[o, (c*D + d)*Wf + w]   (NCHW .view() order)
    wfc2 = jnp.transpose(wfc.reshape(OUT, Cf, D, Wf), (2, 3, 1, 0)).reshape(D * Wf * Cf, OUT)
    bfc2 = bfc.reshape(1, OUT)

    mflats = [R * cfg["wrow"] - cfg["K"] + 1 for cfg in plan]

    def kernel(*refs):
        x_ref = refs[0]
        w_refs = [refs[1 + 2 * i] for i in range(n_layers)]
        b_refs = [refs[2 + 2 * i] for i in range(n_layers)]
        wfc_ref = refs[1 + 2 * n_layers]
        bfc_ref = refs[2 + 2 * n_layers]
        o_ref = refs[3 + 2 * n_layers]
        a_refs = list(refs[4 + 2 * n_layers: 4 + 2 * n_layers + (n_layers - 1)])
        s_refs = list(refs[4 + 2 * n_layers + (n_layers - 1):])

        for li, cfg in enumerate(plan):
            K, wrow = cfg["K"], cfg["wrow"]
            mflat = mflats[li]
            src = x_ref if li == 0 else a_refs[li - 1]    # padded input (ref)

            # ---- im2col slab (mflat, K*Ci) -> ONE matmul for the whole layer.
            # Garbage produced at row/element boundaries is never read back.
            slab = jnp.concatenate([src[k:k + mflat, :] for k in range(K)], axis=1)
            acc = jnp.dot(slab, w_refs[li][...], preferred_element_type=jnp.float32)
            acc = acc + b_refs[li][...]                   # (1, Co) broadcast bias
            s_refs[li][...] = jnp.maximum(acc, LEAKY_SLOPE * acc)   # fused LeakyReLU

            # ---- optional (1,2) max-pool (stride-2 loads) + re-pad into the
            #      next layer's scratch.  Only pad sub-ranges are zeroed.
            if li + 1 < n_layers:
                nxt = plan[li + 1]
                wv, npad, nwrow, nci = nxt["win"], nxt["pad"], nxt["wrow"], nxt["Ci"]
                a_next = a_refs[li]
                zer = jnp.zeros((npad, nci), jnp.float32) if npad > 0 else None
                for r in range(R):
                    base = r * wrow                       # 8-aligned row start
                    if cfg["pool"]:
                        ev = s_refs[li][pl.ds(base, wv, stride=2), :]
                        od = s_refs[li][pl.ds(base + 1, wv, stride=2), :]
                        v = jnp.maximum(ev, od)
                    else:
                        v = s_refs[li][base:base + wv, :]
                    row0 = r * nwrow
                    a_next[row0 + npad: row0 + npad + wv, :] = v
                    if npad > 0:
                        a_next[row0: row0 + npad, :] = zer
                        a_next[row0 + npad + wv: row0 + npad + wv + npad, :] = zer

        # ---- fused FC head: gather the D*Wf valid rows per batch element along
        #      lanes and do ONE (BB, D*Wf*Cf) @ (D*Wf*Cf, OUT) matmul.
        last_wrow = plan[-1]["wrow"]
        rows = []
        for bb in range(BB):
            pieces = []
            for d in range(D):
                base = (bb * D + d) * last_wrow
                for w in range(Wf):
                    pieces.append(s_refs[-1][base + w: base + w + 1, :])   # (1, Cf)
            rows.append(jnp.concatenate(pieces, axis=1))                   # (1, D*Wf*Cf)
        x_fc = rows[0] if BB == 1 else jnp.concatenate(rows, axis=0)       # (BB, D*Wf*Cf)
        o_ref[...] = (jnp.dot(x_fc, wfc_ref[...], preferred_element_type=jnp.float32)
                      + bfc_ref[...])

    # ---- pallas_call plumbing -------------------------------------------------
    in_specs = [pl.BlockSpec((None, R * c0["wrow"], 1), lambda s: (s, 0, 0))]
    inputs = [x_in]
    for w2, b2 in zip(conv_w2, conv_b2):
        in_specs.append(pl.BlockSpec(w2.shape, lambda s: (0, 0)))
        in_specs.append(pl.BlockSpec(b2.shape, lambda s: (0, 0)))
        inputs.extend([w2, b2])
    in_specs.append(pl.BlockSpec(wfc2.shape, lambda s: (0, 0)))
    in_specs.append(pl.BlockSpec(bfc2.shape, lambda s: (0, 0)))
    inputs.extend([wfc2, bfc2])

    scratch_shapes = (
        # padded inputs of layers 2..6 (8-aligned row stride)
        [pltpu.VMEM((R * cfg["wrow"], cfg["Ci"]), jnp.float32) for cfg in plan[1:]] +
        # conv outputs of layers 1..6
        [pltpu.VMEM((mflat, cfg["Co"]), jnp.float32) for mflat, cfg in zip(mflats, plan)]
    )

    out = pl.pallas_call(
        kernel,
        out_shape=jax.ShapeDtypeStruct((n_steps, BB, OUT), jnp.float32),
        grid=(n_steps,),
        in_specs=in_specs,
        out_specs=pl.BlockSpec((None, BB, OUT), lambda s: (s, 0, 0)),
        scratch_shapes=scratch_shapes,
        compiler_params=pltpu.CompilerParams(dimension_semantics=("parallel",)),
    )(*inputs)
    return out.reshape(B, OUT)


# ----------------------------------------------------------------------------
# Pure-JAX (XLA) reference with the exact PyTorch CNN_small semantics.
# ----------------------------------------------------------------------------
def reference_forward(x_nchw, params):
    x = x_nchw.astype(jnp.float32)
    for (w, b), (K, Ci, Co, pad, pool) in zip(params["conv"], _LAYER_CFG):
        wk = jnp.transpose(w, (2, 1, 0))[:, :, None, :]        # (Co, Ci, 1, K) torch layout
        x = jax.lax.conv_general_dilated(
            x, wk, window_strides=(1, 1), padding=((0, 0), (pad, pad)),
            dimension_numbers=("NCHW", "OIHW", "NCHW"),
            precision=jax.lax.Precision.HIGHEST)
        x = x + b.reshape(1, Co, 1, 1)
        x = jnp.where(x > 0, x, LEAKY_SLOPE * x)
        if pool:                                               # MaxPool2d((1,2))
            half = x.shape[-1] // 2
            x = jnp.maximum(x[..., 0:2 * half:2], x[..., 1:2 * half:2])
    flat = x.reshape(x.shape[0], -1)                           # NCHW .view(B, -1)
    wfc, bfc = params["fc"]
    return jnp.dot(flat, wfc.T, precision=jax.lax.Precision.HIGHEST) + bfc.reshape(1, -1)


# ----------------------------------------------------------------------------
# Deterministic synthetic parameters (shapes from CNN_small.__init__)
# ----------------------------------------------------------------------------
def init_params(key, input_days):
    conv_params = []
    for (K, Ci, Co, _, _) in _LAYER_CFG:
        key, k1, k2 = jax.random.split(key, 3)
        w = jax.random.normal(k1, (K, Ci, Co), jnp.float32) / math.sqrt(K * Ci)
        b = jax.random.normal(k2, (1, Co), jnp.float32) * 0.01
        conv_params.append((w, b))
    IN = input_days * 32 * 6
    OUT = 48
    key, k1, k2 = jax.random.split(key, 3)
    wfc = jax.random.normal(k1, (OUT, IN), jnp.float32) / math.sqrt(IN)   # torch (out,in) layout
    bfc = jax.random.normal(k2, (OUT,), jnp.float32) * 0.01
    return {"conv": conv_params, "fc": (wfc, bfc)}


if __name__ == "__main__":
    input_days = 3
    B, W = 2, 48          # W=48 -> final conv width 6, matching Linear(input_days*32*6, 48)

    key = jax.random.PRNGKey(0)
    key, kx = jax.random.split(key)
    x = jax.random.normal(kx, (B, 1, input_days, W), jnp.float32)
    params = init_params(key, input_days)

    fwd = jax.jit(cnn_small_forward)
    out = fwd(x, params)
    jax.block_until_ready(out)

    assert out.shape == (B, 48), out.shape
    assert out.dtype == jnp.float32

    ref = reference_forward(x, params)
    np.testing.assert_allclose(np.asarray(out), np.asarray(ref), rtol=5e-3, atol=5e-3)

    print("KERNEL_OK")
</pallas_src>

<mosaic_0001>
module attributes {stable_mosaic.version = 11 : i64} {
  func.func @kernel(%arg0: i32, %arg1: memref<1x168x1xf32, #tpu.memory_space<vmem>>, %arg2: memref<7x8xf32, #tpu.memory_space<vmem>>, %arg3: memref<1x8xf32, #tpu.memory_space<vmem>>, %arg4: memref<40x16xf32, #tpu.memory_space<vmem>>, %arg5: memref<1x16xf32, #tpu.memory_space<vmem>>, %arg6: memref<80x16xf32, #tpu.memory_space<vmem>>, %arg7: memref<1x16xf32, #tpu.memory_space<vmem>>, %arg8: memref<64x32xf32, #tpu.memory_space<vmem>>, %arg9: memref<1x32xf32, #tpu.memory_space<vmem>>, %arg10: memref<96x32xf32, #tpu.memory_space<vmem>>, %arg11: memref<1x32xf32, #tpu.memory_space<vmem>>, %arg12: memref<96x32xf32, #tpu.memory_space<vmem>>, %arg13: memref<1x32xf32, #tpu.memory_space<vmem>>, %arg14: memref<576x48xf32, #tpu.memory_space<vmem>>, %arg15: memref<1x48xf32, #tpu.memory_space<vmem>>, %arg16: memref<1x1x48xf32, #tpu.memory_space<vmem>>, %arg17: memref<168x8xf32, #tpu.memory_space<vmem>>, %arg18: memref<96x16xf32, #tpu.memory_space<vmem>>, %arg19: memref<72x16xf32, #tpu.memory_space<vmem>>, %arg20: memref<48x32xf32, #tpu.memory_space<vmem>>, %arg21: memref<24x32xf32, #tpu.memory_space<vmem>>, %arg22: memref<162x8xf32, #tpu.memory_space<vmem>>, %arg23: memref<164x16xf32, #tpu.memory_space<vmem>>, %arg24: memref<92x16xf32, #tpu.memory_space<vmem>>, %arg25: memref<69x32xf32, #tpu.memory_space<vmem>>, %arg26: memref<46x32xf32, #tpu.memory_space<vmem>>, %arg27: memref<22x32xf32, #tpu.memory_space<vmem>>) attributes {dimension_semantics = [#tpu.dimension_semantics<parallel>], iteration_bounds = array<i64: 2>, scalar_prefetch = 0 : i64, scratch_operands = 11 : i64, tpu.core_type = #tpu.core_type<tc>, window_params = [{transform_indices = @transform_0, window_bounds = array<i64: 1, 168, 1>}, {pipeline_mode = #tpu.pipeline_mode<synchronous>, transform_indices = @transform_1, window_bounds = array<i64: 7, 8>}, {pipeline_mode = #tpu.pipeline_mode<synchronous>, transform_indices = @transform_2, window_bounds = array<i64: 1, 8>}, {pipeline_mode = #tpu.pipeline_mode<synchronous>, transform_indices = @transform_3, window_bounds = array<i64: 40, 16>}, {pipeline_mode = #tpu.pipeline_mode<synchronous>, transform_indices = @transform_4, window_bounds = array<i64: 1, 16>}, {pipeline_mode = #tpu.pipeline_mode<synchronous>, transform_indices = @transform_5, window_bounds = array<i64: 80, 16>}, {pipeline_mode = #tpu.pipeline_mode<synchronous>, transform_indices = @transform_6, window_bounds = array<i64: 1, 16>}, {pipeline_mode = #tpu.pipeline_mode<synchronous>, transform_indices = @transform_7, window_bounds = array<i64: 64, 32>}, {pipeline_mode = #tpu.pipeline_mode<synchronous>, transform_indices = @transform_8, window_bounds = array<i64: 1, 32>}, {pipeline_mode = #tpu.pipeline_mode<synchronous>, transform_indices = @transform_9, window_bounds = array<i64: 96, 32>}, {pipeline_mode = #tpu.pipeline_mode<synchronous>, transform_indices = @transform_10, window_bounds = array<i64: 1, 32>}, {pipeline_mode = #tpu.pipeline_mode<synchronous>, transform_indices = @transform_11, window_bounds = array<i64: 96, 32>}, {pipeline_mode = #tpu.pipeline_mode<synchronous>, transform_indices = @transform_12, window_bounds = array<i64: 1, 32>}, {pipeline_mode = #tpu.pipeline_mode<synchronous>, transform_indices = @transform_13, window_bounds = array<i64: 576, 48>}, {pipeline_mode = #tpu.pipeline_mode<synchronous>, transform_indices = @transform_14, window_bounds = array<i64: 1, 48>}, {transform_indices = @transform_15, window_bounds = array<i64: 1, 1, 48>}]} {
    %c0 = arith.constant 0 : index
    %c0_0 = arith.constant 0 : index
    %c0_1 = arith.constant 0 : index
    %0 = vector.load %arg1[%c0, %c0_0, %c0_1] : memref<1x168x1xf32, #tpu.memory_space<vmem>>, vector<1x162x1xf32>
    %1 = vector.shape_cast %0 : vector<1x162x1xf32> to vector<162x1xf32>
    %c0_2 = arith.constant 0 : index
    %c1 = arith.constant 1 : index
    %c0_3 = arith.constant 0 : index
    %2 = vector.load %arg1[%c0_2, %c1, %c0_3] : memref<1x168x1xf32, #tpu.memory_space<vmem>>, vector<1x162x1xf32>
    %3 = vector.shape_cast %2 : vector<1x162x1xf32> to vector<162x1xf32>
    %c0_4 = arith.constant 0 : index
    %c2 = arith.constant 2 : index
    %c0_5 = arith.constant 0 : index
    %4 = vector.load %arg1[%c0_4, %c2, %c0_5] : memref<1x168x1xf32, #tpu.memory_space<vmem>>, vector<1x162x1xf32>
    %5 = vector.shape_cast %4 : vector<1x162x1xf32> to vector<162x1xf32>
    %c0_6 = arith.constant 0 : index
    %c3 = arith.constant 3 : index
    %c0_7 = arith.constant 0 : index
    %6 = vector.load %arg1[%c0_6, %c3, %c0_7] : memref<1x168x1xf32, #tpu.memory_space<vmem>>, vector<1x162x1xf32>
    %7 = vector.shape_cast %6 : vector<1x162x1xf32> to vector<162x1xf32>
    %c0_8 = arith.constant 0 : index
    %c4 = arith.constant 4 : index
    %c0_9 = arith.constant 0 : index
    %8 = vector.load %arg1[%c0_8, %c4, %c0_9] : memref<1x168x1xf32, #tpu.memory_space<vmem>>, vector<1x162x1xf32>
    %9 = vector.shape_cast %8 : vector<1x162x1xf32> to vector<162x1xf32>
    %c0_10 = arith.constant 0 : index
    %c5 = arith.constant 5 : index
    %c0_11 = arith.constant 0 : index
    %10 = vector.load %arg1[%c0_10, %c5, %c0_11] : memref<1x168x1xf32, #tpu.memory_space<vmem>>, vector<1x162x1xf32>
    %11 = vector.shape_cast %10 : vector<1x162x1xf32> to vector<162x1xf32>
    %c0_12 = arith.constant 0 : index
    %c6 = arith.constant 6 : index
    %c0_13 = arith.constant 0 : index
    %12 = vector.load %arg1[%c0_12, %c6, %c0_13] : memref<1x168x1xf32, #tpu.memory_space<vmem>>, vector<1x162x1xf32>
    %13 = vector.shape_cast %12 : vector<1x162x1xf32> to vector<162x1xf32>
    %14 = tpu.concatenate %1, %3, %5, %7, %9, %11, %13 in 1 : vector<162x1xf32>, vector<162x1xf32>, vector<162x1xf32>, vector<162x1xf32>, vector<162x1xf32>, vector<162x1xf32>, vector<162x1xf32> -> vector<162x7xf32>
    %c0_14 = arith.constant 0 : index
    %c0_15 = arith.constant 0 : index
    %15 = vector.load %arg2[%c0_14, %c0_15] : memref<7x8xf32, #tpu.memory_space<vmem>>, vector<7x8xf32>
    %cst = arith.constant dense<0.000000e+00> : vector<162x8xf32>
    %16 = tpu.matmul %14, %15, %cst {dimension_numbers = #tpu.dot_dimension_numbers<[1], [0], [0], [1], [0, 0, 1, 1], [], []>} : vector<162x7xf32>, vector<7x8xf32>, vector<162x8xf32> -> vector<162x8xf32>
    %c0_16 = arith.constant 0 : index
    %c0_17 = arith.constant 0 : index
    %17 = vector.load %arg3[%c0_16, %c0_17] : memref<1x8xf32, #tpu.memory_space<vmem>>, vector<1x8xf32>
    %18 = vector.broadcast %17 : vector<1x8xf32> to vector<162x8xf32>
    %19 = arith.addf %16, %18 : vector<162x8xf32>
    %cst_18 = arith.constant 0.00999999977 : f32
    %20 = vector.broadcast %cst_18 : f32 to vector<162x8xf32>
    %21 = arith.mulf %20, %19 : vector<162x8xf32>
    %22 = arith.maximumf %19, %21 : vector<162x8xf32>
    %c0_19 = arith.constant 0 : index
    %c0_20 = arith.constant 0 : index
    %23 = vector.load %arg22[%c0_19, %c0_20] : memref<162x8xf32, #tpu.memory_space<vmem>>, vector<162x8xf32>
    tpu.vector_store %arg22[%c0_19, %c0_20], %22 {strides = array<i32>} : memref<162x8xf32, #tpu.memory_space<vmem>>, vector<162x8xf32>,
    %cst_21 = arith.constant 0.000000e+00 : f32
    %24 = vector.broadcast %cst_21 : f32 to vector<4x8xf32>
    %c0_22 = arith.constant 0 : index
    %c0_23 = arith.constant 0 : index
    %25 = vector.load %arg22[%c0_22, %c0_23] : memref<162x8xf32, #tpu.memory_space<vmem>>, vector<48x8xf32>
    %c4_24 = arith.constant 4 : index
    %c0_25 = arith.constant 0 : index
    %26 = vector.load %arg17[%c4_24, %c0_25] : memref<168x8xf32, #tpu.memory_space<vmem>>, vector<48x8xf32>
    tpu.vector_store %arg17[%c4_24, %c0_25], %25 {strides = array<i32>} : memref<168x8xf32, #tpu.memory_space<vmem>>, vector<48x8xf32>,
    %c0_26 = arith.constant 0 : index
    %c0_27 = arith.constant 0 : index
    %27 = vector.load %arg17[%c0_26, %c0_27] : memref<168x8xf32, #tpu.memory_space<vmem>>, vector<4x8xf32>
    tpu.vector_store %arg17[%c0_26, %c0_27], %24 {strides = array<i32>} : memref<168x8xf32, #tpu.memory_space<vmem>>, vector<4x8xf32>,
    %c52 = arith.constant 52 : index
    %c0_28 = arith.constant 0 : index
    %28 = vector.load %arg17[%c52, %c0_28] : memref<168x8xf32, #tpu.memory_space<vmem>>, vector<4x8xf32>
    tpu.vector_store %arg17[%c52, %c0_28], %24 {strides = array<i32>} : memref<168x8xf32, #tpu.memory_space<vmem>>, vector<4x8xf32>,
    %c56 = arith.constant 56 : index
    %c0_29 = arith.constant 0 : index
    %29 = vector.load %arg22[%c56, %c0_29] : memref<162x8xf32, #tpu.memory_space<vmem>>, vector<48x8xf32>
    %c60 = arith.constant 60 : index
    %c0_30 = arith.constant 0 : index
    %30 = vector.load %arg17[%c60, %c0_30] : memref<168x8xf32, #tpu.memory_space<vmem>>, vector<48x8xf32>
    tpu.vector_store %arg17[%c60, %c0_30], %29 {strides = array<i32>} : memref<168x8xf32, #tpu.memory_space<vmem>>, vector<48x8xf32>,
    %c56_31 = arith.constant 56 : index
    %c0_32 = arith.constant 0 : index
    %31 = vector.load %arg17[%c56_31, %c0_32] : memref<168x8xf32, #tpu.memory_space<vmem>>, vector<4x8xf32>
    tpu.vector_store %arg17[%c56_31, %c0_32], %24 {strides = array<i32>} : memref<168x8xf32, #tpu.memory_space<vmem>>, vector<4x8xf32>,
    %c108 = arith.constant 108 : index
    %c0_33 = arith.constant 0 : index
    %32 = vector.load %arg17[%c108, %c0_33] : memref<168x8xf32, #tpu.memory_space<vmem>>, vector<4x8xf32>
    tpu.vector_store %arg17[%c108, %c0_33], %24 {strides = array<i32>} : memref<168x8xf32, #tpu.memory_space<vmem>>, vector<4x8xf32>,
    %c112 = arith.constant 112 : index
    %c0_34 = arith.constant 0 : index
    %33 = vector.load %arg22[%c112, %c0_34] : memref<162x8xf32, #tpu.memory_space<vmem>>, vector<48x8xf32>
    %c116 = arith.constant 116 : index
    %c0_35 = arith.constant 0 : index
    %34 = vector.load %arg17[%c116, %c0_35] : memref<168x8xf32, #tpu.memory_space<vmem>>, vector<48x8xf32>
    tpu.vector_store %arg17[%c116, %c0_35], %33 {strides = array<i32>} : memref<168x8xf32, #tpu.memory_space<vmem>>, vector<48x8xf32>,
    %c112_36 = arith.constant 112 : index
    %c0_37 = arith.constant 0 : index
    %35 = vector.load %arg17[%c112_36, %c0_37] : memref<168x8xf32, #tpu.memory_space<vmem>>, vector<4x8xf32>
    tpu.vector_store %arg17[%c112_36, %c0_37], %24 {strides = array<i32>} : memref<168x8xf32, #tpu.memory_space<vmem>>, vector<4x8xf32>,
    %c164 = arith.constant 164 : index
    %c0_38 = arith.constant 0 : index
    %36 = vector.load %arg17[%c164, %c0_38] : memref<168x8xf32, #tpu.memory_space<vmem>>, vector<4x8xf32>
    tpu.vector_store %arg17[%c164, %c0_38], %24 {strides = array<i32>} : memref<168x8xf32, #tpu.memory_space<vmem>>, vector<4x8xf32>,
    %c0_39 = arith.constant 0 : index
    %c0_40 = arith.constant 0 : index
    %37 = vector.load %arg17[%c0_39, %c0_40] : memref<168x8xf32, #tpu.memory_space<vmem>>, vector<164x8xf32>
    %c1_41 = arith.constant 1 : index
    %c0_42 = arith.constant 0 : index
    %38 = vector.load %arg17[%c1_41, %c0_42] : memref<168x8xf32, #tpu.memory_space<vmem>>, vector<164x8xf32>
    %c2_43 = arith.constant 2 : index
    %c0_44 = arith.constant 0 : index
    %39 = vector.load %arg17[%c2_43, %c0_44] : memref<168x8xf32, #tpu.memory_space<vmem>>, vector<164x8xf32>
    %c3_45 = arith.constant 3 : index
    %c0_46 = arith.constant 0 : index
    %40 = vector.load %arg17[%c3_45, %c0_46] : memref<168x8xf32, #tpu.memory_space<vmem>>, vector<164x8xf32>
    %c4_47 = arith.constant 4 : index
    %c0_48 = arith.constant 0 : index
    %41 = vector.load %arg17[%c4_47, %c0_48] : memref<168x8xf32, #tpu.memory_space<vmem>>, vector<164x8xf32>
    %42 = tpu.concatenate %37, %38, %39, %40, %41 in 1 : vector<164x8xf32>, vector<164x8xf32>, vector<164x8xf32>, vector<164x8xf32>, vector<164x8xf32> -> vector<164x40xf32>
    %c0_49 = arith.constant 0 : index
    %c0_50 = arith.constant 0 : index
    %43 = vector.load %arg4[%c0_49, %c0_50] : memref<40x16xf32, #tpu.memory_space<vmem>>, vector<40x16xf32>
    %cst_51 = arith.constant dense<0.000000e+00> : vector<164x16xf32>
    %44 = tpu.matmul %42, %43, %cst_51 {dimension_numbers = #tpu.dot_dimension_numbers<[1], [0], [0], [1], [0, 0, 1, 1], [], []>} : vector<164x40xf32>, vector<40x16xf32>, vector<164x16xf32> -> vector<164x16xf32>
    %c0_52 = arith.constant 0 : index
    %c0_53 = arith.constant 0 : index
    %45 = vector.load %arg5[%c0_52, %c0_53] : memref<1x16xf32, #tpu.memory_space<vmem>>, vector<1x16xf32>
    %46 = vector.broadcast %45 : vector<1x16xf32> to vector<164x16xf32>
    %47 = arith.addf %44, %46 : vector<164x16xf32>
    %cst_54 = arith.constant 0.00999999977 : f32
    %48 = vector.broadcast %cst_54 : f32 to vector<164x16xf32>
    %49 = arith.mulf %48, %47 : vector<164x16xf32>
    %50 = arith.maximumf %47, %49 : vector<164x16xf32>
    %c0_55 = arith.constant 0 : index
    %c0_56 = arith.constant 0 : index
    %51 = vector.load %arg23[%c0_55, %c0_56] : memref<164x16xf32, #tpu.memory_space<vmem>>, vector<164x16xf32>
    tpu.vector_store %arg23[%c0_55, %c0_56], %50 {strides = array<i32>} : memref<164x16xf32, #tpu.memory_space<vmem>>, vector<164x16xf32>,
    %cst_57 = arith.constant 0.000000e+00 : f32
    %52 = vector.broadcast %cst_57 : f32 to vector<2x16xf32>
    %c0_58 = arith.constant 0 : index
    %c0_59 = arith.constant 0 : index
    %53 = tpu.strided_load %arg23[%c0_58, %c0_59] {strides = array<i32: 2, 1>} : memref<164x16xf32, #tpu.memory_space<vmem>>, vector<26x16xf32>
    %c1_60 = arith.constant 1 : index
    %c0_61 = arith.constant 0 : index
    %54 = tpu.strided_load %arg23[%c1_60, %c0_61] {strides = array<i32: 2, 1>} : memref<164x16xf32, #tpu.memory_space<vmem>>, vector<26x16xf32>
    %55 = arith.maximumf %53, %54 : vector<26x16xf32>
    %c2_62 = arith.constant 2 : index
    %c0_63 = arith.constant 0 : index
    %56 = vector.load %arg18[%c2_62, %c0_63] : memref<96x16xf32, #tpu.memory_space<vmem>>, vector<26x16xf32>
    tpu.vector_store %arg18[%c2_62, %c0_63], %55 {strides = array<i32>} : memref<96x16xf32, #tpu.memory_space<vmem>>, vector<26x16xf32>,
    %c0_64 = arith.constant 0 : index
    %c0_65 = arith.constant 0 : index
    %57 = vector.load %arg18[%c0_64, %c0_65] : memref<96x16xf32, #tpu.memory_space<vmem>>, vector<2x16xf32>
    tpu.vector_store %arg18[%c0_64, %c0_65], %52 {strides = array<i32>} : memref<96x16xf32, #tpu.memory_space<vmem>>, vector<2x16xf32>,
    %c28 = arith.constant 28 : index
    %c0_66 = arith.constant 0 : index
    %58 = vector.load %arg18[%c28, %c0_66] : memref<96x16xf32, #tpu.memory_space<vmem>>, vector<2x16xf32>
    tpu.vector_store %arg18[%c28, %c0_66], %52 {strides = array<i32>} : memref<96x16xf32, #tpu.memory_space<vmem>>, vector<2x16xf32>,
    %c56_67 = arith.constant 56 : index
    %c0_68 = arith.constant 0 : index
    %59 = tpu.strided_load %arg23[%c56_67, %c0_68] {strides = array<i32: 2, 1>} : memref<164x16xf32, #tpu.memory_space<vmem>>, vector<26x16xf32>
    %c57 = arith.constant 57 : index
    %c0_69 = arith.constant 0 : index
    %60 = tpu.strided_load %arg23[%c57, %c0_69] {strides = array<i32: 2, 1>} : memref<164x16xf32, #tpu.memory_space<vmem>>, vector<26x16xf32>
    %61 = arith.maximumf %59, %60 : vector<26x16xf32>
    %c34 = arith.constant 34 : index
    %c0_70 = arith.constant 0 : index
    %62 = vector.load %arg18[%c34, %c0_70] : memref<96x16xf32, #tpu.memory_space<vmem>>, vector<26x16xf32>
    tpu.vector_store %arg18[%c34, %c0_70], %61 {strides = array<i32>} : memref<96x16xf32, #tpu.memory_space<vmem>>, vector<26x16xf32>,
    %c32 = arith.constant 32 : index
    %c0_71 = arith.constant 0 : index
    %63 = vector.load %arg18[%c32, %c0_71] : memref<96x16xf32, #tpu.memory_space<vmem>>, vector<2x16xf32>
    tpu.vector_store %arg18[%c32, %c0_71], %52 {strides = array<i32>} : memref<96x16xf32, #tpu.memory_space<vmem>>, vector<2x16xf32>,
    %c60_72 = arith.constant 60 : index
    %c0_73 = arith.constant 0 : index
    %64 = vector.load %arg18[%c60_72, %c0_73] : memref<96x16xf32, #tpu.memory_space<vmem>>, vector<2x16xf32>
    tpu.vector_store %arg18[%c60_72, %c0_73], %52 {strides = array<i32>} : memref<96x16xf32, #tpu.memory_space<vmem>>, vector<2x16xf32>,
    %c112_74 = arith.constant 112 : index
    %c0_75 = arith.constant 0 : index
    %65 = tpu.strided_load %arg23[%c112_74, %c0_75] {strides = array<i32: 2, 1>} : memref<164x16xf32, #tpu.memory_space<vmem>>, vector<26x16xf32>
    %c113 = arith.constant 113 : index
    %c0_76 = arith.constant 0 : index
    %66 = tpu.strided_load %arg23[%c113, %c0_76] {strides = array<i32: 2, 1>} : memref<164x16xf32, #tpu.memory_space<vmem>>, vector<26x16xf32>
    %67 = arith.maximumf %65, %66 : vector<26x16xf32>
    %c66 = arith.constant 66 : index
    %c0_77 = arith.constant 0 : index
    %68 = vector.load %arg18[%c66, %c0_77] : memref<96x16xf32, #tpu.memory_space<vmem>>, vector<26x16xf32>
    tpu.vector_store %arg18[%c66, %c0_77], %67 {strides = array<i32>} : memref<96x16xf32, #tpu.memory_space<vmem>>, vector<26x16xf32>,
    %c64 = arith.constant 64 : index
    %c0_78 = arith.constant 0 : index
    %69 = vector.load %arg18[%c64, %c0_78] : memref<96x16xf32, #tpu.memory_space<vmem>>, vector<2x16xf32>
    tpu.vector_store %arg18[%c64, %c0_78], %52 {strides = array<i32>} : memref<96x16xf32, #tpu.memory_space<vmem>>, vector<2x16xf32>,
    %c92 = arith.constant 92 : index
    %c0_79 = arith.constant 0 : index
    %70 = vector.load %arg18[%c92, %c0_79] : memref<96x16xf32, #tpu.memory_space<vmem>>, vector<2x16xf32>
    tpu.vector_store %arg18[%c92, %c0_79], %52 {strides = array<i32>} : memref<96x16xf32, #tpu.memory_space<vmem>>, vector<2x16xf32>,
    %c0_80 = arith.constant 0 : index
    %c0_81 = arith.constant 0 : index
    %71 = vector.load %arg18[%c0_80, %c0_81] : memref<96x16xf32, #tpu.memory_space<vmem>>, vector<92x16xf32>
    %c1_82 = arith.constant 1 : index
    %c0_83 = arith.constant 0 : index
    %72 = vector.load %arg18[%c1_82, %c0_83] : memref<96x16xf32, #tpu.memory_space<vmem>>, vector<92x16xf32>
    %c2_84 = arith.constant 2 : index
    %c0_85 = arith.constant 0 : index
    %73 = vector.load %arg18[%c2_84, %c0_85] : memref<96x16xf32, #tpu.memory_space<vmem>>, vector<92x16xf32>
    %c3_86 = arith.constant 3 : index
    %c0_87 = arith.constant 0 : index
    %74 = vector.load %arg18[%c3_86, %c0_87] : memref<96x16xf32, #tpu.memory_space<vmem>>, vector<92x16xf32>
    %c4_88 = arith.constant 4 : index
    %c0_89 = arith.constant 0 : index
    %75 = vector.load %arg18[%c4_88, %c0_89] : memref<96x16xf32, #tpu.memory_space<vmem>>, vector<92x16xf32>
    %76 = tpu.concatenate %71, %72, %73, %74, %75 in 1 : vector<92x16xf32>, vector<92x16xf32>, vector<92x16xf32>, vector<92x16xf32>, vector<92x16xf32> -> vector<92x80xf32>
    %c0_90 = arith.constant 0 : index
    %c0_91 = arith.constant 0 : index
    %77 = vector.load %arg6[%c0_90, %c0_91] : memref<80x16xf32, #tpu.memory_space<vmem>>, vector<80x16xf32>
    %cst_92 = arith.constant dense<0.000000e+00> : vector<92x16xf32>
    %78 = tpu.matmul %76, %77, %cst_92 {dimension_numbers = #tpu.dot_dimension_numbers<[1], [0], [0], [1], [0, 0, 1, 1], [], []>} : vector<92x80xf32>, vector<80x16xf32>, vector<92x16xf32> -> vector<92x16xf32>
    %c0_93 = arith.constant 0 : index
    %c0_94 = arith.constant 0 : index
    %79 = vector.load %arg7[%c0_93, %c0_94] : memref<1x16xf32, #tpu.memory_space<vmem>>, vector<1x16xf32>
    %80 = vector.broadcast %79 : vector<1x16xf32> to vector<92x16xf32>
    %81 = arith.addf %78, %80 : vector<92x16xf32>
    %cst_95 = arith.constant 0.00999999977 : f32
    %82 = vector.broadcast %cst_95 : f32 to vector<92x16xf32>
    %83 = arith.mulf %82, %81 : vector<92x16xf32>
    %84 = arith.maximumf %81, %83 : vector<92x16xf32>
    %c0_96 = arith.constant 0 : index
    %c0_97 = arith.constant 0 : index
    %85 = vector.load %arg24[%c0_96, %c0_97] : memref<92x16xf32, #tpu.memory_space<vmem>>, vector<92x16xf32>
    tpu.vector_store %arg24[%c0_96, %c0_97], %84 {strides = array<i32>} : memref<92x16xf32, #tpu.memory_space<vmem>>, vector<92x16xf32>,
    %cst_98 = arith.constant 0.000000e+00 : f32
    %86 = vector.broadcast %cst_98 : f32 to vector<2x16xf32>
    %c0_99 = arith.constant 0 : index
    %c0_100 = arith.constant 0 : index
    %87 = tpu.strided_load %arg24[%c0_99, %c0_100] {strides = array<i32: 2, 1>} : memref<92x16xf32, #tpu.memory_space<vmem>>, vector<13x16xf32>
    %c1_101 = arith.constant 1 : index
    %c0_102 = arith.constant 0 : index
    %88 = tpu.strided_load %arg24[%c1_101, %c0_102] {strides = array<i32: 2, 1>} : memref<92x16xf32, #tpu.memory_space<vmem>>, vector<13x16xf32>
    %89 = arith.maximumf %87, %88 : vector<13x16xf32>
    %c2_103 = arith.constant 2 : index
    %c0_104 = arith.constant 0 : index
    %90 = vector.load %arg19[%c2_103, %c0_104] : memref<72x16xf32, #tpu.memory_space<vmem>>, vector<13x16xf32>
    tpu.vector_store %arg19[%c2_103, %c0_104], %89 {strides = array<i32>} : memref<72x16xf32, #tpu.memory_space<vmem>>, vector<13x16xf32>,
    %c0_105 = arith.constant 0 : index
    %c0_106 = arith.constant 0 : index
    %91 = vector.load %arg19[%c0_105, %c0_106] : memref<72x16xf32, #tpu.memory_space<vmem>>, vector<2x16xf32>
    tpu.vector_store %arg19[%c0_105, %c0_106], %86 {strides = array<i32>} : memref<72x16xf32, #tpu.memory_space<vmem>>, vector<2x16xf32>,
    %c15 = arith.constant 15 : index
    %c0_107 = arith.constant 0 : index
    %92 = vector.load %arg19[%c15, %c0_107] : memref<72x16xf32, #tpu.memory_space<vmem>>, vector<2x16xf32>
    tpu.vector_store %arg19[%c15, %c0_107], %86 {strides = array<i32>} : memref<72x16xf32, #tpu.memory_space<vmem>>, vector<2x16xf32>,
    %c32_108 = arith.constant 32 : index
    %c0_109 = arith.constant 0 : index
    %93 = tpu.strided_load %arg24[%c32_108, %c0_109] {strides = array<i32: 2, 1>} : memref<92x16xf32, #tpu.memory_space<vmem>>, vector<13x16xf32>
    %c33 = arith.constant 33 : index
    %c0_110 = arith.constant 0 : index
    %94 = tpu.strided_load %arg24[%c33, %c0_110] {strides = array<i32: 2, 1>} : memref<92x16xf32, #tpu.memory_space<vmem>>, vector<13x16xf32>
    %95 = arith.maximumf %93, %94 : vector<13x16xf32>
    %c26 = arith.constant 26 : index
    %c0_111 = arith.constant 0 : index
    %96 = vector.load %arg19[%c26, %c0_111] : memref<72x16xf32, #tpu.memory_space<vmem>>, vector<13x16xf32>
    tpu.vector_store %arg19[%c26, %c0_111], %95 {strides = array<i32>} : memref<72x16xf32, #tpu.memory_space<vmem>>, vector<13x16xf32>,
    %c24 = arith.constant 24 : index
    %c0_112 = arith.constant 0 : index
    %97 = vector.load %arg19[%c24, %c0_112] : memref<72x16xf32, #tpu.memory_space<vmem>>, vector<2x16xf32>
    tpu.vector_store %arg19[%c24, %c0_112], %86 {strides = array<i32>} : memref<72x16xf32, #tpu.memory_space<vmem>>, vector<2x16xf32>,
    %c39 = arith.constant 39 : index
    %c0_113 = arith.constant 0 : index
    %98 = vector.load %arg19[%c39, %c0_113] : memref<72x16xf32, #tpu.memory_space<vmem>>, vector<2x16xf32>
    tpu.vector_store %arg19[%c39, %c0_113], %86 {strides = array<i32>} : memref<72x16xf32, #tpu.memory_space<vmem>>, vector<2x16xf32>,
    %c64_114 = arith.constant 64 : index
    %c0_115 = arith.constant 0 : index
    %99 = tpu.strided_load %arg24[%c64_114, %c0_115] {strides = array<i32: 2, 1>} : memref<92x16xf32, #tpu.memory_space<vmem>>, vector<13x16xf32>
    %c65 = arith.constant 65 : index
    %c0_116 = arith.constant 0 : index
    %100 = tpu.strided_load %arg24[%c65, %c0_116] {strides = array<i32: 2, 1>} : memref<92x16xf32, #tpu.memory_space<vmem>>, vector<13x16xf32>
    %101 = arith.maximumf %99, %100 : vector<13x16xf32>
    %c50 = arith.constant 50 : index
    %c0_117 = arith.constant 0 : index
    %102 = vector.load %arg19[%c50, %c0_117] : memref<72x16xf32, #tpu.memory_space<vmem>>, vector<13x16xf32>
    tpu.vector_store %arg19[%c50, %c0_117], %101 {strides = array<i32>} : memref<72x16xf32, #tpu.memory_space<vmem>>, vector<13x16xf32>,
    %c48 = arith.constant 48 : index
    %c0_118 = arith.constant 0 : index
    %103 = vector.load %arg19[%c48, %c0_118] : memref<72x16xf32, #tpu.memory_space<vmem>>, vector<2x16xf32>
    tpu.vector_store %arg19[%c48, %c0_118], %86 {strides = array<i32>} : memref<72x16xf32, #tpu.memory_space<vmem>>, vector<2x16xf32>,
    %c63 = arith.constant 63 : index
    %c0_119 = arith.constant 0 : index
    %104 = vector.load %arg19[%c63, %c0_119] : memref<72x16xf32, #tpu.memory_space<vmem>>, vector<2x16xf32>
    tpu.vector_store %arg19[%c63, %c0_119], %86 {strides = array<i32>} : memref<72x16xf32, #tpu.memory_space<vmem>>, vector<2x16xf32>,
    %c0_120 = arith.constant 0 : index
    %c0_121 = arith.constant 0 : index
    %105 = vector.load %arg19[%c0_120, %c0_121] : memref<72x16xf32, #tpu.memory_space<vmem>>, vector<69x16xf32>
    %c1_122 = arith.constant 1 : index
    %c0_123 = arith.constant 0 : index
    %106 = vector.load %arg19[%c1_122, %c0_123] : memref<72x16xf32, #tpu.memory_space<vmem>>, vector<69x16xf32>
    %c2_124 = arith.constant 2 : index
    %c0_125 = arith.constant 0 : index
    %107 = vector.load %arg19[%c2_124, %c0_125] : memref<72x16xf32, #tpu.memory_space<vmem>>, vector<69x16xf32>
    %c3_126 = arith.constant 3 : index
    %c0_127 = arith.constant 0 : index
    %108 = vector.load %arg19[%c3_126, %c0_127] : memref<72x16xf32, #tpu.memory_space<vmem>>, vector<69x16xf32>
    %109 = tpu.concatenate %105, %106, %107, %108 in 1 : vector<69x16xf32>, vector<69x16xf32>, vector<69x16xf32>, vector<69x16xf32> -> vector<69x64xf32>
    %c0_128 = arith.constant 0 : index
    %c0_129 = arith.constant 0 : index
    %110 = vector.load %arg8[%c0_128, %c0_129] : memref<64x32xf32, #tpu.memory_space<vmem>>, vector<64x32xf32>
    %cst_130 = arith.constant dense<0.000000e+00> : vector<69x32xf32>
    %111 = tpu.matmul %109, %110, %cst_130 {dimension_numbers = #tpu.dot_dimension_numbers<[1], [0], [0], [1], [0, 0, 1, 1], [], []>} : vector<69x64xf32>, vector<64x32xf32>, vector<69x32xf32> -> vector<69x32xf32>
    %c0_131 = arith.constant 0 : index
    %c0_132 = arith.constant 0 : index
    %112 = vector.load %arg9[%c0_131, %c0_132] : memref<1x32xf32, #tpu.memory_space<vmem>>, vector<1x32xf32>
    %113 = vector.broadcast %112 : vector<1x32xf32> to vector<69x32xf32>
    %114 = arith.addf %111, %113 : vector<69x32xf32>
    %cst_133 = arith.constant 0.00999999977 : f32
    %115 = vector.broadcast %cst_133 : f32 to vector<69x32xf32>
    %116 = arith.mulf %115, %114 : vector<69x32xf32>
    %117 = arith.maximumf %114, %116 : vector<69x32xf32>
    %c0_134 = arith.constant 0 : index
    %c0_135 = arith.constant 0 : index
    %118 = vector.load %arg25[%c0_134, %c0_135] : memref<69x32xf32, #tpu.memory_space<vmem>>, vector<69x32xf32>
    tpu.vector_store %arg25[%c0_134, %c0_135], %117 {strides = array<i32>} : memref<69x32xf32, #tpu.memory_space<vmem>>, vector<69x32xf32>,
    %c0_136 = arith.constant 0 : index
    %c0_137 = arith.constant 0 : index
    %119 = vector.load %arg25[%c0_136, %c0_137] : memref<69x32xf32, #tpu.memory_space<vmem>>, vector<14x32xf32>
    %c0_138 = arith.constant 0 : index
    %c0_139 = arith.constant 0 : index
    %120 = vector.load %arg20[%c0_138, %c0_139] : memref<48x32xf32, #tpu.memory_space<vmem>>, vector<14x32xf32>
    tpu.vector_store %arg20[%c0_138, %c0_139], %119 {strides = array<i32>} : memref<48x32xf32, #tpu.memory_space<vmem>>, vector<14x32xf32>,
    %c24_140 = arith.constant 24 : index
    %c0_141 = arith.constant 0 : index
    %121 = vector.load %arg25[%c24_140, %c0_141] : memref<69x32xf32, #tpu.memory_space<vmem>>, vector<14x32xf32>
    %c16 = arith.constant 16 : index
    %c0_142 = arith.constant 0 : index
    %122 = vector.load %arg20[%c16, %c0_142] : memref<48x32xf32, #tpu.memory_space<vmem>>, vector<14x32xf32>
    tpu.vector_store %arg20[%c16, %c0_142], %121 {strides = array<i32>} : memref<48x32xf32, #tpu.memory_space<vmem>>, vector<14x32xf32>,
    %c48_143 = arith.constant 48 : index
    %c0_144 = arith.constant 0 : index
    %123 = vector.load %arg25[%c48_143, %c0_144] : memref<69x32xf32, #tpu.memory_space<vmem>>, vector<14x32xf32>
    %c32_145 = arith.constant 32 : index
    %c0_146 = arith.constant 0 : index
    %124 = vector.load %arg20[%c32_145, %c0_146] : memref<48x32xf32, #tpu.memory_space<vmem>>, vector<14x32xf32>
    tpu.vector_store %arg20[%c32_145, %c0_146], %123 {strides = array<i32>} : memref<48x32xf32, #tpu.memory_space<vmem>>, vector<14x32xf32>,
    %c0_147 = arith.constant 0 : index
    %c0_148 = arith.constant 0 : index
    %125 = vector.load %arg20[%c0_147, %c0_148] : memref<48x32xf32, #tpu.memory_space<vmem>>, vector<46x32xf32>
    %c1_149 = arith.constant 1 : index
    %c0_150 = arith.constant 0 : index
    %126 = vector.load %arg20[%c1_149, %c0_150] : memref<48x32xf32, #tpu.memory_space<vmem>>, vector<46x32xf32>
    %c2_151 = arith.constant 2 : index
    %c0_152 = arith.constant 0 : index
    %127 = vector.load %arg20[%c2_151, %c0_152] : memref<48x32xf32, #tpu.memory_space<vmem>>, vector<46x32xf32>
    %128 = tpu.concatenate %125, %126, %127 in 1 : vector<46x32xf32>, vector<46x32xf32>, vector<46x32xf32> -> vector<46x96xf32>
    %c0_153 = arith.constant 0 : index
    %c0_154 = arith.constant 0 : index
    %129 = vector.load %arg10[%c0_153, %c0_154] : memref<96x32xf32, #tpu.memory_space<vmem>>, vector<96x32xf32>
    %cst_155 = arith.constant dense<0.000000e+00> : vector<46x32xf32>
    %130 = tpu.matmul %128, %129, %cst_155 {dimension_numbers = #tpu.dot_dimension_numbers<[1], [0], [0], [1], [0, 0, 1, 1], [], []>} : vector<46x96xf32>, vector<96x32xf32>, vector<46x32xf32> -> vector<46x32xf32>
    %c0_156 = arith.constant 0 : index
    %c0_157 = arith.constant 0 : index
    %131 = vector.load %arg11[%c0_156, %c0_157] : memref<1x32xf32, #tpu.memory_space<vmem>>, vector<1x32xf32>
    %132 = vector.broadcast %131 : vector<1x32xf32> to vector<46x32xf32>
    %133 = arith.addf %130, %132 : vector<46x32xf32>
    %cst_158 = arith.constant 0.00999999977 : f32
    %134 = vector.broadcast %cst_158 : f32 to vector<46x32xf32>
    %135 = arith.mulf %134, %133 : vector<46x32xf32>
    %136 = arith.maximumf %133, %135 : vector<46x32xf32>
    %c0_159 = arith.constant 0 : index
    %c0_160 = arith.constant 0 : index
    %137 = vector.load %arg26[%c0_159, %c0_160] : memref<46x32xf32, #tpu.memory_space<vmem>>, vector<46x32xf32>
    tpu.vector_store %arg26[%c0_159, %c0_160], %136 {strides = array<i32>} : memref<46x32xf32, #tpu.memory_space<vmem>>, vector<46x32xf32>,
    %cst_161 = arith.constant 0.000000e+00 : f32
    %138 = vector.broadcast %cst_161 : f32 to vector<1x32xf32>
    %c0_162 = arith.constant 0 : index
    %c0_163 = arith.constant 0 : index
    %139 = tpu.strided_load %arg26[%c0_162, %c0_163] {strides = array<i32: 2, 1>} : memref<46x32xf32, #tpu.memory_space<vmem>>, vector<6x32xf32>
    %c1_164 = arith.constant 1 : index
    %c0_165 = arith.constant 0 : index
    %140 = tpu.strided_load %arg26[%c1_164, %c0_165] {strides = array<i32: 2, 1>} : memref<46x32xf32, #tpu.memory_space<vmem>>, vector<6x32xf32>
    %141 = arith.maximumf %139, %140 : vector<6x32xf32>
    %c1_166 = arith.constant 1 : index
    %c0_167 = arith.constant 0 : index
    %142 = vector.load %arg21[%c1_166, %c0_167] : memref<24x32xf32, #tpu.memory_space<vmem>>, vector<6x32xf32>
    tpu.vector_store %arg21[%c1_166, %c0_167], %141 {strides = array<i32>} : memref<24x32xf32, #tpu.memory_space<vmem>>, vector<6x32xf32>,
    %c0_168 = arith.constant 0 : index
    %c0_169 = arith.constant 0 : index
    %143 = vector.load %arg21[%c0_168, %c0_169] : memref<24x32xf32, #tpu.memory_space<vmem>>, vector<1x32xf32>
    tpu.vector_store %arg21[%c0_168, %c0_169], %138 {strides = array<i32>} : memref<24x32xf32, #tpu.memory_space<vmem>>, vector<1x32xf32>,
    %c7 = arith.constant 7 : index
    %c0_170 = arith.constant 0 : index
    %144 = vector.load %arg21[%c7, %c0_170] : memref<24x32xf32, #tpu.memory_space<vmem>>, vector<1x32xf32>
    tpu.vector_store %arg21[%c7, %c0_170], %138 {strides = array<i32>} : memref<24x32xf32, #tpu.memory_space<vmem>>, vector<1x32xf32>,
    %c16_171 = arith.constant 16 : index
    %c0_172 = arith.constant 0 : index
    %145 = tpu.strided_load %arg26[%c16_171, %c0_172] {strides = array<i32: 2, 1>} : memref<46x32xf32, #tpu.memory_space<vmem>>, vector<6x32xf32>
    %c17 = arith.constant 17 : index
    %c0_173 = arith.constant 0 : index
    %146 = tpu.strided_load %arg26[%c17, %c0_173] {strides = array<i32: 2, 1>} : memref<46x32xf32, #tpu.memory_space<vmem>>, vector<6x32xf32>
    %147 = arith.maximumf %145, %146 : vector<6x32xf32>
    %c9 = arith.constant 9 : index
    %c0_174 = arith.constant 0 : index
    %148 = vector.load %arg21[%c9, %c0_174] : memref<24x32xf32, #tpu.memory_space<vmem>>, vector<6x32xf32>
    tpu.vector_store %arg21[%c9, %c0_174], %147 {strides = array<i32>} : memref<24x32xf32, #tpu.memory_space<vmem>>, vector<6x32xf32>,
    %c8 = arith.constant 8 : index
    %c0_175 = arith.constant 0 : index
    %149 = vector.load %arg21[%c8, %c0_175] : memref<24x32xf32, #tpu.memory_space<vmem>>, vector<1x32xf32>
    tpu.vector_store %arg21[%c8, %c0_175], %138 {strides = array<i32>} : memref<24x32xf32, #tpu.memory_space<vmem>>, vector<1x32xf32>,
    %c15_176 = arith.constant 15 : index
    %c0_177 = arith.constant 0 : index
    %150 = vector.load %arg21[%c15_176, %c0_177] : memref<24x32xf32, #tpu.memory_space<vmem>>, vector<1x32xf32>
    tpu.vector_store %arg21[%c15_176, %c0_177], %138 {strides = array<i32>} : memref<24x32xf32, #tpu.memory_space<vmem>>, vector<1x32xf32>,
    %c32_178 = arith.constant 32 : index
    %c0_179 = arith.constant 0 : index
    %151 = tpu.strided_load %arg26[%c32_178, %c0_179] {strides = array<i32: 2, 1>} : memref<46x32xf32, #tpu.memory_space<vmem>>, vector<6x32xf32>
    %c33_180 = arith.constant 33 : index
    %c0_181 = arith.constant 0 : index
    %152 = tpu.strided_load %arg26[%c33_180, %c0_181] {strides = array<i32: 2, 1>} : memref<46x32xf32, #tpu.memory_space<vmem>>, vector<6x32xf32>
    %153 = arith.maximumf %151, %152 : vector<6x32xf32>
    %c17_182 = arith.constant 17 : index
    %c0_183 = arith.constant 0 : index
    %154 = vector.load %arg21[%c17_182, %c0_183] : memref<24x32xf32, #tpu.memory_space<vmem>>, vector<6x32xf32>
    tpu.vector_store %arg21[%c17_182, %c0_183], %153 {strides = array<i32>} : memref<24x32xf32, #tpu.memory_space<vmem>>, vector<6x32xf32>,
    %c16_184 = arith.constant 16 : index
    %c0_185 = arith.constant 0 : index
    %155 = vector.load %arg21[%c16_184, %c0_185] : memref<24x32xf32, #tpu.memory_space<vmem>>, vector<1x32xf32>
    tpu.vector_store %arg21[%c16_184, %c0_185], %138 {strides = array<i32>} : memref<24x32xf32, #tpu.memory_space<vmem>>, vector<1x32xf32>,
    %c23 = arith.constant 23 : index
    %c0_186 = arith.constant 0 : index
    %156 = vector.load %arg21[%c23, %c0_186] : memref<24x32xf32, #tpu.memory_space<vmem>>, vector<1x32xf32>
    tpu.vector_store %arg21[%c23, %c0_186], %138 {strides = array<i32>} : memref<24x32xf32, #tpu.memory_space<vmem>>, vector<1x32xf32>,
    %c0_187 = arith.constant 0 : index
    %c0_188 = arith.constant 0 : index
    %157 = vector.load %arg21[%c0_187, %c0_188] : memref<24x32xf32, #tpu.memory_space<vmem>>, vector<22x32xf32>
    %c1_189 = arith.constant 1 : index
    %c0_190 = arith.constant 0 : index
    %158 = vector.load %arg21[%c1_189, %c0_190] : memref<24x32xf32, #tpu.memory_space<vmem>>, vector<22x32xf32>
    %c2_191 = arith.constant 2 : index
    %c0_192 = arith.constant 0 : index
    %159 = vector.load %arg21[%c2_191, %c0_192] : memref<24x32xf32, #tpu.memory_space<vmem>>, vector<22x32xf32>
    %160 = tpu.concatenate %157, %158, %159 in 1 : vector<22x32xf32>, vector<22x32xf32>, vector<22x32xf32> -> vector<22x96xf32>
    %c0_193 = arith.constant 0 : index
    %c0_194 = arith.constant 0 : index
    %161 = vector.load %arg12[%c0_193, %c0_194] : memref<96x32xf32, #tpu.memory_space<vmem>>, vector<96x32xf32>
    %cst_195 = arith.constant dense<0.000000e+00> : vector<22x32xf32>
    %162 = tpu.matmul %160, %161, %cst_195 {dimension_numbers = #tpu.dot_dimension_numbers<[1], [0], [0], [1], [0, 0, 1, 1], [], []>} : vector<22x96xf32>, vector<96x32xf32>, vector<22x32xf32> -> vector<22x32xf32>
    %c0_196 = arith.constant 0 : index
    %c0_197 = arith.constant 0 : index
    %163 = vector.load %arg13[%c0_196, %c0_197] : memref<1x32xf32, #tpu.memory_space<vmem>>, vector<1x32xf32>
    %164 = vector.broadcast %163 : vector<1x32xf32> to vector<22x32xf32>
    %165 = arith.addf %162, %164 : vector<22x32xf32>
    %cst_198 = arith.constant 0.00999999977 : f32
    %166 = vector.broadcast %cst_198 : f32 to vector<22x32xf32>
    %167 = arith.mulf %166, %165 : vector<22x32xf32>
    %168 = arith.maximumf %165, %167 : vector<22x32xf32>
    %c0_199 = arith.constant 0 : index
    %c0_200 = arith.constant 0 : index
    %169 = vector.load %arg27[%c0_199, %c0_200] : memref<22x32xf32, #tpu.memory_space<vmem>>, vector<22x32xf32>
    tpu.vector_store %arg27[%c0_199, %c0_200], %168 {strides = array<i32>} : memref<22x32xf32, #tpu.memory_space<vmem>>, vector<22x32xf32>,
    %c0_201 = arith.constant 0 : index
    %c0_202 = arith.constant 0 : index
    %170 = vector.load %arg27[%c0_201, %c0_202] : memref<22x32xf32, #tpu.memory_space<vmem>>, vector<1x32xf32>
    %c1_203 = arith.constant 1 : index
    %c0_204 = arith.constant 0 : index
    %171 = vector.load %arg27[%c1_203, %c0_204] : memref<22x32xf32, #tpu.memory_space<vmem>>, vector<1x32xf32>
    %c2_205 = arith.constant 2 : index
    %c0_206 = arith.constant 0 : index
    %172 = vector.load %arg27[%c2_205, %c0_206] : memref<22x32xf32, #tpu.memory_space<vmem>>, vector<1x32xf32>
    %c3_207 = arith.constant 3 : index
    %c0_208 = arith.constant 0 : index
    %173 = vector.load %arg27[%c3_207, %c0_208] : memref<22x32xf32, #tpu.memory_space<vmem>>, vector<1x32xf32>
    %c4_209 = arith.constant 4 : index
    %c0_210 = arith.constant 0 : index
    %174 = vector.load %arg27[%c4_209, %c0_210] : memref<22x32xf32, #tpu.memory_space<vmem>>, vector<1x32xf32>
    %c5_211 = arith.constant 5 : index
    %c0_212 = arith.constant 0 : index
    %175 = vector.load %arg27[%c5_211, %c0_212] : memref<22x32xf32, #tpu.memory_space<vmem>>, vector<1x32xf32>
    %c8_213 = arith.constant 8 : index
    %c0_214 = arith.constant 0 : index
    %176 = vector.load %arg27[%c8_213, %c0_214] : memref<22x32xf32, #tpu.memory_space<vmem>>, vector<1x32xf32>
    %c9_215 = arith.constant 9 : index
    %c0_216 = arith.constant 0 : index
    %177 = vector.load %arg27[%c9_215, %c0_216] : memref<22x32xf32, #tpu.memory_space<vmem>>, vector<1x32xf32>
    %c10 = arith.constant 10 : index
    %c0_217 = arith.constant 0 : index
    %178 = vector.load %arg27[%c10, %c0_217] : memref<22x32xf32, #tpu.memory_space<vmem>>, vector<1x32xf32>
    %c11 = arith.constant 11 : index
    %c0_218 = arith.constant 0 : index
    %179 = vector.load %arg27[%c11, %c0_218] : memref<22x32xf32, #tpu.memory_space<vmem>>, vector<1x32xf32>
    %c12 = arith.constant 12 : index
    %c0_219 = arith.constant 0 : index
    %180 = vector.load %arg27[%c12, %c0_219] : memref<22x32xf32, #tpu.memory_space<vmem>>, vector<1x32xf32>
    %c13 = arith.constant 13 : index
    %c0_220 = arith.constant 0 : index
    %181 = vector.load %arg27[%c13, %c0_220] : memref<22x32xf32, #tpu.memory_space<vmem>>, vector<1x32xf32>
    %c16_221 = arith.constant 16 : index
    %c0_222 = arith.constant 0 : index
    %182 = vector.load %arg27[%c16_221, %c0_222] : memref<22x32xf32, #tpu.memory_space<vmem>>, vector<1x32xf32>
    %c17_223 = arith.constant 17 : index
    %c0_224 = arith.constant 0 : index
    %183 = vector.load %arg27[%c17_223, %c0_224] : memref<22x32xf32, #tpu.memory_space<vmem>>, vector<1x32xf32>
    %c18 = arith.constant 18 : index
    %c0_225 = arith.constant 0 : index
    %184 = vector.load %arg27[%c18, %c0_225] : memref<22x32xf32, #tpu.memory_space<vmem>>, vector<1x32xf32>
    %c19 = arith.constant 19 : index
    %c0_226 = arith.constant 0 : index
    %185 = vector.load %arg27[%c19, %c0_226] : memref<22x32xf32, #tpu.memory_space<vmem>>, vector<1x32xf32>
    %c20 = arith.constant 20 : index
    %c0_227 = arith.constant 0 : index
    %186 = vector.load %arg27[%c20, %c0_227] : memref<22x32xf32, #tpu.memory_space<vmem>>, vector<1x32xf32>
    %c21 = arith.constant 21 : index
    %c0_228 = arith.constant 0 : index
    %187 = vector.load %arg27[%c21, %c0_228] : memref<22x32xf32, #tpu.memory_space<vmem>>, vector<1x32xf32>
    %188 = tpu.concatenate %170, %171, %172, %173, %174, %175, %176, %177, %178, %179, %180, %181, %182, %183, %184, %185 in 1 : vector<1x32xf32>, vector<1x32xf32>, vector<1x32xf32>, vector<1x32xf32>, vector<1x32xf32>, vector<1x32xf32>, vector<1x32xf32>, vector<1x32xf32>, vector<1x32xf32>, vector<1x32xf32>, vector<1x32xf32>, vector<1x32xf32>, vector<1x32xf32>, vector<1x32xf32>, vector<1x32xf32>, vector<1x32xf32> -> vector<1x512xf32>
    %189 = tpu.concatenate %186, %187 in 1 : vector<1x32xf32>, vector<1x32xf32> -> vector<1x64xf32>
    %190 = tpu.concatenate %188, %189 in 1 : vector<1x512xf32>, vector<1x64xf32> -> vector<1x576xf32>
    %c0_229 = arith.constant 0 : index
    %c0_230 = arith.constant 0 : index
    %191 = vector.load %arg14[%c0_229, %c0_230] : memref<576x48xf32, #tpu.memory_space<vmem>>, vector<576x48xf32>
    %cst_231 = arith.constant dense<0.000000e+00> : vector<1x48xf32>
    %192 = tpu.matmul %190, %191, %cst_231 {dimension_numbers = #tpu.dot_dimension_numbers<[1], [0], [0], [1], [0, 0, 1, 1], [], []>} : vector<1x576xf32>, vector<576x48xf32>, vector<1x48xf32> -> vector<1x48xf32>
    %c0_232 = arith.constant 0 : index
    %c0_233 = arith.constant 0 : index
    %193 = vector.load %arg15[%c0_232, %c0_233] : memref<1x48xf32, #tpu.memory_space<vmem>>, vector<1x48xf32>
    %194 = arith.addf %192, %193 : vector<1x48xf32>
    %c0_234 = arith.constant 0 : index
    %c0_235 = arith.constant 0 : index
    %c0_236 = arith.constant 0 : index
    %195 = vector.load %arg16[%c0_234, %c0_235, %c0_236] : memref<1x1x48xf32, #tpu.memory_space<vmem>>, vector<1x1x48xf32>
    %196 = vector.shape_cast %195 : vector<1x1x48xf32> to vector<1x48xf32>
    %197 = vector.shape_cast %194 : vector<1x48xf32> to vector<1x1x48xf32>
    tpu.vector_store %arg16[%c0_234, %c0_235, %c0_236], %197 {strides = array<i32>} : memref<1x1x48xf32, #tpu.memory_space<vmem>>, vector<1x1x48xf32>,
    return
  }
  func.func @transform_0(%arg0: i32) -> (i32, i32, i32) {
    %c0_i32 = arith.constant 0 : i32
    %c0_i32_0 = arith.constant 0 : i32
    %c0_i32_1 = arith.constant 0 : i32
    return %arg0, %c0_i32, %c0_i32_0 : i32, i32, i32
  }
  func.func @transform_1(%arg0: i32) -> (i32, i32) {
    %c0_i32 = arith.constant 0 : i32
    %c0_i32_0 = arith.constant 0 : i32
    %c0_i32_1 = arith.constant 0 : i32
    return %c0_i32, %c0_i32_0 : i32, i32
  }
  func.func @transform_2(%arg0: i32) -> (i32, i32) {
    %c0_i32 = arith.constant 0 : i32
    %c0_i32_0 = arith.constant 0 : i32
    %c0_i32_1 = arith.constant 0 : i32
    return %c0_i32, %c0_i32_0 : i32, i32
  }
  func.func @transform_3(%arg0: i32) -> (i32, i32) {
    %c0_i32 = arith.constant 0 : i32
    %c0_i32_0 = arith.constant 0 : i32
    %c0_i32_1 = arith.constant 0 : i32
    return %c0_i32, %c0_i32_0 : i32, i32
  }
  func.func @transform_4(%arg0: i32) -> (i32, i32) {
    %c0_i32 = arith.constant 0 : i32
    %c0_i32_0 = arith.constant 0 : i32
    %c0_i32_1 = arith.constant 0 : i32
    return %c0_i32, %c0_i32_0 : i32, i32
  }
  func.func @transform_5(%arg0: i32) -> (i32, i32) {
    %c0_i32 = arith.constant 0 : i32
    %c0_i32_0 = arith.constant 0 : i32
    %c0_i32_1 = arith.constant 0 : i32
    return %c0_i32, %c0_i32_0 : i32, i32
  }
  func.func @transform_6(%arg0: i32) -> (i32, i32) {
    %c0_i32 = arith.constant 0 : i32
    %c0_i32_0 = arith.constant 0 : i32
    %c0_i32_1 = arith.constant 0 : i32
    return %c0_i32, %c0_i32_0 : i32, i32
  }
  func.func @transform_7(%arg0: i32) -> (i32, i32) {
    %c0_i32 = arith.constant 0 : i32
    %c0_i32_0 = arith.constant 0 : i32
    %c0_i32_1 = arith.constant 0 : i32
    return %c0_i32, %c0_i32_0 : i32, i32
  }
  func.func @transform_8(%arg0: i32) -> (i32, i32) {
    %c0_i32 = arith.constant 0 : i32
    %c0_i32_0 = arith.constant 0 : i32
    %c0_i32_1 = arith.constant 0 : i32
    return %c0_i32, %c0_i32_0 : i32, i32
  }
  func.func @transform_9(%arg0: i32) -> (i32, i32) {
    %c0_i32 = arith.constant 0 : i32
    %c0_i32_0 = arith.constant 0 : i32
    %c0_i32_1 = arith.constant 0 : i32
    return %c0_i32, %c0_i32_0 : i32, i32
  }
  func.func @transform_10(%arg0: i32) -> (i32, i32) {
    %c0_i32 = arith.constant 0 : i32
    %c0_i32_0 = arith.constant 0 : i32
    %c0_i32_1 = arith.constant 0 : i32
    return %c0_i32, %c0_i32_0 : i32, i32
  }
  func.func @transform_11(%arg0: i32) -> (i32, i32) {
    %c0_i32 = arith.constant 0 : i32
    %c0_i32_0 = arith.constant 0 : i32
    %c0_i32_1 = arith.constant 0 : i32
    return %c0_i32, %c0_i32_0 : i32, i32
  }
  func.func @transform_12(%arg0: i32) -> (i32, i32) {
    %c0_i32 = arith.constant 0 : i32
    %c0_i32_0 = arith.constant 0 : i32
    %c0_i32_1 = arith.constant 0 : i32
    return %c0_i32, %c0_i32_0 : i32, i32
  }
  func.func @transform_13(%arg0: i32) -> (i32, i32) {
    %c0_i32 = arith.constant 0 : i32
    %c0_i32_0 = arith.constant 0 : i32
    %c0_i32_1 = arith.constant 0 : i32
    return %c0_i32, %c0_i32_0 : i32, i32
  }
  func.func @transform_14(%arg0: i32) -> (i32, i32) {
    %c0_i32 = arith.constant 0 : i32
    %c0_i32_0 = arith.constant 0 : i32
    %c0_i32_1 = arith.constant 0 : i32
    return %c0_i32, %c0_i32_0 : i32, i32
  }
  func.func @transform_15(%arg0: i32) -> (i32, i32, i32) {
    %c0_i32 = arith.constant 0 : i32
    %c0_i32_0 = arith.constant 0 : i32
    %c0_i32_1 = arith.constant 0 : i32
    return %arg0, %c0_i32, %c0_i32_0 : i32, i32, i32
  }
}

</mosaic_0001>

<llo_original>
// kernel: cnn_small_forward.1
$region0: #{cnn_small_forward.1}
  #allocation0 [shape = 'u32[]', space=smem, size = 0x4, offset = 0x4, fixed_abs, tag = 'smem constant byte address 0x4 - core index']
  #allocation1 [shape = 'u32[144,128]{1,0:T(1,128)}', space=vmem, size = 0x12000, scoped, tag = 'internal scratch']
  #allocation2 [shape = 'f32[168,8]{1,0:T(8,128)}', space=vmem, size = 0x15000, scoped, tag = 'scratch operand']
  #allocation3 [shape = 'f32[96,16]{1,0:T(8,128)}', space=vmem, size = 0xc000, scoped, tag = 'scratch operand']
  #allocation4 [shape = 'f32[72,16]{1,0:T(8,128)}', space=vmem, size = 0x9000, scoped, tag = 'scratch operand']
  #allocation5 [shape = 'f32[48,32]{1,0:T(8,128)}', space=vmem, size = 0x6000, scoped, tag = 'scratch operand']
  #allocation6 [shape = 'f32[24,32]{1,0:T(8,128)}', space=vmem, size = 0x3000, scoped, tag = 'scratch operand']
  #allocation7 [shape = 'f32[162,8]{1,0:T(8,128)}', space=vmem, size = 0x15000, scoped, tag = 'scratch operand']
  #allocation8 [shape = 'f32[164,16]{1,0:T(8,128)}', space=vmem, size = 0x15000, scoped, tag = 'scratch operand']
  #allocation9 [shape = 'f32[92,16]{1,0:T(8,128)}', space=vmem, size = 0xc000, scoped, tag = 'scratch operand']
  #allocation10 [shape = 'f32[69,32]{1,0:T(8,128)}', space=vmem, size = 0x9000, scoped, tag = 'scratch operand']
  #allocation11 [shape = 'f32[46,32]{1,0:T(8,128)}', space=vmem, size = 0x6000, scoped, tag = 'scratch operand']
  #allocation12 [shape = 'f32[22,32]{1,0:T(8,128)}', space=vmem, size = 0x3000, scoped, tag = 'scratch operand']
  %s0 = inlined_call_operand.vmem [shape: f32[2,168,1], index: 0, kind: input, shape index: {}]
  %s1 = inlined_call_operand.vmem [shape: f32[7,8], index: 1, kind: input, shape index: {}]
  %s2 = inlined_call_operand.vmem [shape: f32[1,8], index: 2, kind: input, shape index: {}]
  %s3 = inlined_call_operand.vmem [shape: f32[40,16], index: 3, kind: input, shape index: {}]
  %s4 = inlined_call_operand.vmem [shape: f32[1,16], index: 4, kind: input, shape index: {}]
  %s5 = inlined_call_operand.vmem [shape: f32[80,16], index: 5, kind: input, shape index: {}]
  %s6 = inlined_call_operand.vmem [shape: f32[1,16], index: 6, kind: input, shape index: {}]
  %s7 = inlined_call_operand.vmem [shape: f32[64,32], index: 7, kind: input, shape index: {}]
  %s8 = inlined_call_operand.vmem [shape: f32[1,32], index: 8, kind: input, shape index: {}]
  %s9 = inlined_call_operand.vmem [shape: f32[96,32], index: 9, kind: input, shape index: {}]
  %s10 = inlined_call_operand.vmem [shape: f32[1,32], index: 10, kind: input, shape index: {}]
  %s11 = inlined_call_operand.vmem [shape: f32[96,32], index: 11, kind: input, shape index: {}]
  %s12 = inlined_call_operand.vmem [shape: f32[1,32], index: 12, kind: input, shape index: {}]
  %s13 = inlined_call_operand.vmem [shape: f32[576,48], index: 13, kind: input, shape index: {}]
  %s14 = inlined_call_operand.vmem [shape: f32[1,48], index: 14, kind: input, shape index: {}]
  %s15 = inlined_call_operand.hbm [shape: f32[2,1,48], index: 15, kind: output, shape index: {}]
  %s16 = sld [smem:[#allocation0]]
  $region93: #{cnn_small_forward.1} parent=0
    _
  %s18 = ssub.s32 1, %s16
  %s19 = scalar_select 0, %s18, %s16
  $region1: #{cnn_small_forward.1} parent=0
    #allocation13 [shape = 'u8[1024]{0}', space=vmem, size = 0x400, scoped, tag = 'output window, operand 0']
    #allocation14 [shape = 's32[2]{0}', space=sflag, size = 0x8, scoped, tag = 'scoped memory for cnn_small_forward.1']
    %20 = vsyncpa [#allocation14], 0
    %s21 = scalar_lea.sflag [#allocation14], 1
    %22 = vsyncpa %s21, 0
    loop: start=0, step=1, limit=4
    $region2: #{cnn_small_forward.1} parent=1 // loop_pre_header
      _
    $region3: #{cnn_small_forward.1} parent=1 // loop_header
      %s24 = sphi 0, %s28
      %p25 = scmp.ge.s32.totalorder %s24, 4
      %s34 = sphi 0, %s36
      %s37 = sphi 0, %s34
      %s38 = sphi 0, %s37
      %s54 = sphi 0, %s38
      %s58 = sphi 0, %s58
      %s60 = sphi 0, %s58
      %s61 = sphi 0, %s60
      %s75 = sphi 0, %s61
      %s79 = sphi 0, %s79
      %s81 = sphi 0, %s79
      %s82 = sphi 0, %s81
      %s96 = sphi 0, %s82
      %s100 = sphi 0, %s100
      %s102 = sphi 0, %s100
      %s103 = sphi 0, %s102
      %s117 = sphi 0, %s103
      %s121 = sphi 0, %s121
      %s123 = sphi 0, %s121
      %s124 = sphi 0, %s123
      %s138 = sphi 0, %s124
      %s142 = sphi 0, %s142
      %s144 = sphi 0, %s142
      %s145 = sphi 0, %s144
      %s159 = sphi 0, %s145
      %s163 = sphi 0, %s163
      %s165 = sphi 0, %s163
      %s166 = sphi 0, %s165
      %s180 = sphi 0, %s166
      %s184 = sphi 0, %s184
      %s186 = sphi 0, %s184
      %s187 = sphi 0, %s186
      %s201 = sphi 0, %s187
      %s205 = sphi 0, %s205
      %s207 = sphi 0, %s205
      %s208 = sphi 0, %s207
      %s222 = sphi 0, %s208
      %s226 = sphi 0, %s226
      %s228 = sphi 0, %s226
      %s229 = sphi 0, %s228
      %s243 = sphi 0, %s229
      %s247 = sphi 0, %s247
      %s249 = sphi 0, %s247
      %s250 = sphi 0, %s249
      %s264 = sphi 0, %s250
      %s268 = sphi 0, %s268
      %s270 = sphi 0, %s268
      %s271 = sphi 0, %s270
      %s285 = sphi 0, %s271
      %s289 = sphi 0, %s289
      %s291 = sphi 0, %s289
      %s292 = sphi 0, %s291
      %s306 = sphi 0, %s292
      %s310 = sphi 0, %s310
      %s312 = sphi 0, %s310
      %s313 = sphi 0, %s312
      %s327 = sphi 0, %s313
      %s331 = sphi 0, %s331
      %s333 = sphi 0, %s331
      %s334 = sphi 0, %s333
      %s348 = sphi 0, %s334
      %s354 = sphi 0, %s356
      %s357 = sphi 0, %s354
      %s358 = sphi 0, %s357
      %s374 = sphi 0, %s358
    $region4: #{cnn_small_forward.1} parent=1 // loop_header_branch
      %27 = sbr.rel (%p25) target = $region8
    $region5: #{cnn_small_forward.1} parent=1 // loop_body
      %s29 = ssub.s32 %s24, 1
      %s30 = ssub.s32 %s24, 2
      %s31 = sadd.s32 %s24, 1
      %s32 = ssub.s32 %s24, %s31
      %p33 = scmp.eq.s32.totalorder %s32, 0
      %s35 = sadd.s32 %s34, 1
      %s36 = scalar_select %p33, %s34, %s35
      %p39 = pneg %p33
      %p40 = scmp.eq.s32.totalorder %s24, 1
      %p41 = por %p39, %p40
      %p42 = scmp.ne.s32.totalorder %s34, %s37
      %p43 = scmp.eq.s32.totalorder %s24, 0
      %p44 = por %p42, %p43
      %p45 = scmp.ne.s32.totalorder %s34, %s37
      %p46 = scmp.eq.s32.totalorder %s29, 1
      %p47 = por %p45, %p46
      %p48 = scmp.ne.s32.totalorder %s37, %s38
      %p49 = scmp.eq.s32.totalorder %s29, 0
      %p50 = por %p48, %p49
      %p51 = scmp.ne.s32.totalorder %s37, %s38
      %p52 = scmp.eq.s32.totalorder %s30, 1
      %p53 = por %p51, %p52
      %p55 = scmp.ne.s32.totalorder %s38, %s54
      %p56 = scmp.eq.s32.totalorder %s30, 0
      %p57 = por %p55, %p56
      %s59 = sadd.s32 %s58, 1
      %p62 = scmp.eq.s32.totalorder %s24, 1
      %p63 = scmp.ne.s32.totalorder %s58, %s60
      %p64 = scmp.eq.s32.totalorder %s24, 0
      %p65 = por %p63, %p64
      %p66 = scmp.ne.s32.totalorder %s58, %s60
      %p67 = scmp.eq.s32.totalorder %s29, 1
      %p68 = por %p66, %p67
      %p69 = scmp.ne.s32.totalorder %s60, %s61
      %p70 = scmp.eq.s32.totalorder %s29, 0
      %p71 = por %p69, %p70
      %p72 = scmp.ne.s32.totalorder %s60, %s61
      %p73 = scmp.eq.s32.totalorder %s30, 1
      %p74 = por %p72, %p73
      %p76 = scmp.ne.s32.totalorder %s61, %s75
      %p77 = scmp.eq.s32.totalorder %s30, 0
      %p78 = por %p76, %p77
      %s80 = sadd.s32 %s79, 1
      %p83 = scmp.eq.s32.totalorder %s24, 1
      %p84 = scmp.ne.s32.totalorder %s79, %s81
      %p85 = scmp.eq.s32.totalorder %s24, 0
      %p86 = por %p84, %p85
      %p87 = scmp.ne.s32.totalorder %s79, %s81
      %p88 = scmp.eq.s32.totalorder %s29, 1
      %p89 = por %p87, %p88
      %p90 = scmp.ne.s32.totalorder %s81, %s82
      %p91 = scmp.eq.s32.totalorder %s29, 0
      %p92 = por %p90, %p91
      %p93 = scmp.ne.s32.totalorder %s81, %s82
      %p94 = scmp.eq.s32.totalorder %s30, 1
      %p95 = por %p93, %p94
      %p97 = scmp.ne.s32.totalorder %s82, %s96
      %p98 = scmp.eq.s32.totalorder %s30, 0
      %p99 = por %p97, %p98
      %s101 = sadd.s32 %s100, 1
      %p104 = scmp.eq.s32.totalorder %s24, 1
      %p105 = scmp.ne.s32.totalorder %s100, %s102
      %p106 = scmp.eq.s32.totalorder %s24, 0
      %p107 = por %p105, %p106
      %p108 = scmp.ne.s32.totalorder %s100, %s102
      %p109 = scmp.eq.s32.totalorder %s29, 1
      %p110 = por %p108, %p109
      %p111 = scmp.ne.s32.totalorder %s102, %s103
      %p112 = scmp.eq.s32.totalorder %s29, 0
      %p113 = por %p111, %p112
      %p114 = scmp.ne.s32.totalorder %s102, %s103
      %p115 = scmp.eq.s32.totalorder %s30, 1
      %p116 = por %p114, %p115
      %p118 = scmp.ne.s32.totalorder %s103, %s117
      %p119 = scmp.eq.s32.totalorder %s30, 0
      %p120 = por %p118, %p119
      %s122 = sadd.s32 %s121, 1
      %p125 = scmp.eq.s32.totalorder %s24, 1
      %p126 = scmp.ne.s32.totalorder %s121, %s123
      %p127 = scmp.eq.s32.totalorder %s24, 0
      %p128 = por %p126, %p127
      %p129 = scmp.ne.s32.totalorder %s121, %s123
      %p130 = scmp.eq.s32.totalorder %s29, 1
      %p131 = por %p129, %p130
      %p132 = scmp.ne.s32.totalorder %s123, %s124
      %p133 = scmp.eq.s32.totalorder %s29, 0
      %p134 = por %p132, %p133
      %p135 = scmp.ne.s32.totalorder %s123, %s124
      %p136 = scmp.eq.s32.totalorder %s30, 1
      %p137 = por %p135, %p136
      %p139 = scmp.ne.s32.totalorder %s124, %s138
      %p140 = scmp.eq.s32.totalorder %s30, 0
      %p141 = por %p139, %p140
      %s143 = sadd.s32 %s142, 1
      %p146 = scmp.eq.s32.totalorder %s24, 1
      %p147 = scmp.ne.s32.totalorder %s142, %s144
      %p148 = scmp.eq.s32.totalorder %s24, 0
      %p149 = por %p147, %p148
      %p150 = scmp.ne.s32.totalorder %s142, %s144
      %p151 = scmp.eq.s32.totalorder %s29, 1
      %p152 = por %p150, %p151
      %p153 = scmp.ne.s32.totalorder %s144, %s145
      %p154 = scmp.eq.s32.totalorder %s29, 0
      %p155 = por %p153, %p154
      %p156 = scmp.ne.s32.totalorder %s144, %s145
      %p157 = scmp.eq.s32.totalorder %s30, 1
      %p158 = por %p156, %p157
      %p160 = scmp.ne.s32.totalorder %s145, %s159
      %p161 = scmp.eq.s32.totalorder %s30, 0
      %p162 = por %p160, %p161
      %s164 = sadd.s32 %s163, 1
      %p167 = scmp.eq.s32.totalorder %s24, 1
      %p168 = scmp.ne.s32.totalorder %s163, %s165
      %p169 = scmp.eq.s32.totalorder %s24, 0
      %p170 = por %p168, %p169
      %p171 = scmp.ne.s32.totalorder %s163, %s165
      %p172 = scmp.eq.s32.totalorder %s29, 1
      %p173 = por %p171, %p172
      %p174 = scmp.ne.s32.totalorder %s165, %s166
      %p175 = scmp.eq.s32.totalorder %s29, 0
      %p176 = por %p174, %p175
      %p177 = scmp.ne.s32.totalorder %s165, %s166
      %p178 = scmp.eq.s32.totalorder %s30, 1
      %p179 = por %p177, %p178
      %p181 = scmp.ne.s32.totalorder %s166, %s180
      %p182 = scmp.eq.s32.totalorder %s30, 0
      %p183 = por %p181, %p182
      %s185 = sadd.s32 %s184, 1
      %p188 = scmp.eq.s32.totalorder %s24, 1
      %p189 = scmp.ne.s32.totalorder %s184, %s186
      %p190 = scmp.eq.s32.totalorder %s24, 0
      %p191 = por %p189, %p190
      %p192 = scmp.ne.s32.totalorder %s184, %s186
      %p193 = scmp.eq.s32.totalorder %s29, 1
      %p194 = por %p192, %p193
      %p195 = scmp.ne.s32.totalorder %s186, %s187
      %p196 = scmp.eq.s32.totalorder %s29, 0
      %p197 = por %p195, %p196
      %p198 = scmp.ne.s32.totalorder %s186, %s187
      %p199 = scmp.eq.s32.totalorder %s30, 1
      %p200 = por %p198, %p199
      %p202 = scmp.ne.s32.totalorder %s187, %s201
      %p203 = scmp.eq.s32.totalorder %s30, 0
      %p204 = por %p202, %p203
      %s206 = sadd.s32 %s205, 1
      %p209 = scmp.eq.s32.totalorder %s24, 1
      %p210 = scmp.ne.s32.totalorder %s205, %s207
      %p211 = scmp.eq.s32.totalorder %s24, 0
      %p212 = por %p210, %p211
      %p213 = scmp.ne.s32.totalorder %s205, %s207
      %p214 = scmp.eq.s32.totalorder %s29, 1
      %p215 = por %p213, %p214
      %p216 = scmp.ne.s32.totalorder %s207, %s208
      %p217 = scmp.eq.s32.totalorder %s29, 0
      %p218 = por %p216, %p217
      %p219 = scmp.ne.s32.totalorder %s207, %s208
      %p220 = scmp.eq.s32.totalorder %s30, 1
      %p221 = por %p219, %p220
      %p223 = scmp.ne.s32.totalorder %s208, %s222
      %p224 = scmp.eq.s32.totalorder %s30, 0
      %p225 = por %p223, %p224
      %s227 = sadd.s32 %s226, 1
      %p230 = scmp.eq.s32.totalorder %s24, 1
      %p231 = scmp.ne.s32.totalorder %s226, %s228
      %p232 = scmp.eq.s32.totalorder %s24, 0
      %p233 = por %p231, %p232
      %p234 = scmp.ne.s32.totalorder %s226, %s228
      %p235 = scmp.eq.s32.totalorder %s29, 1
      %p236 = por %p234, %p235
      %p237 = scmp.ne.s32.totalorder %s228, %s229
      %p238 = scmp.eq.s32.totalorder %s29, 0
      %p239 = por %p237, %p238
      %p240 = scmp.ne.s32.totalorder %s228, %s229
      %p241 = scmp.eq.s32.totalorder %s30, 1
      %p242 = por %p240, %p241
      %p244 = scmp.ne.s32.totalorder %s229, %s243
      %p245 = scmp.eq.s32.totalorder %s30, 0
      %p246 = por %p244, %p245
      %s248 = sadd.s32 %s247, 1
      %p251 = scmp.eq.s32.totalorder %s24, 1
      %p252 = scmp.ne.s32.totalorder %s247, %s249
      %p253 = scmp.eq.s32.totalorder %s24, 0
      %p254 = por %p252, %p253
      %p255 = scmp.ne.s32.totalorder %s247, %s249
      %p256 = scmp.eq.s32.totalorder %s29, 1
      %p257 = por %p255, %p256
      %p258 = scmp.ne.s32.totalorder %s249, %s250
      %p259 = scmp.eq.s32.totalorder %s29, 0
      %p260 = por %p258, %p259
      %p261 = scmp.ne.s32.totalorder %s249, %s250
      %p262 = scmp.eq.s32.totalorder %s30, 1
      %p263 = por %p261, %p262
      %p265 = scmp.ne.s32.totalorder %s250, %s264
      %p266 = scmp.eq.s32.totalorder %s30, 0
      %p267 = por %p265, %p266
      %s269 = sadd.s32 %s268, 1
      %p272 = scmp.eq.s32.totalorder %s24, 1
      %p273 = scmp.ne.s32.totalorder %s268, %s270
      %p274 = scmp.eq.s32.totalorder %s24, 0
      %p275 = por %p273, %p274
      %p276 = scmp.ne.s32.totalorder %s268, %s270
      %p277 = scmp.eq.s32.totalorder %s29, 1
      %p278 = por %p276, %p277
      %p279 = scmp.ne.s32.totalorder %s270, %s271
      %p280 = scmp.eq.s32.totalorder %s29, 0
      %p281 = por %p279, %p280
      %p282 = scmp.ne.s32.totalorder %s270, %s271
      %p283 = scmp.eq.s32.totalorder %s30, 1
      %p284 = por %p282, %p283
      %p286 = scmp.ne.s32.totalorder %s271, %s285
      %p287 = scmp.eq.s32.totalorder %s30, 0
      %p288 = por %p286, %p287
      %s290 = sadd.s32 %s289, 1
      %p293 = scmp.eq.s32.totalorder %s24, 1
      %p294 = scmp.ne.s32.totalorder %s289, %s291
      %p295 = scmp.eq.s32.totalorder %s24, 0
      %p296 = por %p294, %p295
      %p297 = scmp.ne.s32.totalorder %s289, %s291
      %p298 = scmp.eq.s32.totalorder %s29, 1
      %p299 = por %p297, %p298
      %p300 = scmp.ne.s32.totalorder %s291, %s292
      %p301 = scmp.eq.s32.totalorder %s29, 0
      %p302 = por %p300, %p301
      %p303 = scmp.ne.s32.totalorder %s291, %s292
      %p304 = scmp.eq.s32.totalorder %s30, 1
      %p305 = por %p303, %p304
      %p307 = scmp.ne.s32.totalorder %s292, %s306
      %p308 = scmp.eq.s32.totalorder %s30, 0
      %p309 = por %p307, %p308
      %s311 = sadd.s32 %s310, 1
      %p314 = scmp.eq.s32.totalorder %s24, 1
      %p315 = scmp.ne.s32.totalorder %s310, %s312
      %p316 = scmp.eq.s32.totalorder %s24, 0
      %p317 = por %p315, %p316
      %p318 = scmp.ne.s32.totalorder %s310, %s312
      %p319 = scmp.eq.s32.totalorder %s29, 1
      %p320 = por %p318, %p319
      %p321 = scmp.ne.s32.totalorder %s312, %s313
      %p322 = scmp.eq.s32.totalorder %s29, 0
      %p323 = por %p321, %p322
      %p324 = scmp.ne.s32.totalorder %s312, %s313
      %p325 = scmp.eq.s32.totalorder %s30, 1
      %p326 = por %p324, %p325
      %p328 = scmp.ne.s32.totalorder %s313, %s327
      %p329 = scmp.eq.s32.totalorder %s30, 0
      %p330 = por %p328, %p329
      %s332 = sadd.s32 %s331, 1
      %p335 = scmp.eq.s32.totalorder %s24, 1
      %p336 = scmp.ne.s32.totalorder %s331, %s333
      %p337 = scmp.eq.s32.totalorder %s24, 0
      %p338 = por %p336, %p337
      %p339 = scmp.ne.s32.totalorder %s331, %s333
      %p340 = scmp.eq.s32.totalorder %s29, 1
      %p341 = por %p339, %p340
      %p342 = scmp.ne.s32.totalorder %s333, %s334
      %p343 = scmp.eq.s32.totalorder %s29, 0
      %p344 = por %p342, %p343
      %p345 = scmp.ne.s32.totalorder %s333, %s334
      %p346 = scmp.eq.s32.totalorder %s30, 1
      %p347 = por %p345, %p346
      %p349 = scmp.ne.s32.totalorder %s334, %s348
      %p350 = scmp.eq.s32.totalorder %s30, 0
      %p351 = por %p349, %p350
      %s352 = ssub.s32 %s24, %s31
      %p353 = scmp.eq.s32.totalorder %s352, 0
      %s355 = sadd.s32 %s354, 1
      %s356 = scalar_select %p353, %s354, %s355
      %p359 = pneg %p353
      %p360 = scmp.eq.s32.totalorder %s24, 1
      %p361 = por %p359, %p360
      %p362 = scmp.ne.s32.totalorder %s354, %s357
      %p363 = scmp.eq.s32.totalorder %s24, 0
      %p364 = por %p362, %p363
      %p365 = scmp.ne.s32.totalorder %s354, %s357
      %p366 = scmp.eq.s32.totalorder %s29, 1
      %p367 = por %p365, %p366
      %p368 = scmp.ne.s32.totalorder %s357, %s358
      %p369 = scmp.eq.s32.totalorder %s29, 0
      %p370 = por %p368, %p369
      %p371 = scmp.ne.s32.totalorder %s357, %s358
      %p372 = scmp.eq.s32.totalorder %s30, 1
      %p373 = por %p371, %p372
      %p375 = scmp.ne.s32.totalorder %s358, %s374
      %p376 = scmp.eq.s32.totalorder %s30, 0
      %p377 = por %p375, %p376
      %p378 = scmp.le.s32.totalorder 1, %s24
      %p379 = scmp.lt.s32.totalorder %s24, 3
      %p380 = pnand %p378, %p379
      %p381 = pneg %p380
      // Predicated region
      $region9: #{cnn_small_forward.1} parent=5 // pred_check
        _
      $region10: #{cnn_small_forward.1} parent=5 // pred_check_branch
        %383 = sbr.rel (%p380) target = $region12
      $region11: #{cnn_small_forward.1} parent=5 // pred_region
        %s384 = ssub.s32 %s24, 1
        // Predicated region
        $region13: #{cnn_small_forward.1} parent=11 // pred_check
          %p385 = pneg %p71
        $region14: #{cnn_small_forward.1} parent=11 // pred_check_branch
          %387 = sbr.rel (%p385) target = $region16
        $region15: #{cnn_small_forward.1} parent=11 // pred_region
          _
        $region16: #{cnn_small_forward.1} parent=11 // pred_fallthru
          _
        // Predicated region
        $region17: #{cnn_small_forward.1} parent=11 // pred_check
          %p388 = pneg %p92
        $region18: #{cnn_small_forward.1} parent=11 // pred_check_branch
          %390 = sbr.rel (%p388) target = $region20
        $region19: #{cnn_small_forward.1} parent=11 // pred_region
          _
        $region20: #{cnn_small_forward.1} parent=11 // pred_fallthru
          _
        // Predicated region
        $region21: #{cnn_small_forward.1} parent=11 // pred_check
          %p391 = pneg %p113
        $region22: #{cnn_small_forward.1} parent=11 // pred_check_branch
          %393 = sbr.rel (%p391) target = $region24
        $region23: #{cnn_small_forward.1} parent=11 // pred_region
          _
        $region24: #{cnn_small_forward.1} parent=11 // pred_fallthru
          _
        // Predicated region
        $region25: #{cnn_small_forward.1} parent=11 // pred_check
          %p394 = pneg %p134
        $region26: #{cnn_small_forward.1} parent=11 // pred_check_branch
          %396 = sbr.rel (%p394) target = $region28
        $region27: #{cnn_small_forward.1} parent=11 // pred_region
          _
        $region28: #{cnn_small_forward.1} parent=11 // pred_fallthru
          _
        // Predicated region
        $region29: #{cnn_small_forward.1} parent=11 // pred_check
          %p397 = pneg %p155
        $region30: #{cnn_small_forward.1} parent=11 // pred_check_branch
          %399 = sbr.rel (%p397) target = $region32
        $region31: #{cnn_small_forward.1} parent=11 // pred_region
          _
        $region32: #{cnn_small_forward.1} parent=11 // pred_fallthru
          _
        // Predicated region
        $region33: #{cnn_small_forward.1} parent=11 // pred_check
          %p400 = pneg %p176
        $region34: #{cnn_small_forward.1} parent=11 // pred_check_branch
          %402 = sbr.rel (%p400) target = $region36
        $region35: #{cnn_small_forward.1} parent=11 // pred_region
          _
        $region36: #{cnn_small_forward.1} parent=11 // pred_fallthru
          _
        // Predicated region
        $region37: #{cnn_small_forward.1} parent=11 // pred_check
          %p403 = pneg %p197
        $region38: #{cnn_small_forward.1} parent=11 // pred_check_branch
          %405 = sbr.rel (%p403) target = $region40
        $region39: #{cnn_small_forward.1} parent=11 // pred_region
          _
        $region40: #{cnn_small_forward.1} parent=11 // pred_fallthru
          _
        // Predicated region
        $region41: #{cnn_small_forward.1} parent=11 // pred_check
          %p406 = pneg %p218
        $region42: #{cnn_small_forward.1} parent=11 // pred_check_branch
          %408 = sbr.rel (%p406) target = $region44
        $region43: #{cnn_small_forward.1} parent=11 // pred_region
          _
        $region44: #{cnn_small_forward.1} parent=11 // pred_fallthru
          _
        // Predicated region
        $region45: #{cnn_small_forward.1} parent=11 // pred_check
          %p409 = pneg %p239
        $region46: #{cnn_small_forward.1} parent=11 // pred_check_branch
          %411 = sbr.rel (%p409) target = $region48
        $region47: #{cnn_small_forward.1} parent=11 // pred_region
          _
        $region48: #{cnn_small_forward.1} parent=11 // pred_fallthru
          _
        // Predicated region
        $region49: #{cnn_small_forward.1} parent=11 // pred_check
          %p412 = pneg %p260
        $region50: #{cnn_small_forward.1} parent=11 // pred_check_branch
          %414 = sbr.rel (%p412) target = $region52
        $region51: #{cnn_small_forward.1} parent=11 // pred_region
          _
        $region52: #{cnn_small_forward.1} parent=11 // pred_fallthru
          _
        // Predicated region
        $region53: #{cnn_small_forward.1} parent=11 // pred_check
          %p415 = pneg %p281
        $region54: #{cnn_small_forward.1} parent=11 // pred_check_branch
          %417 = sbr.rel (%p415) target = $region56
        $region55: #{cnn_small_forward.1} parent=11 // pred_region
          _
        $region56: #{cnn_small_forward.1} parent=11 // pred_fallthru
          _
        // Predicated region
        $region57: #{cnn_small_forward.1} parent=11 // pred_check
          %p418 = pneg %p302
        $region58: #{cnn_small_forward.1} parent=11 // pred_check_branch
          %420 = sbr.rel (%p418) target = $region60
        $region59: #{cnn_small_forward.1} parent=11 // pred_region
          _
        $region60: #{cnn_small_forward.1} parent=11 // pred_fallthru
          _
        // Predicated region
        $region61: #{cnn_small_forward.1} parent=11 // pred_check
          %p421 = pneg %p323
        $region62: #{cnn_small_forward.1} parent=11 // pred_check_branch
          %423 = sbr.rel (%p421) target = $region64
        $region63: #{cnn_small_forward.1} parent=11 // pred_region
          _
        $region64: #{cnn_small_forward.1} parent=11 // pred_fallthru
          _
        // Predicated region
        $region65: #{cnn_small_forward.1} parent=11 // pred_check
          %p424 = pneg %p344
        $region66: #{cnn_small_forward.1} parent=11 // pred_check_branch
          %426 = sbr.rel (%p424) target = $region68
        $region67: #{cnn_small_forward.1} parent=11 // pred_region
          _
        $region68: #{cnn_small_forward.1} parent=11 // pred_fallthru
          _
      $region12: #{cnn_small_forward.1} parent=5 // pred_fallthru
        _
      %p427 = scmp.lt.s32.totalorder %s24, 2
      // Predicated region
      $region69: #{cnn_small_forward.1} parent=5 // pred_check
        %p428 = pneg %p427
      $region70: #{cnn_small_forward.1} parent=5 // pred_check_branch
        %430 = sbr.rel (%p428) target = $region72
      $region71: #{cnn_small_forward.1} parent=5 // pred_region
        // Predicated region
        $region73: #{cnn_small_forward.1} parent=71 // pred_check
          %p431 = pneg %p44
        $region74: #{cnn_small_forward.1} parent=71 // pred_check_branch
          %433 = sbr.rel (%p431) target = $region76
        $region75: #{cnn_small_forward.1} parent=71 // pred_region
          %p434 = scmp.lt.s32.totalorder %s24, 1
          %s435 = scalar_select %p434, %s24, 1
          %s436 = smul.addr %s435, 21
          %s437 = smul.addr %s436, 8
          %s438 = scalar_lea.vmem %s0, %s437
        $region76: #{cnn_small_forward.1} parent=71 // pred_fallthru
          _
      $region72: #{cnn_small_forward.1} parent=5 // pred_fallthru
        _
      %p439 = scmp.le.s32.totalorder 1, %s24
      %p440 = scmp.lt.s32.totalorder %s24, 3
      %p441 = pnand %p439, %p440
      %p442 = pneg %p441
      // Predicated region
      $region77: #{cnn_small_forward.1} parent=5 // pred_check
        _
      $region78: #{cnn_small_forward.1} parent=5 // pred_check_branch
        %444 = sbr.rel (%p441) target = $region80
      $region79: #{cnn_small_forward.1} parent=5 // pred_region
        %s445 = ssub.s32 %s24, 1
        %p446 = scmp.lt.s32.totalorder %s29, 1
        %s447 = scalar_select %p446, %s29, 1
        %s448 = smul.addr %s447, 21
        %s449 = smul.addr %s448, 8
        %s450 = scalar_lea.vmem %s0, %s449
        %p451 = pneg %p50
        %p452 = pneg %p47
        %p453 = pneg %p71
        %p454 = pneg %p68
        %p455 = pneg %p92
        %p456 = pneg %p89
        %p457 = pneg %p113
        %p458 = pneg %p110
        %p459 = pneg %p134
        %p460 = pneg %p131
        %p461 = pneg %p155
        %p462 = pneg %p152
        %p463 = pneg %p176
        %p464 = pneg %p173
        %p465 = pneg %p197
        %p466 = pneg %p194
        %p467 = pneg %p218
        %p468 = pneg %p215
        %p469 = pneg %p239
        %p470 = pneg %p236
        %p471 = pneg %p260
        %p472 = pneg %p257
        %p473 = pneg %p281
        %p474 = pneg %p278
        %p475 = pneg %p302
        %p476 = pneg %p299
        %p477 = pneg %p323
        %p478 = pneg %p320
        %p479 = pneg %p344
        %p480 = pneg %p341
        %p481 = pneg %p370
        %p482 = pneg %p367
        %s483 = sand.u32 %s357, 1
        %s484 = scalar_lea.sflag [#allocation14], %s483
        %s485 = sand.u32 %s357, 1
        %s486 = scalar_lea.vmem [#allocation13], %s485
        %p487 = scmp.lt.s32.totalorder %s29, 1
        %s488 = scalar_select %p487, %s29, 1
        %s489 = smul.addr %s488, 21
        %s490 = smul.addr %s489, 8
        %s491 = scalar_lea.vmem %s0, %s490
        %v492 = vld [vmem:[%s491] sm:$0xff]
        %v493 = vld [vmem:[%s491 + $0x8] sm:$0xff]
        %v494 = vld [vmem:[%s491 + $0x10] sm:$0xff]
        %v495 = vld [vmem:[%s491 + $0x18] sm:$0xff]
        %v496 = vld [vmem:[%s491 + $0x20] sm:$0xff]
        %v497 = vld [vmem:[%s491 + $0x28] sm:$0xff]
        %v498 = vld [vmem:[%s491 + $0x30] sm:$0xff]
        %v499 = vld [vmem:[%s491 + $0x38] sm:$0xff]
        %v500 = vld [vmem:[%s491 + $0x40] sm:$0xff]
        %v501 = vld [vmem:[%s491 + $0x48] sm:$0xff]
        %v502 = vld [vmem:[%s491 + $0x50] sm:$0xff]
        %v503 = vld [vmem:[%s491 + $0x58] sm:$0xff]
        %v504 = vld [vmem:[%s491 + $0x60] sm:$0xff]
        %v505 = vld [vmem:[%s491 + $0x68] sm:$0xff]
        %v506 = vld [vmem:[%s491 + $0x70] sm:$0xff]
        %v507 = vld [vmem:[%s491 + $0x78] sm:$0xff]
        %v508 = vld [vmem:[%s491 + $0x80] sm:$0xff]
        %v509 = vld [vmem:[%s491 + $0x88] sm:$0xff]
        %v510 = vld [vmem:[%s491 + $0x90] sm:$0xff]
        %v511 = vld [vmem:[%s491 + $0x98] sm:$0xff]
        %v512 = vld [vmem:[%s491 + $0xa0] sm:$0x3]
        %v513 = vld [vmem:[%s491 + $0x1] sm:$0xff]
        %v514 = vld [vmem:[%s491 + $0x9] sm:$0xff]
        %v515 = vld [vmem:[%s491 + $0x11] sm:$0xff]
        %v516 = vld [vmem:[%s491 + $0x19] sm:$0xff]
        %v517 = vld [vmem:[%s491 + $0x21] sm:$0xff]
        %v518 = vld [vmem:[%s491 + $0x29] sm:$0xff]
        %v519 = vld [vmem:[%s491 + $0x31] sm:$0xff]
        %v520 = vld [vmem:[%s491 + $0x39] sm:$0xff]
        %v521 = vld [vmem:[%s491 + $0x41] sm:$0xff]
        %v522 = vld [vmem:[%s491 + $0x49] sm:$0xff]
        %v523 = vld [vmem:[%s491 + $0x51] sm:$0xff]
        %v524 = vld [vmem:[%s491 + $0x59] sm:$0xff]
        %v525 = vld [vmem:[%s491 + $0x61] sm:$0xff]
        %v526 = vld [vmem:[%s491 + $0x69] sm:$0xff]
        %v527 = vld [vmem:[%s491 + $0x71] sm:$0xff]
        %v528 = vld [vmem:[%s491 + $0x79] sm:$0xff]
        %v529 = vld [vmem:[%s491 + $0x81] sm:$0xff]
        %v530 = vld [vmem:[%s491 + $0x89] sm:$0xff]
        %v531 = vld [vmem:[%s491 + $0x91] sm:$0xff]
        %v532 = vld [vmem:[%s491 + $0x99] sm:$0xff]
        %v533 = vld [vmem:[%s491 + $0xa1] sm:$0x3]
        %v534 = vld [vmem:[%s491 + $0x2] sm:$0xff]
        %v535 = vld [vmem:[%s491 + $0xa] sm:$0xff]
        %v536 = vld [vmem:[%s491 + $0x12] sm:$0xff]
        %v537 = vld [vmem:[%s491 + $0x1a] sm:$0xff]
        %v538 = vld [vmem:[%s491 + $0x22] sm:$0xff]
        %v539 = vld [vmem:[%s491 + $0x2a] sm:$0xff]
        %v540 = vld [vmem:[%s491 + $0x32] sm:$0xff]
        %v541 = vld [vmem:[%s491 + $0x3a] sm:$0xff]
        %v542 = vld [vmem:[%s491 + $0x42] sm:$0xff]
        %v543 = vld [vmem:[%s491 + $0x4a] sm:$0xff]
        %v544 = vld [vmem:[%s491 + $0x52] sm:$0xff]
        %v545 = vld [vmem:[%s491 + $0x5a] sm:$0xff]
        %v546 = vld [vmem:[%s491 + $0x62] sm:$0xff]
        %v547 = vld [vmem:[%s491 + $0x6a] sm:$0xff]
        %v548 = vld [vmem:[%s491 + $0x72] sm:$0xff]
        %v549 = vld [vmem:[%s491 + $0x7a] sm:$0xff]
        %v550 = vld [vmem:[%s491 + $0x82] sm:$0xff]
        %v551 = vld [vmem:[%s491 + $0x8a] sm:$0xff]
        %v552 = vld [vmem:[%s491 + $0x92] sm:$0xff]
        %v553 = vld [vmem:[%s491 + $0x9a] sm:$0xff]
        %v554 = vld [vmem:[%s491 + $0xa2] sm:$0x3]
        %v555 = vld [vmem:[%s491 + $0x3] sm:$0xff]
        %v556 = vld [vmem:[%s491 + $0xb] sm:$0xff]
        %v557 = vld [vmem:[%s491 + $0x13] sm:$0xff]
        %v558 = vld [vmem:[%s491 + $0x1b] sm:$0xff]
        %v559 = vld [vmem:[%s491 + $0x23] sm:$0xff]
        %v560 = vld [vmem:[%s491 + $0x2b] sm:$0xff]
        %v561 = vld [vmem:[%s491 + $0x33] sm:$0xff]
        %v562 = vld [vmem:[%s491 + $0x3b] sm:$0xff]
        %v563 = vld [vmem:[%s491 + $0x43] sm:$0xff]
        %v564 = vld [vmem:[%s491 + $0x4b] sm:$0xff]
        %v565 = vld [vmem:[%s491 + $0x53] sm:$0xff]
        %v566 = vld [vmem:[%s491 + $0x5b] sm:$0xff]
        %v567 = vld [vmem:[%s491 + $0x63] sm:$0xff]
        %v568 = vld [vmem:[%s491 + $0x6b] sm:$0xff]
        %v569 = vld [vmem:[%s491 + $0x73] sm:$0xff]
        %v570 = vld [vmem:[%s491 + $0x7b] sm:$0xff]
        %v571 = vld [vmem:[%s491 + $0x83] sm:$0xff]
        %v572 = vld [vmem:[%s491 + $0x8b] sm:$0xff]
        %v573 = vld [vmem:[%s491 + $0x93] sm:$0xff]
        %v574 = vld [vmem:[%s491 + $0x9b] sm:$0xff]
        %v575 = vld [vmem:[%s491 + $0xa3] sm:$0x3]
        %v576 = vld [vmem:[%s491 + $0x4] sm:$0xff]
        %v577 = vld [vmem:[%s491 + $0xc] sm:$0xff]
        %v578 = vld [vmem:[%s491 + $0x14] sm:$0xff]
        %v579 = vld [vmem:[%s491 + $0x1c] sm:$0xff]
        %v580 = vld [vmem:[%s491 + $0x24] sm:$0xff]
        %v581 = vld [vmem:[%s491 + $0x2c] sm:$0xff]
        %v582 = vld [vmem:[%s491 + $0x34] sm:$0xff]
        %v583 = vld [vmem:[%s491 + $0x3c] sm:$0xff]
        %v584 = vld [vmem:[%s491 + $0x44] sm:$0xff]
        %v585 = vld [vmem:[%s491 + $0x4c] sm:$0xff]
        %v586 = vld [vmem:[%s491 + $0x54] sm:$0xff]
        %v587 = vld [vmem:[%s491 + $0x5c] sm:$0xff]
        %v588 = vld [vmem:[%s491 + $0x64] sm:$0xff]
        %v589 = vld [vmem:[%s491 + $0x6c] sm:$0xff]
        %v590 = vld [vmem:[%s491 + $0x74] sm:$0xff]
        %v591 = vld [vmem:[%s491 + $0x7c] sm:$0xff]
        %v592 = vld [vmem:[%s491 + $0x84] sm:$0xff]
        %v593 = vld [vmem:[%s491 + $0x8c] sm:$0xff]
        %v594 = vld [vmem:[%s491 + $0x94] sm:$0xff]
        %v595 = vld [vmem:[%s491 + $0x9c] sm:$0xff]
        %v596 = vld [vmem:[%s491 + $0xa4] sm:$0x3]
        %v597 = vld [vmem:[%s491 + $0x5] sm:$0xff]
        %v598 = vld [vmem:[%s491 + $0xd] sm:$0xff]
        %v599 = vld [vmem:[%s491 + $0x15] sm:$0xff]
        %v600 = vld [vmem:[%s491 + $0x1d] sm:$0xff]
        %v601 = vld [vmem:[%s491 + $0x25] sm:$0xff]
        %v602 = vld [vmem:[%s491 + $0x2d] sm:$0xff]
        %v603 = vld [vmem:[%s491 + $0x35] sm:$0xff]
        %v604 = vld [vmem:[%s491 + $0x3d] sm:$0xff]
        %v605 = vld [vmem:[%s491 + $0x45] sm:$0xff]
        %v606 = vld [vmem:[%s491 + $0x4d] sm:$0xff]
        %v607 = vld [vmem:[%s491 + $0x55] sm:$0xff]
        %v608 = vld [vmem:[%s491 + $0x5d] sm:$0xff]
        %v609 = vld [vmem:[%s491 + $0x65] sm:$0xff]
        %v610 = vld [vmem:[%s491 + $0x6d] sm:$0xff]
        %v611 = vld [vmem:[%s491 + $0x75] sm:$0xff]
        %v612 = vld [vmem:[%s491 + $0x7d] sm:$0xff]
        %v613 = vld [vmem:[%s491 + $0x85] sm:$0xff]
        %v614 = vld [vmem:[%s491 + $0x8d] sm:$0xff]
        %v615 = vld [vmem:[%s491 + $0x95] sm:$0xff]
        %v616 = vld [vmem:[%s491 + $0x9d] sm:$0xff]
        %v617 = vld [vmem:[%s491 + $0xa5] sm:$0x3]
        %v618 = vld [vmem:[%s491 + $0x6] sm:$0xff]
        %v619 = vld [vmem:[%s491 + $0xe] sm:$0xff]
        %v620 = vld [vmem:[%s491 + $0x16] sm:$0xff]
        %v621 = vld [vmem:[%s491 + $0x1e] sm:$0xff]
        %v622 = vld [vmem:[%s491 + $0x26] sm:$0xff]
        %v623 = vld [vmem:[%s491 + $0x2e] sm:$0xff]
        %v624 = vld [vmem:[%s491 + $0x36] sm:$0xff]
        %v625 = vld [vmem:[%s491 + $0x3e] sm:$0xff]
        %v626 = vld [vmem:[%s491 + $0x46] sm:$0xff]
        %v627 = vld [vmem:[%s491 + $0x4e] sm:$0xff]
        %v628 = vld [vmem:[%s491 + $0x56] sm:$0xff]
        %v629 = vld [vmem:[%s491 + $0x5e] sm:$0xff]
        %v630 = vld [vmem:[%s491 + $0x66] sm:$0xff]
        %v631 = vld [vmem:[%s491 + $0x6e] sm:$0xff]
        %v632 = vld [vmem:[%s491 + $0x76] sm:$0xff]
        %v633 = vld [vmem:[%s491 + $0x7e] sm:$0xff]
        %v634 = vld [vmem:[%s491 + $0x86] sm:$0xff]
        %v635 = vld [vmem:[%s491 + $0x8e] sm:$0xff]
        %v636 = vld [vmem:[%s491 + $0x96] sm:$0xff]
        %v637 = vld [vmem:[%s491 + $0x9e] sm:$0xff]
        %v638 = vld [vmem:[%s491 + $0xa6] sm:$0x3]
        %660 = vrot.lane.b32.xlu0 %v513, 1
        %v661 = vpop.permute.xlu0 %660
        %662 = vrot.lane.b32.xlu0 %v514, 1
        %v663 = vpop.permute.xlu0 %662
        %664 = vrot.lane.b32.xlu0 %v515, 1
        %v665 = vpop.permute.xlu0 %664
        %666 = vrot.lane.b32.xlu0 %v516, 1
        %v667 = vpop.permute.xlu0 %666
        %668 = vrot.lane.b32.xlu0 %v517, 1
        %v669 = vpop.permute.xlu0 %668
        %670 = vrot.lane.b32.xlu0 %v518, 1
        %v671 = vpop.permute.xlu0 %670
        %672 = vrot.lane.b32.xlu0 %v519, 1
        %v673 = vpop.permute.xlu0 %672
        %674 = vrot.lane.b32.xlu0 %v520, 1
        %v675 = vpop.permute.xlu0 %674
        %676 = vrot.lane.b32.xlu0 %v521, 1
        %v677 = vpop.permute.xlu0 %676
        %678 = vrot.lane.b32.xlu0 %v522, 1
        %v679 = vpop.permute.xlu0 %678
        %680 = vrot.lane.b32.xlu0 %v523, 1
        %v681 = vpop.permute.xlu0 %680
        %682 = vrot.lane.b32.xlu0 %v524, 1
        %v683 = vpop.permute.xlu0 %682
        %684 = vrot.lane.b32.xlu0 %v525, 1
        %v685 = vpop.permute.xlu0 %684
        %686 = vrot.lane.b32.xlu0 %v526, 1
        %v687 = vpop.permute.xlu0 %686
        %688 = vrot.lane.b32.xlu0 %v527, 1
        %v689 = vpop.permute.xlu0 %688
        %690 = vrot.lane.b32.xlu0 %v528, 1
        %v691 = vpop.permute.xlu0 %690
        %692 = vrot.lane.b32.xlu0 %v529, 1
        %v693 = vpop.permute.xlu0 %692
        %694 = vrot.lane.b32.xlu0 %v530, 1
        %v695 = vpop.permute.xlu0 %694
        %696 = vrot.lane.b32.xlu0 %v531, 1
        %v697 = vpop.permute.xlu0 %696
        %698 = vrot.lane.b32.xlu0 %v532, 1
        %v699 = vpop.permute.xlu0 %698
        %700 = vrot.lane.b32.xlu0 %v533, 1
        %v701 = vpop.permute.xlu0 %700
        %744 = vrot.lane.b32.xlu0 %v534, 2
        %v745 = vpop.permute.xlu0 %744
        %746 = vrot.lane.b32.xlu0 %v535, 2
        %v747 = vpop.permute.xlu0 %746
        %748 = vrot.lane.b32.xlu0 %v536, 2
        %v749 = vpop.permute.xlu0 %748
        %750 = vrot.lane.b32.xlu0 %v537, 2
        %v751 = vpop.permute.xlu0 %750
        %752 = vrot.lane.b32.xlu0 %v538, 2
        %v753 = vpop.permute.xlu0 %752
        %754 = vrot.lane.b32.xlu0 %v539, 2
        %v755 = vpop.permute.xlu0 %754
        %756 = vrot.lane.b32.xlu0 %v540, 2
        %v757 = vpop.permute.xlu0 %756
        %758 = vrot.lane.b32.xlu0 %v541, 2
        %v759 = vpop.permute.xlu0 %758
        %760 = vrot.lane.b32.xlu0 %v542, 2
        %v761 = vpop.permute.xlu0 %760
        %762 = vrot.lane.b32.xlu0 %v543, 2
        %v763 = vpop.permute.xlu0 %762
        %764 = vrot.lane.b32.xlu0 %v544, 2
        %v765 = vpop.permute.xlu0 %764
        %766 = vrot.lane.b32.xlu0 %v545, 2
        %v767 = vpop.permute.xlu0 %766
        %768 = vrot.lane.b32.xlu0 %v546, 2
        %v769 = vpop.permute.xlu0 %768
        %770 = vrot.lane.b32.xlu0 %v547, 2
        %v771 = vpop.permute.xlu0 %770
        %772 = vrot.lane.b32.xlu0 %v548, 2
        %v773 = vpop.permute.xlu0 %772
        %774 = vrot.lane.b32.xlu0 %v549, 2
        %v775 = vpop.permute.xlu0 %774
        %776 = vrot.lane.b32.xlu0 %v550, 2
        %v777 = vpop.permute.xlu0 %776
        %778 = vrot.lane.b32.xlu0 %v551, 2
        %v779 = vpop.permute.xlu0 %778
        %780 = vrot.lane.b32.xlu0 %v552, 2
        %v781 = vpop.permute.xlu0 %780
        %782 = vrot.lane.b32.xlu0 %v553, 2
        %v783 = vpop.permute.xlu0 %782
        %784 = vrot.lane.b32.xlu0 %v554, 2
        %v785 = vpop.permute.xlu0 %784
        %828 = vrot.lane.b32.xlu0 %v555, 3
        %v829 = vpop.permute.xlu0 %828
        %830 = vrot.lane.b32.xlu0 %v556, 3
        %v831 = vpop.permute.xlu0 %830
        %832 = vrot.lane.b32.xlu0 %v557, 3
        %v833 = vpop.permute.xlu0 %832
        %834 = vrot.lane.b32.xlu0 %v558, 3
        %v835 = vpop.permute.xlu0 %834
        %836 = vrot.lane.b32.xlu0 %v559, 3
        %v837 = vpop.permute.xlu0 %836
        %838 = vrot.lane.b32.xlu0 %v560, 3
        %v839 = vpop.permute.xlu0 %838
        %840 = vrot.lane.b32.xlu0 %v561, 3
        %v841 = vpop.permute.xlu0 %840
        %842 = vrot.lane.b32.xlu0 %v562, 3
        %v843 = vpop.permute.xlu0 %842
        %844 = vrot.lane.b32.xlu0 %v563, 3
        %v845 = vpop.permute.xlu0 %844
        %846 = vrot.lane.b32.xlu0 %v564, 3
        %v847 = vpop.permute.xlu0 %846
        %848 = vrot.lane.b32.xlu0 %v565, 3
        %v849 = vpop.permute.xlu0 %848
        %850 = vrot.lane.b32.xlu0 %v566, 3
        %v851 = vpop.permute.xlu0 %850
        %852 = vrot.lane.b32.xlu0 %v567, 3
        %v853 = vpop.permute.xlu0 %852
        %854 = vrot.lane.b32.xlu0 %v568, 3
        %v855 = vpop.permute.xlu0 %854
        %856 = vrot.lane.b32.xlu0 %v569, 3
        %v857 = vpop.permute.xlu0 %856
        %858 = vrot.lane.b32.xlu0 %v570, 3
        %v859 = vpop.permute.xlu0 %858
        %860 = vrot.lane.b32.xlu0 %v571, 3
        %v861 = vpop.permute.xlu0 %860
        %862 = vrot.lane.b32.xlu0 %v572, 3
        %v863 = vpop.permute.xlu0 %862
        %864 = vrot.lane.b32.xlu0 %v573, 3
        %v865 = vpop.permute.xlu0 %864
        %866 = vrot.lane.b32.xlu0 %v574, 3
        %v867 = vpop.permute.xlu0 %866
        %868 = vrot.lane.b32.xlu0 %v575, 3
        %v869 = vpop.permute.xlu0 %868
        %912 = vrot.lane.b32.xlu0 %v576, 4
        %v913 = vpop.permute.xlu0 %912
        %914 = vrot.lane.b32.xlu0 %v577, 4
        %v915 = vpop.permute.xlu0 %914
        %916 = vrot.lane.b32.xlu0 %v578, 4
        %v917 = vpop.permute.xlu0 %916
        %918 = vrot.lane.b32.xlu0 %v579, 4
        %v919 = vpop.permute.xlu0 %918
        %920 = vrot.lane.b32.xlu0 %v580, 4
        %v921 = vpop.permute.xlu0 %920
        %922 = vrot.lane.b32.xlu0 %v581, 4
        %v923 = vpop.permute.xlu0 %922
        %924 = vrot.lane.b32.xlu0 %v582, 4
        %v925 = vpop.permute.xlu0 %924
        %926 = vrot.lane.b32.xlu0 %v583, 4
        %v927 = vpop.permute.xlu0 %926
        %928 = vrot.lane.b32.xlu0 %v584, 4
        %v929 = vpop.permute.xlu0 %928
        %930 = vrot.lane.b32.xlu0 %v585, 4
        %v931 = vpop.permute.xlu0 %930
        %932 = vrot.lane.b32.xlu0 %v586, 4
        %v933 = vpop.permute.xlu0 %932
        %934 = vrot.lane.b32.xlu0 %v587, 4
        %v935 = vpop.permute.xlu0 %934
        %936 = vrot.lane.b32.xlu0 %v588, 4
        %v937 = vpop.permute.xlu0 %936
        %938 = vrot.lane.b32.xlu0 %v589, 4
        %v939 = vpop.permute.xlu0 %938
        %940 = vrot.lane.b32.xlu0 %v590, 4
        %v941 = vpop.permute.xlu0 %940
        %942 = vrot.lane.b32.xlu0 %v591, 4
        %v943 = vpop.permute.xlu0 %942
        %944 = vrot.lane.b32.xlu0 %v592, 4
        %v945 = vpop.permute.xlu0 %944
        %946 = vrot.lane.b32.xlu0 %v593, 4
        %v947 = vpop.permute.xlu0 %946
        %948 = vrot.lane.b32.xlu0 %v594, 4
        %v949 = vpop.permute.xlu0 %948
        %950 = vrot.lane.b32.xlu0 %v595, 4
        %v951 = vpop.permute.xlu0 %950
        %952 = vrot.lane.b32.xlu0 %v596, 4
        %v953 = vpop.permute.xlu0 %952
        %996 = vrot.lane.b32.xlu0 %v597, 5
        %v997 = vpop.permute.xlu0 %996
        %998 = vrot.lane.b32.xlu0 %v598, 5
        %v999 = vpop.permute.xlu0 %998
        %1000 = vrot.lane.b32.xlu0 %v599, 5
        %v1001 = vpop.permute.xlu0 %1000
        %1002 = vrot.lane.b32.xlu0 %v600, 5
        %v1003 = vpop.permute.xlu0 %1002
        %1004 = vrot.lane.b32.xlu0 %v601, 5
        %v1005 = vpop.permute.xlu0 %1004
        %1006 = vrot.lane.b32.xlu0 %v602, 5
        %v1007 = vpop.permute.xlu0 %1006
        %1008 = vrot.lane.b32.xlu0 %v603, 5
        %v1009 = vpop.permute.xlu0 %1008
        %1010 = vrot.lane.b32.xlu0 %v604, 5
        %v1011 = vpop.permute.xlu0 %1010
        %1012 = vrot.lane.b32.xlu0 %v605, 5
        %v1013 = vpop.permute.xlu0 %1012
        %1014 = vrot.lane.b32.xlu0 %v606, 5
        %v1015 = vpop.permute.xlu0 %1014
        %1016 = vrot.lane.b32.xlu0 %v607, 5
        %v1017 = vpop.permute.xlu0 %1016
        %1018 = vrot.lane.b32.xlu0 %v608, 5
        %v1019 = vpop.permute.xlu0 %1018
        %1020 = vrot.lane.b32.xlu0 %v609, 5
        %v1021 = vpop.permute.xlu0 %1020
        %1022 = vrot.lane.b32.xlu0 %v610, 5
        %v1023 = vpop.permute.xlu0 %1022
        %1024 = vrot.lane.b32.xlu0 %v611, 5
        %v1025 = vpop.permute.xlu0 %1024
        %1026 = vrot.lane.b32.xlu0 %v612, 5
        %v1027 = vpop.permute.xlu0 %1026
        %1028 = vrot.lane.b32.xlu0 %v613, 5
        %v1029 = vpop.permute.xlu0 %1028
        %1030 = vrot.lane.b32.xlu0 %v614, 5
        %v1031 = vpop.permute.xlu0 %1030
        %1032 = vrot.lane.b32.xlu0 %v615, 5
        %v1033 = vpop.permute.xlu0 %1032
        %1034 = vrot.lane.b32.xlu0 %v616, 5
        %v1035 = vpop.permute.xlu0 %1034
        %1036 = vrot.lane.b32.xlu0 %v617, 5
        %v1037 = vpop.permute.xlu0 %1036
        %1080 = vrot.lane.b32.xlu0 %v618, 6
        %v1081 = vpop.permute.xlu0 %1080
        %1082 = vrot.lane.b32.xlu0 %v619, 6
        %v1083 = vpop.permute.xlu0 %1082
        %1084 = vrot.lane.b32.xlu0 %v620, 6
        %v1085 = vpop.permute.xlu0 %1084
        %1086 = vrot.lane.b32.xlu0 %v621, 6
        %v1087 = vpop.permute.xlu0 %1086
        %1088 = vrot.lane.b32.xlu0 %v622, 6
        %v1089 = vpop.permute.xlu0 %1088
        %1090 = vrot.lane.b32.xlu0 %v623, 6
        %v1091 = vpop.permute.xlu0 %1090
        %1092 = vrot.lane.b32.xlu0 %v624, 6
        %v1093 = vpop.permute.xlu0 %1092
        %1094 = vrot.lane.b32.xlu0 %v625, 6
        %v1095 = vpop.permute.xlu0 %1094
        %1096 = vrot.lane.b32.xlu0 %v626, 6
        %v1097 = vpop.permute.xlu0 %1096
        %1098 = vrot.lane.b32.xlu0 %v627, 6
        %v1099 = vpop.permute.xlu0 %1098
        %1100 = vrot.lane.b32.xlu0 %v628, 6
        %v1101 = vpop.permute.xlu0 %1100
        %1102 = vrot.lane.b32.xlu0 %v629, 6
        %v1103 = vpop.permute.xlu0 %1102
        %1104 = vrot.lane.b32.xlu0 %v630, 6
        %v1105 = vpop.permute.xlu0 %1104
        %1106 = vrot.lane.b32.xlu0 %v631, 6
        %v1107 = vpop.permute.xlu0 %1106
        %1108 = vrot.lane.b32.xlu0 %v632, 6
        %v1109 = vpop.permute.xlu0 %1108
        %1110 = vrot.lane.b32.xlu0 %v633, 6
        %v1111 = vpop.permute.xlu0 %1110
        %1112 = vrot.lane.b32.xlu0 %v634, 6
        %v1113 = vpop.permute.xlu0 %1112
        %1114 = vrot.lane.b32.xlu0 %v635, 6
        %v1115 = vpop.permute.xlu0 %1114
        %1116 = vrot.lane.b32.xlu0 %v636, 6
        %v1117 = vpop.permute.xlu0 %1116
        %1118 = vrot.lane.b32.xlu0 %v637, 6
        %v1119 = vpop.permute.xlu0 %1118
        %1120 = vrot.lane.b32.xlu0 %v638, 6
        %v1121 = vpop.permute.xlu0 %1120
        %vm1143 = vcmask 7168
        %v1144 = vsel %vm1143, %v492, %v661
        %v1145 = vsel %vm1143, %v493, %v663
        %v1146 = vsel %vm1143, %v494, %v665
        %v1147 = vsel %vm1143, %v495, %v667
        %v1148 = vsel %vm1143, %v496, %v669
        %v1149 = vsel %vm1143, %v497, %v671
        %v1150 = vsel %vm1143, %v498, %v673
        %v1151 = vsel %vm1143, %v499, %v675
        %v1152 = vsel %vm1143, %v500, %v677
        %v1153 = vsel %vm1143, %v501, %v679
        %v1154 = vsel %vm1143, %v502, %v681
        %v1155 = vsel %vm1143, %v503, %v683
        %v1156 = vsel %vm1143, %v504, %v685
        %v1157 = vsel %vm1143, %v505, %v687
        %v1158 = vsel %vm1143, %v506, %v689
        %v1159 = vsel %vm1143, %v507, %v691
        %v1160 = vsel %vm1143, %v508, %v693
        %v1161 = vsel %vm1143, %v509, %v695
        %v1162 = vsel %vm1143, %v510, %v697
        %v1163 = vsel %vm1143, %v511, %v699
        %v1164 = vsel %vm1143, %v512, %v701
        %vm1165 = vcmask 15360
        %v1166 = vsel %vm1165, %v1144, %v745
        %v1167 = vsel %vm1165, %v1145, %v747
        %v1168 = vsel %vm1165, %v1146, %v749
        %v1169 = vsel %vm1165, %v1147, %v751
        %v1170 = vsel %vm1165, %v1148, %v753
        %v1171 = vsel %vm1165, %v1149, %v755
        %v1172 = vsel %vm1165, %v1150, %v757
        %v1173 = vsel %vm1165, %v1151, %v759
        %v1174 = vsel %vm1165, %v1152, %v761
        %v1175 = vsel %vm1165, %v1153, %v763
        %v1176 = vsel %vm1165, %v1154, %v765
        %v1177 = vsel %vm1165, %v1155, %v767
        %v1178 = vsel %vm1165, %v1156, %v769
        %v1179 = vsel %vm1165, %v1157, %v771
        %v1180 = vsel %vm1165, %v1158, %v773
        %v1181 = vsel %vm1165, %v1159, %v775
        %v1182 = vsel %vm1165, %v1160, %v777
        %v1183 = vsel %vm1165, %v1161, %v779
        %v1184 = vsel %vm1165, %v1162, %v781
        %v1185 = vsel %vm1165, %v1163, %v783
        %v1186 = vsel %vm1165, %v1164, %v785
        %vm1187 = vcmask 23552
        %v1188 = vsel %vm1187, %v1166, %v829
        %v1189 = vsel %vm1187, %v1167, %v831
        %v1190 = vsel %vm1187, %v1168, %v833
        %v1191 = vsel %vm1187, %v1169, %v835
        %v1192 = vsel %vm1187, %v1170, %v837
        %v1193 = vsel %vm1187, %v1171, %v839
        %v1194 = vsel %vm1187, %v1172, %v841
        %v1195 = vsel %vm1187, %v1173, %v843
        %v1196 = vsel %vm1187, %v1174, %v845
        %v1197 = vsel %vm1187, %v1175, %v847
        %v1198 = vsel %vm1187, %v1176, %v849
        %v1199 = vsel %vm1187, %v1177, %v851
        %v1200 = vsel %vm1187, %v1178, %v853
        %v1201 = vsel %vm1187, %v1179, %v855
        %v1202 = vsel %vm1187, %v1180, %v857
        %v1203 = vsel %vm1187, %v1181, %v859
        %v1204 = vsel %vm1187, %v1182, %v861
        %v1205 = vsel %vm1187, %v1183, %v863
        %v1206 = vsel %vm1187, %v1184, %v865
        %v1207 = vsel %vm1187, %v1185, %v867
        %v1208 = vsel %vm1187, %v1186, %v869
        %vm1209 = vcmask 31744
        %v1210 = vsel %vm1209, %v1188, %v913
        %v1211 = vsel %vm1209, %v1189, %v915
        %v1212 = vsel %vm1209, %v1190, %v917
        %v1213 = vsel %vm1209, %v1191, %v919
        %v1214 = vsel %vm1209, %v1192, %v921
        %v1215 = vsel %vm1209, %v1193, %v923
        %v1216 = vsel %vm1209, %v1194, %v925
        %v1217 = vsel %vm1209, %v1195, %v927
        %v1218 = vsel %vm1209, %v1196, %v929
        %v1219 = vsel %vm1209, %v1197, %v931
        %v1220 = vsel %vm1209, %v1198, %v933
        %v1221 = vsel %vm1209, %v1199, %v935
        %v1222 = vsel %vm1209, %v1200, %v937
        %v1223 = vsel %vm1209, %v1201, %v939
        %v1224 = vsel %vm1209, %v1202, %v941
        %v1225 = vsel %vm1209, %v1203, %v943
        %v1226 = vsel %vm1209, %v1204, %v945
        %v1227 = vsel %vm1209, %v1205, %v947
        %v1228 = vsel %vm1209, %v1206, %v949
        %v1229 = vsel %vm1209, %v1207, %v951
        %v1230 = vsel %vm1209, %v1208, %v953
        %vm1231 = vcmask 39936
        %v1232 = vsel %vm1231, %v1210, %v997
        %v1233 = vsel %vm1231, %v1211, %v999
        %v1234 = vsel %vm1231, %v1212, %v1001
        %v1235 = vsel %vm1231, %v1213, %v1003
        %v1236 = vsel %vm1231, %v1214, %v1005
        %v1237 = vsel %vm1231, %v1215, %v1007
        %v1238 = vsel %vm1231, %v1216, %v1009
        %v1239 = vsel %vm1231, %v1217, %v1011
        %v1240 = vsel %vm1231, %v1218, %v1013
        %v1241 = vsel %vm1231, %v1219, %v1015
        %v1242 = vsel %vm1231, %v1220, %v1017
        %v1243 = vsel %vm1231, %v1221, %v1019
        %v1244 = vsel %vm1231, %v1222, %v1021
        %v1245 = vsel %vm1231, %v1223, %v1023
        %v1246 = vsel %vm1231, %v1224, %v1025
        %v1247 = vsel %vm1231, %v1225, %v1027
        %v1248 = vsel %vm1231, %v1226, %v1029
        %v1249 = vsel %vm1231, %v1227, %v1031
        %v1250 = vsel %vm1231, %v1228, %v1033
        %v1251 = vsel %vm1231, %v1229, %v1035
        %v1252 = vsel %vm1231, %v1230, %v1037
        %vm1253 = vcmask 48128
        %v1254 = vsel %vm1253, %v1232, %v1081
        %v1255 = vsel %vm1253, %v1233, %v1083
        %v1256 = vsel %vm1253, %v1234, %v1085
        %v1257 = vsel %vm1253, %v1235, %v1087
        %v1258 = vsel %vm1253, %v1236, %v1089
        %v1259 = vsel %vm1253, %v1237, %v1091
        %v1260 = vsel %vm1253, %v1238, %v1093
        %v1261 = vsel %vm1253, %v1239, %v1095
        %v1262 = vsel %vm1253, %v1240, %v1097
        %v1263 = vsel %vm1253, %v1241, %v1099
        %v1264 = vsel %vm1253, %v1242, %v1101
        %v1265 = vsel %vm1253, %v1243, %v1103
        %v1266 = vsel %vm1253, %v1244, %v1105
        %v1267 = vsel %vm1253, %v1245, %v1107
        %v1268 = vsel %vm1253, %v1246, %v1109
        %v1269 = vsel %vm1253, %v1247, %v1111
        %v1270 = vsel %vm1253, %v1248, %v1113
        %v1271 = vsel %vm1253, %v1249, %v1115
        %v1272 = vsel %vm1253, %v1250, %v1117
        %v1273 = vsel %vm1253, %v1251, %v1119
        %v1274 = vsel %vm1253, %v1252, %v1121
        %v1275 = vld [vmem:[%s1] sm:$0x7f]
        %v1276 = vld [vmem:[%s2] sm:$0x1]
        %v1278 = vlaneseq
        %v1279 = vshrl.u32 %v1278, 7
        %v1280 = vsub.s32 0, %v1279
        %v1281 = vrot.slane %v1276, %v1280
        %vm1283 = vcmask 56320
        %v1285 = vsel %vm1283, %v1254, 0
        %v1288 = vsel %vm1283, %v1255, 0
        %v1291 = vsel %vm1283, %v1256, 0
        %v1294 = vsel %vm1283, %v1257, 0
        %v1297 = vsel %vm1283, %v1258, 0
        %v1300 = vsel %vm1283, %v1259, 0
        %v1303 = vsel %vm1283, %v1260, 0
        %v1306 = vsel %vm1283, %v1261, 0
        %v1309 = vsel %vm1283, %v1262, 0
        %v1312 = vsel %vm1283, %v1263, 0
        %v1315 = vsel %vm1283, %v1264, 0
        %v1318 = vsel %vm1283, %v1265, 0
        %v1321 = vsel %vm1283, %v1266, 0
        %v1324 = vsel %vm1283, %v1267, 0
        %v1327 = vsel %vm1283, %v1268, 0
        %v1330 = vsel %vm1283, %v1269, 0
        %v1333 = vsel %vm1283, %v1270, 0
        %v1336 = vsel %vm1283, %v1271, 0
        %v1339 = vsel %vm1283, %v1272, 0
        %v1342 = vsel %vm1283, %v1273, 0
        %v1345 = vsel %vm1283, %v1274, 0
        %vm1347 = vcmask 1046528
        %v1349 = vsel %vm1347, %v1275, 0
        %1351 = vmatprep.subr.mxu0 0.0
        %1352 = vmatpush1.msra.mxu0 %v1349
        %1353 = vmatprep.subr.mxu0 0.0
        %1354 = vmatpush1.msra.mxu0 0.0
        %1355 = vmatprep.subr.mxu0 0.0
        %1356 = vmatpush1.msra.mxu0 0.0
        %1357 = vmatprep.subr.mxu0 0.0
        %1358 = vmatpush1.msra.mxu0 0.0
        %1359 = vmatprep.subr.mxu0 0.0
        %1360 = vmatpush1.msra.mxu0 0.0
        %1361 = vmatprep.subr.mxu0 0.0
        %1362 = vmatpush1.msra.mxu0 0.0
        %1363 = vmatprep.subr.mxu0 0.0
        %1364 = vmatpush1.msra.mxu0 0.0
        %1365 = vmatprep.subr.mxu0 0.0
        %1366 = vmatpush1.msra.mxu0 0.0
        %1367 = vmatprep.subr.mxu0 0.0
        %1368 = vmatpush1.msra.mxu0 0.0
        %1369 = vmatprep.subr.mxu0 0.0
        %1370 = vmatpush1.msra.mxu0 0.0
        %1371 = vmatprep.subr.mxu0 0.0
        %1372 = vmatpush1.msra.mxu0 0.0
        %1373 = vmatprep.subr.mxu0 0.0
        %1374 = vmatpush1.msra.mxu0 0.0
        %1375 = vmatprep.subr.mxu0 0.0
        %1376 = vmatpush1.msra.mxu0 0.0
        %1377 = vmatprep.subr.mxu0 0.0
        %1378 = vmatpush1.msra.mxu0 0.0
        %1379 = vmatprep.subr.mxu0 0.0
        %1380 = vmatpush1.msra.mxu0 0.0
        %1381 = vmatprep.subr.mxu0 0.0
        %1382 = vmatpush1.msra.mxu0 0.0
        %1383 = vmatprep.subr.mxu0 0.0
        %1384 = vmatpush1.msra.mxu0 0.0
        %1385 = vmatprep.subr.mxu0 0.0
        %1386 = vmatpush1.msra.mxu0 0.0
        %1387 = vmatprep.subr.mxu0 0.0
        %1388 = vmatpush1.msra.mxu0 0.0
        %1389 = vmatprep.subr.mxu0 0.0
        %1390 = vmatpush1.msra.mxu0 0.0
        %1391 = vmatprep.subr.mxu0 0.0
        %1392 = vmatpush1.msra.mxu0 0.0
        %1393 = vmatprep.subr.mxu0 0.0
        %1394 = vmatpush1.msra.mxu0 0.0
        %1395 = vmatprep.subr.mxu0 0.0
        %1396 = vmatpush1.msra.mxu0 0.0
        %1397 = vmatprep.subr.mxu0 0.0
        %1398 = vmatpush1.msra.mxu0 0.0
        %1399 = vmatprep.subr.mxu0 0.0
        %1400 = vmatpush1.msra.mxu0 0.0
        %1401 = vmatprep.subr.mxu0 0.0
        %1402 = vmatpush1.msra.mxu0 0.0
        %1403 = vmatprep.subr.mxu0 0.0
        %1404 = vmatpush1.msra.mxu0 0.0
        %1405 = vmatprep.subr.mxu0 0.0
        %1406 = vmatpush1.msra.mxu0 0.0
        %1407 = vmatprep.subr.mxu0 0.0
        %1408 = vmatpush1.msra.mxu0 0.0
        %1409 = vmatprep.subr.mxu0 0.0
        %1410 = vmatpush1.msra.mxu0 0.0
        %1411 = vmatprep.subr.mxu0 0.0
        %1412 = vmatpush1.msra.mxu0 0.0
        %1413 = vmatprep.subr.mxu0 0.0
        %1414 = vmatpush1.msra.mxu0 0.0
        %1415 = vmatprep.mubr.f32.mxu0 0.0
        %1416 = vmatmul.mubr.f32.gmra.mrb[0].mxu0 %v1285
        %v1417 = vpop.f32.mrb[0].mxu0
        %v1418 = vadd.f32 %v1281, %v1417
        %v1419 = vpop.f32.mrb[0].mxu0
        %1420 = vmatprep.mubr.f32.mxu0 0.0
        %1421 = vmatmul.mubr.f32.gmra.mrb[0].mxu0 %v1288
        %v1422 = vpop.f32.mrb[0].mxu0
        %v1423 = vadd.f32 %v1281, %v1422
        %v1424 = vpop.f32.mrb[0].mxu0
        %1425 = vmatprep.mubr.f32.mxu0 0.0
        %1426 = vmatmul.mubr.f32.gmra.mrb[0].mxu0 %v1291
        %v1427 = vpop.f32.mrb[0].mxu0
        %v1428 = vadd.f32 %v1281, %v1427
        %v1429 = vpop.f32.mrb[0].mxu0
        %1430 = vmatprep.mubr.f32.mxu0 0.0
        %1431 = vmatmul.mubr.f32.gmra.mrb[0].mxu0 %v1294
        %v1432 = vpop.f32.mrb[0].mxu0
        %v1433 = vadd.f32 %v1281, %v1432
        %v1434 = vpop.f32.mrb[0].mxu0
        %1435 = vmatprep.mubr.f32.mxu0 0.0
        %1436 = vmatmul.mubr.f32.gmra.mrb[0].mxu0 %v1297
        %v1437 = vpop.f32.mrb[0].mxu0
        %v1438 = vadd.f32 %v1281, %v1437
        %v1439 = vpop.f32.mrb[0].mxu0
        %1440 = vmatprep.mubr.f32.mxu0 0.0
        %1441 = vmatmul.mubr.f32.gmra.mrb[0].mxu0 %v1300
        %v1442 = vpop.f32.mrb[0].mxu0
        %v1443 = vadd.f32 %v1281, %v1442
        %v1444 = vpop.f32.mrb[0].mxu0
        %1445 = vmatprep.mubr.f32.mxu0 0.0
        %1446 = vmatmul.mubr.f32.gmra.mrb[0].mxu0 %v1303
        %v1447 = vpop.f32.mrb[0].mxu0
        %v1448 = vadd.f32 %v1281, %v1447
        %v1449 = vpop.f32.mrb[0].mxu0
        %1450 = vmatprep.mubr.f32.mxu0 0.0
        %1451 = vmatmul.mubr.f32.gmra.mrb[0].mxu0 %v1306
        %v1452 = vpop.f32.mrb[0].mxu0
        %v1453 = vadd.f32 %v1281, %v1452
        %v1454 = vpop.f32.mrb[0].mxu0
        %1455 = vmatprep.mubr.f32.mxu0 0.0
        %1456 = vmatmul.mubr.f32.gmra.mrb[0].mxu0 %v1309
        %v1457 = vpop.f32.mrb[0].mxu0
        %v1458 = vadd.f32 %v1281, %v1457
        %v1459 = vpop.f32.mrb[0].mxu0
        %1460 = vmatprep.mubr.f32.mxu0 0.0
        %1461 = vmatmul.mubr.f32.gmra.mrb[0].mxu0 %v1312
        %v1462 = vpop.f32.mrb[0].mxu0
        %v1463 = vadd.f32 %v1281, %v1462
        %v1464 = vpop.f32.mrb[0].mxu0
        %1465 = vmatprep.mubr.f32.mxu0 0.0
        %1466 = vmatmul.mubr.f32.gmra.mrb[0].mxu0 %v1315
        %v1467 = vpop.f32.mrb[0].mxu0
        %v1468 = vadd.f32 %v1281, %v1467
        %v1469 = vpop.f32.mrb[0].mxu0
        %1470 = vmatprep.mubr.f32.mxu0 0.0
        %1471 = vmatmul.mubr.f32.gmra.mrb[0].mxu0 %v1318
        %v1472 = vpop.f32.mrb[0].mxu0
        %v1473 = vadd.f32 %v1281, %v1472
        %v1474 = vpop.f32.mrb[0].mxu0
        %1475 = vmatprep.mubr.f32.mxu0 0.0
        %1476 = vmatmul.mubr.f32.gmra.mrb[0].mxu0 %v1321
        %v1477 = vpop.f32.mrb[0].mxu0
        %v1478 = vadd.f32 %v1281, %v1477
        %v1479 = vpop.f32.mrb[0].mxu0
        %1480 = vmatprep.mubr.f32.mxu0 0.0
        %1481 = vmatmul.mubr.f32.gmra.mrb[0].mxu0 %v1324
        %v1482 = vpop.f32.mrb[0].mxu0
        %v1483 = vadd.f32 %v1281, %v1482
        %v1484 = vpop.f32.mrb[0].mxu0
        %1485 = vmatprep.mubr.f32.mxu0 0.0
        %1486 = vmatmul.mubr.f32.gmra.mrb[0].mxu0 %v1327
        %v1487 = vpop.f32.mrb[0].mxu0
        %v1488 = vadd.f32 %v1281, %v1487
        %v1489 = vpop.f32.mrb[0].mxu0
        %1490 = vmatprep.mubr.f32.mxu0 0.0
        %1491 = vmatmul.mubr.f32.gmra.mrb[0].mxu0 %v1330
        %v1492 = vpop.f32.mrb[0].mxu0
        %v1493 = vadd.f32 %v1281, %v1492
        %v1494 = vpop.f32.mrb[0].mxu0
        %1495 = vmatprep.mubr.f32.mxu0 0.0
        %1496 = vmatmul.mubr.f32.gmra.mrb[0].mxu0 %v1333
        %v1497 = vpop.f32.mrb[0].mxu0
        %v1498 = vadd.f32 %v1281, %v1497
        %v1499 = vpop.f32.mrb[0].mxu0
        %1500 = vmatprep.mubr.f32.mxu0 0.0
        %1501 = vmatmul.mubr.f32.gmra.mrb[0].mxu0 %v1336
        %v1502 = vpop.f32.mrb[0].mxu0
        %v1503 = vadd.f32 %v1281, %v1502
        %v1504 = vpop.f32.mrb[0].mxu0
        %1505 = vmatprep.mubr.f32.mxu0 0.0
        %1506 = vmatmul.mubr.f32.gmra.mrb[0].mxu0 %v1339
        %v1507 = vpop.f32.mrb[0].mxu0
        %v1508 = vadd.f32 %v1281, %v1507
        %v1509 = vpop.f32.mrb[0].mxu0
        %1510 = vmatprep.mubr.f32.mxu0 0.0
        %1511 = vmatmul.mubr.f32.gmra.mrb[0].mxu0 %v1342
        %v1512 = vpop.f32.mrb[0].mxu0
        %v1513 = vadd.f32 %v1281, %v1512
        %v1514 = vpop.f32.mrb[0].mxu0
        %1515 = vmatprep.mubr.f32.mxu0 0.0
        %1516 = vmatmul.mubr.f32.gmra.mrb[0].mxu0 %v1345
        %v1517 = vpop.f32.mrb[0].mxu0
        %v1518 = vadd.f32 %v1281, %v1517
        %v1519 = vpop.f32.mrb[0].mxu0
        %1520 = vdwg.mxu0
        %v1521 = vmul.f32 %v1418, 0.01
        %v1522 = vmul.f32 %v1423, 0.01
        %v1523 = vmul.f32 %v1428, 0.01
        %v1524 = vmul.f32 %v1433, 0.01
        %v1525 = vmul.f32 %v1438, 0.01
        %v1526 = vmul.f32 %v1443, 0.01
        %v1527 = vmul.f32 %v1448, 0.01
        %v1528 = vmul.f32 %v1453, 0.01
        %v1529 = vmul.f32 %v1458, 0.01
        %v1530 = vmul.f32 %v1463, 0.01
        %v1531 = vmul.f32 %v1468, 0.01
        %v1532 = vmul.f32 %v1473, 0.01
        %v1533 = vmul.f32 %v1478, 0.01
        %v1534 = vmul.f32 %v1483, 0.01
        %v1535 = vmul.f32 %v1488, 0.01
        %v1536 = vmul.f32 %v1493, 0.01
        %v1537 = vmul.f32 %v1498, 0.01
        %v1538 = vmul.f32 %v1503, 0.01
        %v1539 = vmul.f32 %v1508, 0.01
        %v1540 = vmul.f32 %v1513, 0.01
        %v1541 = vmul.f32 %v1518, 0.01
        %v1542 = vmax.f32 %v1418, %v1521
        %v1543 = vmax.f32 %v1423, %v1522
        %v1544 = vmax.f32 %v1428, %v1523
        %v1545 = vmax.f32 %v1433, %v1524
        %v1546 = vmax.f32 %v1438, %v1525
        %v1547 = vmax.f32 %v1443, %v1526
        %v1548 = vmax.f32 %v1448, %v1527
        %v1549 = vmax.f32 %v1453, %v1528
        %v1550 = vmax.f32 %v1458, %v1529
        %v1551 = vmax.f32 %v1463, %v1530
        %v1552 = vmax.f32 %v1468, %v1531
        %v1553 = vmax.f32 %v1473, %v1532
        %v1554 = vmax.f32 %v1478, %v1533
        %v1555 = vmax.f32 %v1483, %v1534
        %v1556 = vmax.f32 %v1488, %v1535
        %v1557 = vmax.f32 %v1493, %v1536
        %v1558 = vmax.f32 %v1498, %v1537
        %v1559 = vmax.f32 %v1503, %v1538
        %v1560 = vmax.f32 %v1508, %v1539
        %v1561 = vmax.f32 %v1513, %v1540
        %v1562 = vmax.f32 %v1518, %v1541
        %vm1563 = vcmask 64512
        %1564 = vst.msk [vmem:[#allocation7] sm:$0xff] %vm1563, %v1542
        %1565 = vst.msk [vmem:[#allocation7 + $0x8] sm:$0xff] %vm1563, %v1543
        %1566 = vst.msk [vmem:[#allocation7 + $0x10] sm:$0xff] %vm1563, %v1544
        %1567 = vst.msk [vmem:[#allocation7 + $0x18] sm:$0xff] %vm1563, %v1545
        %1568 = vst.msk [vmem:[#allocation7 + $0x20] sm:$0xff] %vm1563, %v1546
        %1569 = vst.msk [vmem:[#allocation7 + $0x28] sm:$0xff] %vm1563, %v1547
        %1570 = vst.msk [vmem:[#allocation7 + $0x30] sm:$0xff] %vm1563, %v1548
        %1571 = vst.msk [vmem:[#allocation7 + $0x38] sm:$0xff] %vm1563, %v1549
        %1572 = vst.msk [vmem:[#allocation7 + $0x40] sm:$0xff] %vm1563, %v1550
        %1573 = vst.msk [vmem:[#allocation7 + $0x48] sm:$0xff] %vm1563, %v1551
        %1574 = vst.msk [vmem:[#allocation7 + $0x50] sm:$0xff] %vm1563, %v1552
        %1575 = vst.msk [vmem:[#allocation7 + $0x58] sm:$0xff] %vm1563, %v1553
        %1576 = vst.msk [vmem:[#allocation7 + $0x60] sm:$0xff] %vm1563, %v1554
        %1577 = vst.msk [vmem:[#allocation7 + $0x68] sm:$0xff] %vm1563, %v1555
        %1578 = vst.msk [vmem:[#allocation7 + $0x70] sm:$0xff] %vm1563, %v1556
        %1579 = vst.msk [vmem:[#allocation7 + $0x78] sm:$0xff] %vm1563, %v1557
        %1580 = vst.msk [vmem:[#allocation7 + $0x80] sm:$0xff] %vm1563, %v1558
        %1581 = vst.msk [vmem:[#allocation7 + $0x88] sm:$0xff] %vm1563, %v1559
        %1582 = vst.msk [vmem:[#allocation7 + $0x90] sm:$0xff] %vm1563, %v1560
        %1583 = vst.msk [vmem:[#allocation7 + $0x98] sm:$0xff] %vm1563, %v1561
        %vm1584 = vcmask 58368
        %1585 = vst.msk [vmem:[#allocation7 + $0xa0] sm:$0x3] %vm1584, %v1562
        %v1586 = vld [vmem:[#allocation7] sm:$0xff]
        %v1587 = vld [vmem:[#allocation7 + $0x8] sm:$0xff]
        %v1588 = vld [vmem:[#allocation7 + $0x10] sm:$0xff]
        %v1589 = vld [vmem:[#allocation7 + $0x18] sm:$0xff]
        %v1590 = vld [vmem:[#allocation7 + $0x20] sm:$0xff]
        %v1591 = vld [vmem:[#allocation7 + $0x28] sm:$0xff]
        %1592 = vst.msk [vmem:[#allocation2 + $0x4] sm:$0xff] %vm1563, %v1586
        %1593 = vst.msk [vmem:[#allocation2 + $0xc] sm:$0xff] %vm1563, %v1587
        %1594 = vst.msk [vmem:[#allocation2 + $0x14] sm:$0xff] %vm1563, %v1588
        %1595 = vst.msk [vmem:[#allocation2 + $0x1c] sm:$0xff] %vm1563, %v1589
        %1596 = vst.msk [vmem:[#allocation2 + $0x24] sm:$0xff] %vm1563, %v1590
        %1597 = vst.msk [vmem:[#allocation2 + $0x2c] sm:$0xff] %vm1563, %v1591
        %vm1598 = vcmask 60416
        %1599 = vst.msk [vmem:[#allocation2] sm:$0xf] %vm1598, 0.0
        %1600 = vst.msk [vmem:[#allocation2 + $0x34] sm:$0xf] %vm1598, 0.0
        %v1601 = vld [vmem:[#allocation7 + $0x38] sm:$0xff]
        %v1602 = vld [vmem:[#allocation7 + $0x40] sm:$0xff]
        %v1603 = vld [vmem:[#allocation7 + $0x48] sm:$0xff]
        %v1604 = vld [vmem:[#allocation7 + $0x50] sm:$0xff]
        %v1605 = vld [vmem:[#allocation7 + $0x58] sm:$0xff]
        %v1606 = vld [vmem:[#allocation7 + $0x60] sm:$0xff]
        %1607 = vst.msk [vmem:[#allocation2 + $0x3c] sm:$0xff] %vm1563, %v1601
        %1608 = vst.msk [vmem:[#allocation2 + $0x44] sm:$0xff] %vm1563, %v1602
        %1609 = vst.msk [vmem:[#allocation2 + $0x4c] sm:$0xff] %vm1563, %v1603
        %1610 = vst.msk [vmem:[#allocation2 + $0x54] sm:$0xff] %vm1563, %v1604
        %1611 = vst.msk [vmem:[#allocation2 + $0x5c] sm:$0xff] %vm1563, %v1605
        %1612 = vst.msk [vmem:[#allocation2 + $0x64] sm:$0xff] %vm1563, %v1606
        %1613 = vst.msk [vmem:[#allocation2 + $0x38] sm:$0xf] %vm1598, 0.0
        %1614 = vst.msk [vmem:[#allocation2 + $0x6c] sm:$0xf] %vm1598, 0.0
        %v1615 = vld [vmem:[#allocation7 + $0x70] sm:$0xff]
        %v1616 = vld [vmem:[#allocation7 + $0x78] sm:$0xff]
        %v1617 = vld [vmem:[#allocation7 + $0x80] sm:$0xff]
        %v1618 = vld [vmem:[#allocation7 + $0x88] sm:$0xff]
        %v1619 = vld [vmem:[#allocation7 + $0x90] sm:$0xff]
        %v1620 = vld [vmem:[#allocation7 + $0x98] sm:$0xff]
        %1621 = vst.msk [vmem:[#allocation2 + $0x74] sm:$0xff] %vm1563, %v1615
        %1622 = vst.msk [vmem:[#allocation2 + $0x7c] sm:$0xff] %vm1563, %v1616
        %1623 = vst.msk [vmem:[#allocation2 + $0x84] sm:$0xff] %vm1563, %v1617
        %1624 = vst.msk [vmem:[#allocation2 + $0x8c] sm:$0xff] %vm1563, %v1618
        %1625 = vst.msk [vmem:[#allocation2 + $0x94] sm:$0xff] %vm1563, %v1619
        %1626 = vst.msk [vmem:[#allocation2 + $0x9c] sm:$0xff] %vm1563, %v1620
        %1627 = vst.msk [vmem:[#allocation2 + $0x70] sm:$0xf] %vm1598, 0.0
        %1628 = vst.msk [vmem:[#allocation2 + $0xa4] sm:$0xf] %vm1598, 0.0
        %v1629 = vld [vmem:[#allocation2] sm:$0xff]
        %v1630 = vld [vmem:[#allocation2 + $0x8] sm:$0xff]
        %v1631 = vld [vmem:[#allocation2 + $0x10] sm:$0xff]
        %v1632 = vld [vmem:[#allocation2 + $0x18] sm:$0xff]
        %v1633 = vld [vmem:[#allocation2 + $0x20] sm:$0xff]
        %v1634 = vld [vmem:[#allocation2 + $0x28] sm:$0xff]
        %v1635 = vld [vmem:[#allocation2 + $0x30] sm:$0xff]
        %v1636 = vld [vmem:[#allocation2 + $0x38] sm:$0xff]
        %v1637 = vld [vmem:[#allocation2 + $0x40] sm:$0xff]
        %v1638 = vld [vmem:[#allocation2 + $0x48] sm:$0xff]
        %v1639 = vld [vmem:[#allocation2 + $0x50] sm:$0xff]
        %v1640 = vld [vmem:[#allocation2 + $0x58] sm:$0xff]
        %v1641 = vld [vmem:[#allocation2 + $0x60] sm:$0xff]
        %v1642 = vld [vmem:[#allocation2 + $0x68] sm:$0xff]
        %v1643 = vld [vmem:[#allocation2 + $0x70] sm:$0xff]
        %v1644 = vld [vmem:[#allocation2 + $0x78] sm:$0xff]
        %v1645 = vld [vmem:[#allocation2 + $0x80] sm:$0xff]
        %v1646 = vld [vmem:[#allocation2 + $0x88] sm:$0xff]
        %v1647 = vld [vmem:[#allocation2 + $0x90] sm:$0xff]
        %v1648 = vld [vmem:[#allocation2 + $0x98] sm:$0xff]
        %v1649 = vld [vmem:[#allocation2 + $0xa0] sm:$0xf]
        %v1650 = vld [vmem:[#allocation2 + $0x1] sm:$0xff]
        %v1651 = vld [vmem:[#allocation2 + $0x9] sm:$0xff]
        %v1652 = vld [vmem:[#allocation2 + $0x11] sm:$0xff]
        %v1653 = vld [vmem:[#allocation2 + $0x19] sm:$0xff]
        %v1654 = vld [vmem:[#allocation2 + $0x21] sm:$0xff]
        %v1655 = vld [vmem:[#allocation2 + $0x29] sm:$0xff]
        %v1656 = vld [vmem:[#allocation2 + $0x31] sm:$0xff]
        %v1657 = vld [vmem:[#allocation2 + $0x39] sm:$0xff]
        %v1658 = vld [vmem:[#allocation2 + $0x41] sm:$0xff]
        %v1659 = vld [vmem:[#allocation2 + $0x49] sm:$0xff]
        %v1660 = vld [vmem:[#allocation2 + $0x51] sm:$0xff]
        %v1661 = vld [vmem:[#allocation2 + $0x59] sm:$0xff]
        %v1662 = vld [vmem:[#allocation2 + $0x61] sm:$0xff]
        %v1663 = vld [vmem:[#allocation2 + $0x69] sm:$0xff]
        %v1664 = vld [vmem:[#allocation2 + $0x71] sm:$0xff]
        %v1665 = vld [vmem:[#allocation2 + $0x79] sm:$0xff]
        %v1666 = vld [vmem:[#allocation2 + $0x81] sm:$0xff]
        %v1667 = vld [vmem:[#allocation2 + $0x89] sm:$0xff]
        %v1668 = vld [vmem:[#allocation2 + $0x91] sm:$0xff]
        %v1669 = vld [vmem:[#allocation2 + $0x99] sm:$0xff]
        %v1670 = vld [vmem:[#allocation2 + $0xa1] sm:$0xf]
        %v1671 = vld [vmem:[#allocation2 + $0x2] sm:$0xff]
        %v1672 = vld [vmem:[#allocation2 + $0xa] sm:$0xff]
        %v1673 = vld [vmem:[#allocation2 + $0x12] sm:$0xff]
        %v1674 = vld [vmem:[#allocation2 + $0x1a] sm:$0xff]
        %v1675 = vld [vmem:[#allocation2 + $0x22] sm:$0xff]
        %v1676 = vld [vmem:[#allocation2 + $0x2a] sm:$0xff]
        %v1677 = vld [vmem:[#allocation2 + $0x32] sm:$0xff]
        %v1678 = vld [vmem:[#allocation2 + $0x3a] sm:$0xff]
        %v1679 = vld [vmem:[#allocation2 + $0x42] sm:$0xff]
        %v1680 = vld [vmem:[#allocation2 + $0x4a] sm:$0xff]
        %v1681 = vld [vmem:[#allocation2 + $0x52] sm:$0xff]
        %v1682 = vld [vmem:[#allocation2 + $0x5a] sm:$0xff]
        %v1683 = vld [vmem:[#allocation2 + $0x62] sm:$0xff]
        %v1684 = vld [vmem:[#allocation2 + $0x6a] sm:$0xff]
        %v1685 = vld [vmem:[#allocation2 + $0x72] sm:$0xff]
        %v1686 = vld [vmem:[#allocation2 + $0x7a] sm:$0xff]
        %v1687 = vld [vmem:[#allocation2 + $0x82] sm:$0xff]
        %v1688 = vld [vmem:[#allocation2 + $0x8a] sm:$0xff]
        %v1689 = vld [vmem:[#allocation2 + $0x92] sm:$0xff]
        %v1690 = vld [vmem:[#allocation2 + $0x9a] sm:$0xff]
        %v1691 = vld [vmem:[#allocation2 + $0xa2] sm:$0xf]
        %v1692 = vld [vmem:[#allocation2 + $0x3] sm:$0xff]
        %v1693 = vld [vmem:[#allocation2 + $0xb] sm:$0xff]
        %v1694 = vld [vmem:[#allocation2 + $0x13] sm:$0xff]
        %v1695 = vld [vmem:[#allocation2 + $0x1b] sm:$0xff]
        %v1696 = vld [vmem:[#allocation2 + $0x23] sm:$0xff]
        %v1697 = vld [vmem:[#allocation2 + $0x2b] sm:$0xff]
        %v1698 = vld [vmem:[#allocation2 + $0x33] sm:$0xff]
        %v1699 = vld [vmem:[#allocation2 + $0x3b] sm:$0xff]
        %v1700 = vld [vmem:[#allocation2 + $0x43] sm:$0xff]
        %v1701 = vld [vmem:[#allocation2 + $0x4b] sm:$0xff]
        %v1702 = vld [vmem:[#allocation2 + $0x53] sm:$0xff]
        %v1703 = vld [vmem:[#allocation2 + $0x5b] sm:$0xff]
        %v1704 = vld [vmem:[#allocation2 + $0x63] sm:$0xff]
        %v1705 = vld [vmem:[#allocation2 + $0x6b] sm:$0xff]
        %v1706 = vld [vmem:[#allocation2 + $0x73] sm:$0xff]
        %v1707 = vld [vmem:[#allocation2 + $0x7b] sm:$0xff]
        %v1708 = vld [vmem:[#allocation2 + $0x83] sm:$0xff]
        %v1709 = vld [vmem:[#allocation2 + $0x8b] sm:$0xff]
        %v1710 = vld [vmem:[#allocation2 + $0x93] sm:$0xff]
        %v1711 = vld [vmem:[#allocation2 + $0x9b] sm:$0xff]
        %v1712 = vld [vmem:[#allocation2 + $0xa3] sm:$0xf]
        %v1713 = vld [vmem:[#allocation2 + $0x4] sm:$0xff]
        %v1714 = vld [vmem:[#allocation2 + $0xc] sm:$0xff]
        %v1715 = vld [vmem:[#allocation2 + $0x14] sm:$0xff]
        %v1716 = vld [vmem:[#allocation2 + $0x1c] sm:$0xff]
        %v1717 = vld [vmem:[#allocation2 + $0x24] sm:$0xff]
        %v1718 = vld [vmem:[#allocation2 + $0x2c] sm:$0xff]
        %v1719 = vld [vmem:[#allocation2 + $0x34] sm:$0xff]
        %v1720 = vld [vmem:[#allocation2 + $0x3c] sm:$0xff]
        %v1721 = vld [vmem:[#allocation2 + $0x44] sm:$0xff]
        %v1722 = vld [vmem:[#allocation2 + $0x4c] sm:$0xff]
        %v1723 = vld [vmem:[#allocation2 + $0x54] sm:$0xff]
        %v1724 = vld [vmem:[#allocation2 + $0x5c] sm:$0xff]
        %v1725 = vld [vmem:[#allocation2 + $0x64] sm:$0xff]
        %v1726 = vld [vmem:[#allocation2 + $0x6c] sm:$0xff]
        %v1727 = vld [vmem:[#allocation2 + $0x74] sm:$0xff]
        %v1728 = vld [vmem:[#allocation2 + $0x7c] sm:$0xff]
        %v1729 = vld [vmem:[#allocation2 + $0x84] sm:$0xff]
        %v1730 = vld [vmem:[#allocation2 + $0x8c] sm:$0xff]
        %v1731 = vld [vmem:[#allocation2 + $0x94] sm:$0xff]
        %v1732 = vld [vmem:[#allocation2 + $0x9c] sm:$0xff]
        %v1733 = vld [vmem:[#allocation2 + $0xa4] sm:$0xf]
        %1755 = vrot.lane.b32.xlu0 %v1650, 8
        %v1756 = vpop.permute.xlu0 %1755
        %1757 = vrot.lane.b32.xlu0 %v1651, 8
        %v1758 = vpop.permute.xlu0 %1757
        %1759 = vrot.lane.b32.xlu0 %v1652, 8
        %v1760 = vpop.permute.xlu0 %1759
        %1761 = vrot.lane.b32.xlu0 %v1653, 8
        %v1762 = vpop.permute.xlu0 %1761
        %1763 = vrot.lane.b32.xlu0 %v1654, 8
        %v1764 = vpop.permute.xlu0 %1763
        %1765 = vrot.lane.b32.xlu0 %v1655, 8
        %v1766 = vpop.permute.xlu0 %1765
        %1767 = vrot.lane.b32.xlu0 %v1656, 8
        %v1768 = vpop.permute.xlu0 %1767
        %1769 = vrot.lane.b32.xlu0 %v1657, 8
        %v1770 = vpop.permute.xlu0 %1769
        %1771 = vrot.lane.b32.xlu0 %v1658, 8
        %v1772 = vpop.permute.xlu0 %1771
        %1773 = vrot.lane.b32.xlu0 %v1659, 8
        %v1774 = vpop.permute.xlu0 %1773
        %1775 = vrot.lane.b32.xlu0 %v1660, 8
        %v1776 = vpop.permute.xlu0 %1775
        %1777 = vrot.lane.b32.xlu0 %v1661, 8
        %v1778 = vpop.permute.xlu0 %1777
        %1779 = vrot.lane.b32.xlu0 %v1662, 8
        %v1780 = vpop.permute.xlu0 %1779
        %1781 = vrot.lane.b32.xlu0 %v1663, 8
        %v1782 = vpop.permute.xlu0 %1781
        %1783 = vrot.lane.b32.xlu0 %v1664, 8
        %v1784 = vpop.permute.xlu0 %1783
        %1785 = vrot.lane.b32.xlu0 %v1665, 8
        %v1786 = vpop.permute.xlu0 %1785
        %1787 = vrot.lane.b32.xlu0 %v1666, 8
        %v1788 = vpop.permute.xlu0 %1787
        %1789 = vrot.lane.b32.xlu0 %v1667, 8
        %v1790 = vpop.permute.xlu0 %1789
        %1791 = vrot.lane.b32.xlu0 %v1668, 8
        %v1792 = vpop.permute.xlu0 %1791
        %1793 = vrot.lane.b32.xlu0 %v1669, 8
        %v1794 = vpop.permute.xlu0 %1793
        %1795 = vrot.lane.b32.xlu0 %v1670, 8
        %v1796 = vpop.permute.xlu0 %1795
        %1839 = vrot.lane.b32.xlu0 %v1671, 16
        %v1840 = vpop.permute.xlu0 %1839
        %1841 = vrot.lane.b32.xlu0 %v1672, 16
        %v1842 = vpop.permute.xlu0 %1841
        %1843 = vrot.lane.b32.xlu0 %v1673, 16
        %v1844 = vpop.permute.xlu0 %1843
        %1845 = vrot.lane.b32.xlu0 %v1674, 16
        %v1846 = vpop.permute.xlu0 %1845
        %1847 = vrot.lane.b32.xlu0 %v1675, 16
        %v1848 = vpop.permute.xlu0 %1847
        %1849 = vrot.lane.b32.xlu0 %v1676, 16
        %v1850 = vpop.permute.xlu0 %1849
        %1851 = vrot.lane.b32.xlu0 %v1677, 16
        %v1852 = vpop.permute.xlu0 %1851
        %1853 = vrot.lane.b32.xlu0 %v1678, 16
        %v1854 = vpop.permute.xlu0 %1853
        %1855 = vrot.lane.b32.xlu0 %v1679, 16
        %v1856 = vpop.permute.xlu0 %1855
        %1857 = vrot.lane.b32.xlu0 %v1680, 16
        %v1858 = vpop.permute.xlu0 %1857
        %1859 = vrot.lane.b32.xlu0 %v1681, 16
        %v1860 = vpop.permute.xlu0 %1859
        %1861 = vrot.lane.b32.xlu0 %v1682, 16
        %v1862 = vpop.permute.xlu0 %1861
        %1863 = vrot.lane.b32.xlu0 %v1683, 16
        %v1864 = vpop.permute.xlu0 %1863
        %1865 = vrot.lane.b32.xlu0 %v1684, 16
        %v1866 = vpop.permute.xlu0 %1865
        %1867 = vrot.lane.b32.xlu0 %v1685, 16
        %v1868 = vpop.permute.xlu0 %1867
        %1869 = vrot.lane.b32.xlu0 %v1686, 16
        %v1870 = vpop.permute.xlu0 %1869
        %1871 = vrot.lane.b32.xlu0 %v1687, 16
        %v1872 = vpop.permute.xlu0 %1871
        %1873 = vrot.lane.b32.xlu0 %v1688, 16
        %v1874 = vpop.permute.xlu0 %1873
        %1875 = vrot.lane.b32.xlu0 %v1689, 16
        %v1876 = vpop.permute.xlu0 %1875
        %1877 = vrot.lane.b32.xlu0 %v1690, 16
        %v1878 = vpop.permute.xlu0 %1877
        %1879 = vrot.lane.b32.xlu0 %v1691, 16
        %v1880 = vpop.permute.xlu0 %1879
        %1923 = vrot.lane.b32.xlu0 %v1692, 24
        %v1924 = vpop.permute.xlu0 %1923
        %1925 = vrot.lane.b32.xlu0 %v1693, 24
        %v1926 = vpop.permute.xlu0 %1925
        %1927 = vrot.lane.b32.xlu0 %v1694, 24
        %v1928 = vpop.permute.xlu0 %1927
        %1929 = vrot.lane.b32.xlu0 %v1695, 24
        %v1930 = vpop.permute.xlu0 %1929
        %1931 = vrot.lane.b32.xlu0 %v1696, 24
        %v1932 = vpop.permute.xlu0 %1931
        %1933 = vrot.lane.b32.xlu0 %v1697, 24
        %v1934 = vpop.permute.xlu0 %1933
        %1935 = vrot.lane.b32.xlu0 %v1698, 24
        %v1936 = vpop.permute.xlu0 %1935
        %1937 = vrot.lane.b32.xlu0 %v1699, 24
        %v1938 = vpop.permute.xlu0 %1937
        %1939 = vrot.lane.b32.xlu0 %v1700, 24
        %v1940 = vpop.permute.xlu0 %1939
        %1941 = vrot.lane.b32.xlu0 %v1701, 24
        %v1942 = vpop.permute.xlu0 %1941
        %1943 = vrot.lane.b32.xlu0 %v1702, 24
        %v1944 = vpop.permute.xlu0 %1943
        %1945 = vrot.lane.b32.xlu0 %v1703, 24
        %v1946 = vpop.permute.xlu0 %1945
        %1947 = vrot.lane.b32.xlu0 %v1704, 24
        %v1948 = vpop.permute.xlu0 %1947
        %1949 = vrot.lane.b32.xlu0 %v1705, 24
        %v1950 = vpop.permute.xlu0 %1949
        %1951 = vrot.lane.b32.xlu0 %v1706, 24
        %v1952 = vpop.permute.xlu0 %1951
        %1953 = vrot.lane.b32.xlu0 %v1707, 24
        %v1954 = vpop.permute.xlu0 %1953
        %1955 = vrot.lane.b32.xlu0 %v1708, 24
        %v1956 = vpop.permute.xlu0 %1955
        %1957 = vrot.lane.b32.xlu0 %v1709, 24
        %v1958 = vpop.permute.xlu0 %1957
        %1959 = vrot.lane.b32.xlu0 %v1710, 24
        %v1960 = vpop.permute.xlu0 %1959
        %1961 = vrot.lane.b32.xlu0 %v1711, 24
        %v1962 = vpop.permute.xlu0 %1961
        %1963 = vrot.lane.b32.xlu0 %v1712, 24
        %v1964 = vpop.permute.xlu0 %1963
        %2007 = vrot.lane.b32.xlu0 %v1713, 32
        %v2008 = vpop.permute.xlu0 %2007
        %2009 = vrot.lane.b32.xlu0 %v1714, 32
        %v2010 = vpop.permute.xlu0 %2009
        %2011 = vrot.lane.b32.xlu0 %v1715, 32
        %v2012 = vpop.permute.xlu0 %2011
        %2013 = vrot.lane.b32.xlu0 %v1716, 32
        %v2014 = vpop.permute.xlu0 %2013
        %2015 = vrot.lane.b32.xlu0 %v1717, 32
        %v2016 = vpop.permute.xlu0 %2015
        %2017 = vrot.lane.b32.xlu0 %v1718, 32
        %v2018 = vpop.permute.xlu0 %2017
        %2019 = vrot.lane.b32.xlu0 %v1719, 32
        %v2020 = vpop.permute.xlu0 %2019
        %2021 = vrot.lane.b32.xlu0 %v1720, 32
        %v2022 = vpop.permute.xlu0 %2021
        %2023 = vrot.lane.b32.xlu0 %v1721, 32
        %v2024 = vpop.permute.xlu0 %2023
        %2025 = vrot.lane.b32.xlu0 %v1722, 32
        %v2026 = vpop.permute.xlu0 %2025
        %2027 = vrot.lane.b32.xlu0 %v1723, 32
        %v2028 = vpop.permute.xlu0 %2027
        %2029 = vrot.lane.b32.xlu0 %v1724, 32
        %v2030 = vpop.permute.xlu0 %2029
        %2031 = vrot.lane.b32.xlu0 %v1725, 32
        %v2032 = vpop.permute.xlu0 %2031
        %2033 = vrot.lane.b32.xlu0 %v1726, 32
        %v2034 = vpop.permute.xlu0 %2033
        %2035 = vrot.lane.b32.xlu0 %v1727, 32
        %v2036 = vpop.permute.xlu0 %2035
        %2037 = vrot.lane.b32.xlu0 %v1728, 32
        %v2038 = vpop.permute.xlu0 %2037
        %2039 = vrot.lane.b32.xlu0 %v1729, 32
        %v2040 = vpop.permute.xlu0 %2039
        %2041 = vrot.lane.b32.xlu0 %v1730, 32
        %v2042 = vpop.permute.xlu0 %2041
        %2043 = vrot.lane.b32.xlu0 %v1731, 32
        %v2044 = vpop.permute.xlu0 %2043
        %2045 = vrot.lane.b32.xlu0 %v1732, 32
        %v2046 = vpop.permute.xlu0 %2045
        %2047 = vrot.lane.b32.xlu0 %v1733, 32
        %v2048 = vpop.permute.xlu0 %2047
        %v2070 = vsel %vm1563, %v1629, %v1756
        %v2071 = vsel %vm1563, %v1630, %v1758
        %v2072 = vsel %vm1563, %v1631, %v1760
        %v2073 = vsel %vm1563, %v1632, %v1762
        %v2074 = vsel %vm1563, %v1633, %v1764
        %v2075 = vsel %vm1563, %v1634, %v1766
        %v2076 = vsel %vm1563, %v1635, %v1768
        %v2077 = vsel %vm1563, %v1636, %v1770
        %v2078 = vsel %vm1563, %v1637, %v1772
        %v2079 = vsel %vm1563, %v1638, %v1774
        %v2080 = vsel %vm1563, %v1639, %v1776
        %v2081 = vsel %vm1563, %v1640, %v1778
        %v2082 = vsel %vm1563, %v1641, %v1780
        %v2083 = vsel %vm1563, %v1642, %v1782
        %v2084 = vsel %vm1563, %v1643, %v1784
        %v2085 = vsel %vm1563, %v1644, %v1786
        %v2086 = vsel %vm1563, %v1645, %v1788
        %v2087 = vsel %vm1563, %v1646, %v1790
        %v2088 = vsel %vm1563, %v1647, %v1792
        %v2089 = vsel %vm1563, %v1648, %v1794
        %v2090 = vsel %vm1563, %v1649, %v1796
        %vm2091 = vcmask 130048
        %v2092 = vsel %vm2091, %v2070, %v1840
        %v2093 = vsel %vm2091, %v2071, %v1842
        %v2094 = vsel %vm2091, %v2072, %v1844
        %v2095 = vsel %vm2091, %v2073, %v1846
        %v2096 = vsel %vm2091, %v2074, %v1848
        %v2097 = vsel %vm2091, %v2075, %v1850
        %v2098 = vsel %vm2091, %v2076, %v1852
        %v2099 = vsel %vm2091, %v2077, %v1854
        %v2100 = vsel %vm2091, %v2078, %v1856
        %v2101 = vsel %vm2091, %v2079, %v1858
        %v2102 = vsel %vm2091, %v2080, %v1860
        %v2103 = vsel %vm2091, %v2081, %v1862
        %v2104 = vsel %vm2091, %v2082, %v1864
        %v2105 = vsel %vm2091, %v2083, %v1866
        %v2106 = vsel %vm2091, %v2084, %v1868
        %v2107 = vsel %vm2091, %v2085, %v1870
        %v2108 = vsel %vm2091, %v2086, %v1872
        %v2109 = vsel %vm2091, %v2087, %v1874
        %v2110 = vsel %vm2091, %v2088, %v1876
        %v2111 = vsel %vm2091, %v2089, %v1878
        %v2112 = vsel %vm2091, %v2090, %v1880
        %vm2113 = vcmask 195584
        %v2114 = vsel %vm2113, %v2092, %v1924
        %v2115 = vsel %vm2113, %v2093, %v1926
        %v2116 = vsel %vm2113, %v2094, %v1928
        %v2117 = vsel %vm2113, %v2095, %v1930
        %v2118 = vsel %vm2113, %v2096, %v1932
        %v2119 = vsel %vm2113, %v2097, %v1934
        %v2120 = vsel %vm2113, %v2098, %v1936
        %v2121 = vsel %vm2113, %v2099, %v1938
        %v2122 = vsel %vm2113, %v2100, %v1940
        %v2123 = vsel %vm2113, %v2101, %v1942
        %v2124 = vsel %vm2113, %v2102, %v1944
        %v2125 = vsel %vm2113, %v2103, %v1946
        %v2126 = vsel %vm2113, %v2104, %v1948
        %v2127 = vsel %vm2113, %v2105, %v1950
        %v2128 = vsel %vm2113, %v2106, %v1952
        %v2129 = vsel %vm2113, %v2107, %v1954
        %v2130 = vsel %vm2113, %v2108, %v1956
        %v2131 = vsel %vm2113, %v2109, %v1958
        %v2132 = vsel %vm2113, %v2110, %v1960
        %v2133 = vsel %vm2113, %v2111, %v1962
        %v2134 = vsel %vm2113, %v2112, %v1964
        %vm2135 = vcmask 261120
        %v2136 = vsel %vm2135, %v2114, %v2008
        %v2137 = vsel %vm2135, %v2115, %v2010
        %v2138 = vsel %vm2135, %v2116, %v2012
        %v2139 = vsel %vm2135, %v2117, %v2014
        %v2140 = vsel %vm2135, %v2118, %v2016
        %v2141 = vsel %vm2135, %v2119, %v2018
        %v2142 = vsel %vm2135, %v2120, %v2020
        %v2143 = vsel %vm2135, %v2121, %v2022
        %v2144 = vsel %vm2135, %v2122, %v2024
        %v2145 = vsel %vm2135, %v2123, %v2026
        %v2146 = vsel %vm2135, %v2124, %v2028
        %v2147 = vsel %vm2135, %v2125, %v2030
        %v2148 = vsel %vm2135, %v2126, %v2032
        %v2149 = vsel %vm2135, %v2127, %v2034
        %v2150 = vsel %vm2135, %v2128, %v2036
        %v2151 = vsel %vm2135, %v2129, %v2038
        %v2152 = vsel %vm2135, %v2130, %v2040
        %v2153 = vsel %vm2135, %v2131, %v2042
        %v2154 = vsel %vm2135, %v2132, %v2044
        %v2155 = vsel %vm2135, %v2133, %v2046
        %v2156 = vsel %vm2135, %v2134, %v2048
        %v2157 = vld [vmem:[%s3] sm:$0xff]
        %v2158 = vld [vmem:[%s3 + $0x8] sm:$0xff]
        %v2159 = vld [vmem:[%s3 + $0x10] sm:$0xff]
        %v2160 = vld [vmem:[%s3 + $0x18] sm:$0xff]
        %v2161 = vld [vmem:[%s3 + $0x20] sm:$0xff]
        %v2162 = vld [vmem:[%s4] sm:$0x1]
        %v2164 = vlaneseq
        %v2165 = vshrl.u32 %v2164, 7
        %v2166 = vsub.s32 0, %v2165
        %v2167 = vrot.slane %v2162, %v2166
        %vm2169 = vcmask 326656
        %v2171 = vsel %vm2169, %v2136, 0
        %v2174 = vsel %vm2169, %v2137, 0
        %v2177 = vsel %vm2169, %v2138, 0
        %v2180 = vsel %vm2169, %v2139, 0
        %v2183 = vsel %vm2169, %v2140, 0
        %v2186 = vsel %vm2169, %v2141, 0
        %v2189 = vsel %vm2169, %v2142, 0
        %v2192 = vsel %vm2169, %v2143, 0
        %v2195 = vsel %vm2169, %v2144, 0
        %v2198 = vsel %vm2169, %v2145, 0
        %v2201 = vsel %vm2169, %v2146, 0
        %v2204 = vsel %vm2169, %v2147, 0
        %v2207 = vsel %vm2169, %v2148, 0
        %v2210 = vsel %vm2169, %v2149, 0
        %v2213 = vsel %vm2169, %v2150, 0
        %v2216 = vsel %vm2169, %v2151, 0
        %v2219 = vsel %vm2169, %v2152, 0
        %v2222 = vsel %vm2169, %v2153, 0
        %v2225 = vsel %vm2169, %v2154, 0
        %v2228 = vsel %vm2169, %v2155, 0
        %v2231 = vsel %vm2169, %v2156, 0
        %2233 = vmatprep.subr.mxu0 0.0
        %2234 = vmatpush1.msra.mxu0 %v2157
        %2235 = vmatprep.subr.mxu0 0.0
        %2236 = vmatpush1.msra.mxu0 %v2158
        %2237 = vmatprep.subr.mxu0 0.0
        %2238 = vmatpush1.msra.mxu0 %v2159
        %2239 = vmatprep.subr.mxu0 0.0
        %2240 = vmatpush1.msra.mxu0 %v2160
        %2241 = vmatprep.subr.mxu0 0.0
        %2242 = vmatpush1.msra.mxu0 %v2161
        %2243 = vmatprep.subr.mxu0 0.0
        %2244 = vmatpush1.msra.mxu0 0.0
        %2245 = vmatprep.subr.mxu0 0.0
        %2246 = vmatpush1.msra.mxu0 0.0
        %2247 = vmatprep.subr.mxu0 0.0
        %2248 = vmatpush1.msra.mxu0 0.0
        %2249 = vmatprep.subr.mxu0 0.0
        %2250 = vmatpush1.msra.mxu0 0.0
        %2251 = vmatprep.subr.mxu0 0.0
        %2252 = vmatpush1.msra.mxu0 0.0
        %2253 = vmatprep.subr.mxu0 0.0
        %2254 = vmatpush1.msra.mxu0 0.0
        %2255 = vmatprep.subr.mxu0 0.0
        %2256 = vmatpush1.msra.mxu0 0.0
        %2257 = vmatprep.subr.mxu0 0.0
        %2258 = vmatpush1.msra.mxu0 0.0
        %2259 = vmatprep.subr.mxu0 0.0
        %2260 = vmatpush1.msra.mxu0 0.0
        %2261 = vmatprep.subr.mxu0 0.0
        %2262 = vmatpush1.msra.mxu0 0.0
        %2263 = vmatprep.subr.mxu0 0.0
        %2264 = vmatpush1.msra.mxu0 0.0
        %2265 = vmatprep.subr.mxu0 0.0
        %2266 = vmatpush1.msra.mxu0 0.0
        %2267 = vmatprep.subr.mxu0 0.0
        %2268 = vmatpush1.msra.mxu0 0.0
        %2269 = vmatprep.subr.mxu0 0.0
        %2270 = vmatpush1.msra.mxu0 0.0
        %2271 = vmatprep.subr.mxu0 0.0
        %2272 = vmatpush1.msra.mxu0 0.0
        %2273 = vmatprep.subr.mxu0 0.0
        %2274 = vmatpush1.msra.mxu0 0.0
        %2275 = vmatprep.subr.mxu0 0.0
        %2276 = vmatpush1.msra.mxu0 0.0
        %2277 = vmatprep.subr.mxu0 0.0
        %2278 = vmatpush1.msra.mxu0 0.0
        %2279 = vmatprep.subr.mxu0 0.0
        %2280 = vmatpush1.msra.mxu0 0.0
        %2281 = vmatprep.subr.mxu0 0.0
        %2282 = vmatpush1.msra.mxu0 0.0
        %2283 = vmatprep.subr.mxu0 0.0
        %2284 = vmatpush1.msra.mxu0 0.0
        %2285 = vmatprep.subr.mxu0 0.0
        %2286 = vmatpush1.msra.mxu0 0.0
        %2287 = vmatprep.subr.mxu0 0.0
        %2288 = vmatpush1.msra.mxu0 0.0
        %2289 = vmatprep.subr.mxu0 0.0
        %2290 = vmatpush1.msra.mxu0 0.0
        %2291 = vmatprep.subr.mxu0 0.0
        %2292 = vmatpush1.msra.mxu0 0.0
        %2293 = vmatprep.subr.mxu0 0.0
        %2294 = vmatpush1.msra.mxu0 0.0
        %2295 = vmatprep.subr.mxu0 0.0
        %2296 = vmatpush1.msra.mxu0 0.0
        %2297 = vmatprep.mubr.f32.mxu0 0.0
        %2298 = vmatmul.mubr.f32.gmra.mrb[0].mxu0 %v2171
        %v2299 = vpop.f32.mrb[0].mxu0
        %v2300 = vadd.f32 %v2167, %v2299
        %v2301 = vpop.f32.mrb[0].mxu0
        %2302 = vmatprep.mubr.f32.mxu0 0.0
        %2303 = vmatmul.mubr.f32.gmra.mrb[0].mxu0 %v2174
        %v2304 = vpop.f32.mrb[0].mxu0
        %v2305 = vadd.f32 %v2167, %v2304
        %v2306 = vpop.f32.mrb[0].mxu0
        %2307 = vmatprep.mubr.f32.mxu0 0.0
        %2308 = vmatmul.mubr.f32.gmra.mrb[0].mxu0 %v2177
        %v2309 = vpop.f32.mrb[0].mxu0
        %v2310 = vadd.f32 %v2167, %v2309
        %v2311 = vpop.f32.mrb[0].mxu0
        %2312 = vmatprep.mubr.f32.mxu0 0.0
        %2313 = vmatmul.mubr.f32.gmra.mrb[0].mxu0 %v2180
        %v2314 = vpop.f32.mrb[0].mxu0
        %v2315 = vadd.f32 %v2167, %v2314
        %v2316 = vpop.f32.mrb[0].mxu0
        %2317 = vmatprep.mubr.f32.mxu0 0.0
        %2318 = vmatmul.mubr.f32.gmra.mrb[0].mxu0 %v2183
        %v2319 = vpop.f32.mrb[0].mxu0
        %v2320 = vadd.f32 %v2167, %v2319
        %v2321 = vpop.f32.mrb[0].mxu0
        %2322 = vmatprep.mubr.f32.mxu0 0.0
        %2323 = vmatmul.mubr.f32.gmra.mrb[0].mxu0 %v2186
        %v2324 = vpop.f32.mrb[0].mxu0
        %v2325 = vadd.f32 %v2167, %v2324
        %v2326 = vpop.f32.mrb[0].mxu0
        %2327 = vmatprep.mubr.f32.mxu0 0.0
        %2328 = vmatmul.mubr.f32.gmra.mrb[0].mxu0 %v2189
        %v2329 = vpop.f32.mrb[0].mxu0
        %v2330 = vadd.f32 %v2167, %v2329
        %v2331 = vpop.f32.mrb[0].mxu0
        %2332 = vmatprep.mubr.f32.mxu0 0.0
        %2333 = vmatmul.mubr.f32.gmra.mrb[0].mxu0 %v2192
        %v2334 = vpop.f32.mrb[0].mxu0
        %v2335 = vadd.f32 %v2167, %v2334
        %v2336 = vpop.f32.mrb[0].mxu0
        %2337 = vmatprep.mubr.f32.mxu0 0.0
        %2338 = vmatmul.mubr.f32.gmra.mrb[0].mxu0 %v2195
        %v2339 = vpop.f32.mrb[0].mxu0
        %v2340 = vadd.f32 %v2167, %v2339
        %v2341 = vpop.f32.mrb[0].mxu0
        %2342 = vmatprep.mubr.f32.mxu0 0.0
        %2343 = vmatmul.mubr.f32.gmra.mrb[0].mxu0 %v2198
        %v2344 = vpop.f32.mrb[0].mxu0
        %v2345 = vadd.f32 %v2167, %v2344
        %v2346 = vpop.f32.mrb[0].mxu0
        %2347 = vmatprep.mubr.f32.mxu0 0.0
        %2348 = vmatmul.mubr.f32.gmra.mrb[0].mxu0 %v2201
        %v2349 = vpop.f32.mrb[0].mxu0
        %v2350 = vadd.f32 %v2167, %v2349
        %v2351 = vpop.f32.mrb[0].mxu0
        %2352 = vmatprep.mubr.f32.mxu0 0.0
        %2353 = vmatmul.mubr.f32.gmra.mrb[0].mxu0 %v2204
        %v2354 = vpop.f32.mrb[0].mxu0
        %v2355 = vadd.f32 %v2167, %v2354
        %v2356 = vpop.f32.mrb[0].mxu0
        %2357 = vmatprep.mubr.f32.mxu0 0.0
        %2358 = vmatmul.mubr.f32.gmra.mrb[0].mxu0 %v2207
        %v2359 = vpop.f32.mrb[0].mxu0
        %v2360 = vadd.f32 %v2167, %v2359
        %v2361 = vpop.f32.mrb[0].mxu0
        %2362 = vmatprep.mubr.f32.mxu0 0.0
        %2363 = vmatmul.mubr.f32.gmra.mrb[0].mxu0 %v2210
        %v2364 = vpop.f32.mrb[0].mxu0
        %v2365 = vadd.f32 %v2167, %v2364
        %v2366 = vpop.f32.mrb[0].mxu0
        %2367 = vmatprep.mubr.f32.mxu0 0.0
        %2368 = vmatmul.mubr.f32.gmra.mrb[0].mxu0 %v2213
        %v2369 = vpop.f32.mrb[0].mxu0
        %v2370 = vadd.f32 %v2167, %v2369
        %v2371 = vpop.f32.mrb[0].mxu0
        %2372 = vmatprep.mubr.f32.mxu0 0.0
        %2373 = vmatmul.mubr.f32.gmra.mrb[0].mxu0 %v2216
        %v2374 = vpop.f32.mrb[0].mxu0
        %v2375 = vadd.f32 %v2167, %v2374
        %v2376 = vpop.f32.mrb[0].mxu0
        %2377 = vmatprep.mubr.f32.mxu0 0.0
        %2378 = vmatmul.mubr.f32.gmra.mrb[0].mxu0 %v2219
        %v2379 = vpop.f32.mrb[0].mxu0
        %v2380 = vadd.f32 %v2167, %v2379
        %v2381 = vpop.f32.mrb[0].mxu0
        %2382 = vmatprep.mubr.f32.mxu0 0.0
        %2383 = vmatmul.mubr.f32.gmra.mrb[0].mxu0 %v2222
        %v2384 = vpop.f32.mrb[0].mxu0
        %v2385 = vadd.f32 %v2167, %v2384
        %v2386 = vpop.f32.mrb[0].mxu0
        %2387 = vmatprep.mubr.f32.mxu0 0.0
        %2388 = vmatmul.mubr.f32.gmra.mrb[0].mxu0 %v2225
        %v2389 = vpop.f32.mrb[0].mxu0
        %v2390 = vadd.f32 %v2167, %v2389
        %v2391 = vpop.f32.mrb[0].mxu0
        %2392 = vmatprep.mubr.f32.mxu0 0.0
        %2393 = vmatmul.mubr.f32.gmra.mrb[0].mxu0 %v2228
        %v2394 = vpop.f32.mrb[0].mxu0
        %v2395 = vadd.f32 %v2167, %v2394
        %v2396 = vpop.f32.mrb[0].mxu0
        %2397 = vmatprep.mubr.f32.mxu0 0.0
        %2398 = vmatmul.mubr.f32.gmra.mrb[0].mxu0 %v2231
        %v2399 = vpop.f32.mrb[0].mxu0
        %v2400 = vadd.f32 %v2167, %v2399
        %v2401 = vpop.f32.mrb[0].mxu0
        %2402 = vdwg.mxu0
        %v2403 = vmul.f32 %v2300, 0.01
        %v2404 = vmul.f32 %v2305, 0.01
        %v2405 = vmul.f32 %v2310, 0.01
        %v2406 = vmul.f32 %v2315, 0.01
        %v2407 = vmul.f32 %v2320, 0.01
        %v2408 = vmul.f32 %v2325, 0.01
        %v2409 = vmul.f32 %v2330, 0.01
        %v2410 = vmul.f32 %v2335, 0.01
        %v2411 = vmul.f32 %v2340, 0.01
        %v2412 = vmul.f32 %v2345, 0.01
        %v2413 = vmul.f32 %v2350, 0.01
        %v2414 = vmul.f32 %v2355, 0.01
        %v2415 = vmul.f32 %v2360, 0.01
        %v2416 = vmul.f32 %v2365, 0.01
        %v2417 = vmul.f32 %v2370, 0.01
        %v2418 = vmul.f32 %v2375, 0.01
        %v2419 = vmul.f32 %v2380, 0.01
        %v2420 = vmul.f32 %v2385, 0.01
        %v2421 = vmul.f32 %v2390, 0.01
        %v2422 = vmul.f32 %v2395, 0.01
        %v2423 = vmul.f32 %v2400, 0.01
        %v2424 = vmax.f32 %v2300, %v2403
        %v2425 = vmax.f32 %v2305, %v2404
        %v2426 = vmax.f32 %v2310, %v2405
        %v2427 = vmax.f32 %v2315, %v2406
        %v2428 = vmax.f32 %v2320, %v2407
        %v2429 = vmax.f32 %v2325, %v2408
        %v2430 = vmax.f32 %v2330, %v2409
        %v2431 = vmax.f32 %v2335, %v2410
        %v2432 = vmax.f32 %v2340, %v2411
        %v2433 = vmax.f32 %v2345, %v2412
        %v2434 = vmax.f32 %v2350, %v2413
        %v2435 = vmax.f32 %v2355, %v2414
        %v2436 = vmax.f32 %v2360, %v2415
        %v2437 = vmax.f32 %v2365, %v2416
        %v2438 = vmax.f32 %v2370, %v2417
        %v2439 = vmax.f32 %v2375, %v2418
        %v2440 = vmax.f32 %v2380, %v2419
        %v2441 = vmax.f32 %v2385, %v2420
        %v2442 = vmax.f32 %v2390, %v2421
        %v2443 = vmax.f32 %v2395, %v2422
        %v2444 = vmax.f32 %v2400, %v2423
        %2445 = vst.msk [vmem:[#allocation8] sm:$0xff] %vm2091, %v2424
        %2446 = vst.msk [vmem:[#allocation8 + $0x8] sm:$0xff] %vm2091, %v2425
        %2447 = vst.msk [vmem:[#allocation8 + $0x10] sm:$0xff] %vm2091, %v2426
        %2448 = vst.msk [vmem:[#allocation8 + $0x18] sm:$0xff] %vm2091, %v2427
        %2449 = vst.msk [vmem:[#allocation8 + $0x20] sm:$0xff] %vm2091, %v2428
        %2450 = vst.msk [vmem:[#allocation8 + $0x28] sm:$0xff] %vm2091, %v2429
        %2451 = vst.msk [vmem:[#allocation8 + $0x30] sm:$0xff] %vm2091, %v2430
        %2452 = vst.msk [vmem:[#allocation8 + $0x38] sm:$0xff] %vm2091, %v2431
        %2453 = vst.msk [vmem:[#allocation8 + $0x40] sm:$0xff] %vm2091, %v2432
        %2454 = vst.msk [vmem:[#allocation8 + $0x48] sm:$0xff] %vm2091, %v2433
        %2455 = vst.msk [vmem:[#allocation8 + $0x50] sm:$0xff] %vm2091, %v2434
        %2456 = vst.msk [vmem:[#allocation8 + $0x58] sm:$0xff] %vm2091, %v2435
        %2457 = vst.msk [vmem:[#allocation8 + $0x60] sm:$0xff] %vm2091, %v2436
        %2458 = vst.msk [vmem:[#allocation8 + $0x68] sm:$0xff] %vm2091, %v2437
        %2459 = vst.msk [vmem:[#allocation8 + $0x70] sm:$0xff] %vm2091, %v2438
        %2460 = vst.msk [vmem:[#allocation8 + $0x78] sm:$0xff] %vm2091, %v2439
        %2461 = vst.msk [vmem:[#allocation8 + $0x80] sm:$0xff] %vm2091, %v2440
        %2462 = vst.msk [vmem:[#allocation8 + $0x88] sm:$0xff] %vm2091, %v2441
        %2463 = vst.msk [vmem:[#allocation8 + $0x90] sm:$0xff] %vm2091, %v2442
        %2464 = vst.msk [vmem:[#allocation8 + $0x98] sm:$0xff] %vm2091, %v2443
        %vm2465 = vcmask 125952
        %2466 = vst.msk [vmem:[#allocation8 + $0xa0] sm:$0xf] %vm2465, %v2444
        %v2467 = vld [vmem:[#allocation8] ss:$2 sm:$0xff]
        %s2468 = scalar_lea.vmem [#allocation8], 16
        %v2469 = vld [vmem:[%s2468] ss:$2 sm:$0xff]
        %s2470 = scalar_lea.vmem [#allocation8], 32
        %v2471 = vld [vmem:[%s2470] ss:$2 sm:$0xff]
        %s2472 = scalar_lea.vmem [#allocation8], 48
        %v2473 = vld [vmem:[%s2472] ss:$2 sm:$0x3]
        %s2474 = scalar_lea.vmem [#allocation8], 1
        %v2475 = vld [vmem:[%s2474] ss:$2 sm:$0xff]
        %s2476 = scalar_lea.vmem [#allocation8], 17
        %v2477 = vld [vmem:[%s2476] ss:$2 sm:$0xff]
        %s2478 = scalar_lea.vmem [#allocation8], 33
        %v2479 = vld [vmem:[%s2478] ss:$2 sm:$0xff]
        %s2480 = scalar_lea.vmem [#allocation8], 49
        %v2481 = vld [vmem:[%s2480] ss:$2 sm:$0x3]
        %v2482 = vmax.f32 %v2467, %v2475
        %v2483 = vmax.f32 %v2469, %v2477
        %v2484 = vmax.f32 %v2471, %v2479
        %v2485 = vmax.f32 %v2473, %v2481
        %2486 = vst.msk [vmem:[#allocation3 + $0x2] sm:$0xff] %vm2091, %v2482
        %2487 = vst.msk [vmem:[#allocation3 + $0xa] sm:$0xff] %vm2091, %v2483
        %2488 = vst.msk [vmem:[#allocation3 + $0x12] sm:$0xff] %vm2091, %v2484
        %vm2489 = vcmask 123904
        %2490 = vst.msk [vmem:[#allocation3 + $0x1a] sm:$0x3] %vm2489, %v2485
        %2491 = vst.msk [vmem:[#allocation3] sm:$0x3] %vm2489, 0.0
        %2492 = vst.msk [vmem:[#allocation3 + $0x1c] sm:$0x3] %vm2489, 0.0
        %s2493 = scalar_lea.vmem [#allocation8], 56
        %v2494 = vld [vmem:[%s2493] ss:$2 sm:$0xff]
        %s2495 = scalar_lea.vmem [#allocation8], 72
        %v2496 = vld [vmem:[%s2495] ss:$2 sm:$0xff]
        %s2497 = scalar_lea.vmem [#allocation8], 88
        %v2498 = vld [vmem:[%s2497] ss:$2 sm:$0xff]
        %s2499 = scalar_lea.vmem [#allocation8], 104
        %v2500 = vld [vmem:[%s2499] ss:$2 sm:$0x3]
        %s2501 = scalar_lea.vmem [#allocation8], 57
        %v2502 = vld [vmem:[%s2501] ss:$2 sm:$0xff]
        %s2503 = scalar_lea.vmem [#allocation8], 73
        %v2504 = vld [vmem:[%s2503] ss:$2 sm:$0xff]
        %s2505 = scalar_lea.vmem [#allocation8], 89
        %v2506 = vld [vmem:[%s2505] ss:$2 sm:$0xff]
        %s2507 = scalar_lea.vmem [#allocation8], 105
        %v2508 = vld [vmem:[%s2507] ss:$2 sm:$0x3]
        %v2509 = vmax.f32 %v2494, %v2502
        %v2510 = vmax.f32 %v2496, %v2504
        %v2511 = vmax.f32 %v2498, %v2506
        %v2512 = vmax.f32 %v2500, %v2508
        %2513 = vst.msk [vmem:[#allocation3 + $0x22] sm:$0xff] %vm2091, %v2509
        %2514 = vst.msk [vmem:[#allocation3 + $0x2a] sm:$0xff] %vm2091, %v2510
        %2515 = vst.msk [vmem:[#allocation3 + $0x32] sm:$0xff] %vm2091, %v2511
        %2516 = vst.msk [vmem:[#allocation3 + $0x3a] sm:$0x3] %vm2489, %v2512
        %2517 = vst.msk [vmem:[#allocation3 + $0x20] sm:$0x3] %vm2489, 0.0
        %2518 = vst.msk [vmem:[#allocation3 + $0x3c] sm:$0x3] %vm2489, 0.0
        %s2519 = scalar_lea.vmem [#allocation8], 112
        %v2520 = vld [vmem:[%s2519] ss:$2 sm:$0xff]
        %s2521 = scalar_lea.vmem [#allocation8], 128
        %v2522 = vld [vmem:[%s2521] ss:$2 sm:$0xff]
        %s2523 = scalar_lea.vmem [#allocation8], 144
        %v2524 = vld [vmem:[%s2523] ss:$2 sm:$0xff]
        %s2525 = scalar_lea.vmem [#allocation8], 160
        %v2526 = vld [vmem:[%s2525] ss:$2 sm:$0x3]
        %s2527 = scalar_lea.vmem [#allocation8], 113
        %v2528 = vld [vmem:[%s2527] ss:$2 sm:$0xff]
        %s2529 = scalar_lea.vmem [#allocation8], 129
        %v2530 = vld [vmem:[%s2529] ss:$2 sm:$0xff]
        %s2531 = scalar_lea.vmem [#allocation8], 145
        %v2532 = vld [vmem:[%s2531] ss:$2 sm:$0xff]
        %s2533 = scalar_lea.vmem [#allocation8], 161
        %v2534 = vld [vmem:[%s2533] ss:$2 sm:$0x3]
        %v2535 = vmax.f32 %v2520, %v2528
        %v2536 = vmax.f32 %v2522, %v2530
        %v2537 = vmax.f32 %v2524, %v2532
        %v2538 = vmax.f32 %v2526, %v2534
        %2539 = vst.msk [vmem:[#allocation3 + $0x42] sm:$0xff] %vm2091, %v2535
        %2540 = vst.msk [vmem:[#allocation3 + $0x4a] sm:$0xff] %vm2091, %v2536
        %2541 = vst.msk [vmem:[#allocation3 + $0x52] sm:$0xff] %vm2091, %v2537
        %2542 = vst.msk [vmem:[#allocation3 + $0x5a] sm:$0x3] %vm2489, %v2538
        %2543 = vst.msk [vmem:[#allocation3 + $0x40] sm:$0x3] %vm2489, 0.0
        %2544 = vst.msk [vmem:[#allocation3 + $0x5c] sm:$0x3] %vm2489, 0.0
        %v2545 = vld [vmem:[#allocation3] sm:$0xff]
        %v2546 = vld [vmem:[#allocation3 + $0x8] sm:$0xff]
        %v2547 = vld [vmem:[#allocation3 + $0x10] sm:$0xff]
        %v2548 = vld [vmem:[#allocation3 + $0x18] sm:$0xff]
        %v2549 = vld [vmem:[#allocation3 + $0x20] sm:$0xff]
        %v2550 = vld [vmem:[#allocation3 + $0x28] sm:$0xff]
        %v2551 = vld [vmem:[#allocation3 + $0x30] sm:$0xff]
        %v2552 = vld [vmem:[#allocation3 + $0x38] sm:$0xff]
        %v2553 = vld [vmem:[#allocation3 + $0x40] sm:$0xff]
        %v2554 = vld [vmem:[#allocation3 + $0x48] sm:$0xff]
        %v2555 = vld [vmem:[#allocation3 + $0x50] sm:$0xff]
        %v2556 = vld [vmem:[#allocation3 + $0x58] sm:$0xf]
        %v2557 = vld [vmem:[#allocation3 + $0x1] sm:$0xff]
        %v2558 = vld [vmem:[#allocation3 + $0x9] sm:$0xff]
        %v2559 = vld [vmem:[#allocation3 + $0x11] sm:$0xff]
        %v2560 = vld [vmem:[#allocation3 + $0x19] sm:$0xff]
        %v2561 = vld [vmem:[#allocation3 + $0x21] sm:$0xff]
        %v2562 = vld [vmem:[#allocation3 + $0x29] sm:$0xff]
        %v2563 = vld [vmem:[#allocation3 + $0x31] sm:$0xff]
        %v2564 = vld [vmem:[#allocation3 + $0x39] sm:$0xff]
        %v2565 = vld [vmem:[#allocation3 + $0x41] sm:$0xff]
        %v2566 = vld [vmem:[#allocation3 + $0x49] sm:$0xff]
        %v2567 = vld [vmem:[#allocation3 + $0x51] sm:$0xff]
        %v2568 = vld [vmem:[#allocation3 + $0x59] sm:$0xf]
        %v2569 = vld [vmem:[#allocation3 + $0x2] sm:$0xff]
        %v2570 = vld [vmem:[#allocation3 + $0xa] sm:$0xff]
        %v2571 = vld [vmem:[#allocation3 + $0x12] sm:$0xff]
        %v2572 = vld [vmem:[#allocation3 + $0x1a] sm:$0xff]
        %v2573 = vld [vmem:[#allocation3 + $0x22] sm:$0xff]
        %v2574 = vld [vmem:[#allocation3 + $0x2a] sm:$0xff]
        %v2575 = vld [vmem:[#allocation3 + $0x32] sm:$0xff]
        %v2576 = vld [vmem:[#allocation3 + $0x3a] sm:$0xff]
        %v2577 = vld [vmem:[#allocation3 + $0x42] sm:$0xff]
        %v2578 = vld [vmem:[#allocation3 + $0x4a] sm:$0xff]
        %v2579 = vld [vmem:[#allocation3 + $0x52] sm:$0xff]
        %v2580 = vld [vmem:[#allocation3 + $0x5a] sm:$0xf]
        %v2581 = vld [vmem:[#allocation3 + $0x3] sm:$0xff]
        %v2582 = vld [vmem:[#allocation3 + $0xb] sm:$0xff]
        %v2583 = vld [vmem:[#allocation3 + $0x13] sm:$0xff]
        %v2584 = vld [vmem:[#allocation3 + $0x1b] sm:$0xff]
        %v2585 = vld [vmem:[#allocation3 + $0x23] sm:$0xff]
        %v2586 = vld [vmem:[#allocation3 + $0x2b] sm:$0xff]
        %v2587 = vld [vmem:[#allocation3 + $0x33] sm:$0xff]
        %v2588 = vld [vmem:[#allocation3 + $0x3b] sm:$0xff]
        %v2589 = vld [vmem:[#allocation3 + $0x43] sm:$0xff]
        %v2590 = vld [vmem:[#allocation3 + $0x4b] sm:$0xff]
        %v2591 = vld [vmem:[#allocation3 + $0x53] sm:$0xff]
        %v2592 = vld [vmem:[#allocation3 + $0x5b] sm:$0xf]
        %v2593 = vld [vmem:[#allocation3 + $0x4] sm:$0xff]
        %v2594 = vld [vmem:[#allocation3 + $0xc] sm:$0xff]
        %v2595 = vld [vmem:[#allocation3 + $0x14] sm:$0xff]
        %v2596 = vld [vmem:[#allocation3 + $0x1c] sm:$0xff]
        %v2597 = vld [vmem:[#allocation3 + $0x24] sm:$0xff]
        %v2598 = vld [vmem:[#allocation3 + $0x2c] sm:$0xff]
        %v2599 = vld [vmem:[#allocation3 + $0x34] sm:$0xff]
        %v2600 = vld [vmem:[#allocation3 + $0x3c] sm:$0xff]
        %v2601 = vld [vmem:[#allocation3 + $0x44] sm:$0xff]
        %v2602 = vld [vmem:[#allocation3 + $0x4c] sm:$0xff]
        %v2603 = vld [vmem:[#allocation3 + $0x54] sm:$0xff]
        %v2604 = vld [vmem:[#allocation3 + $0x5c] sm:$0xf]
        %2617 = vrot.lane.b32.xlu0 %v2557, 16
        %v2618 = vpop.permute.xlu0 %2617
        %2619 = vrot.lane.b32.xlu0 %v2558, 16
        %v2620 = vpop.permute.xlu0 %2619
        %2621 = vrot.lane.b32.xlu0 %v2559, 16
        %v2622 = vpop.permute.xlu0 %2621
        %2623 = vrot.lane.b32.xlu0 %v2560, 16
        %v2624 = vpop.permute.xlu0 %2623
        %2625 = vrot.lane.b32.xlu0 %v2561, 16
        %v2626 = vpop.permute.xlu0 %2625
        %2627 = vrot.lane.b32.xlu0 %v2562, 16
        %v2628 = vpop.permute.xlu0 %2627
        %2629 = vrot.lane.b32.xlu0 %v2563, 16
        %v2630 = vpop.permute.xlu0 %2629
        %2631 = vrot.lane.b32.xlu0 %v2564, 16
        %v2632 = vpop.permute.xlu0 %2631
        %2633 = vrot.lane.b32.xlu0 %v2565, 16
        %v2634 = vpop.permute.xlu0 %2633
        %2635 = vrot.lane.b32.xlu0 %v2566, 16
        %v2636 = vpop.permute.xlu0 %2635
        %2637 = vrot.lane.b32.xlu0 %v2567, 16
        %v2638 = vpop.permute.xlu0 %2637
        %2639 = vrot.lane.b32.xlu0 %v2568, 16
        %v2640 = vpop.permute.xlu0 %2639
        %2665 = vrot.lane.b32.xlu0 %v2569, 32
        %v2666 = vpop.permute.xlu0 %2665
        %2667 = vrot.lane.b32.xlu0 %v2570, 32
        %v2668 = vpop.permute.xlu0 %2667
        %2669 = vrot.lane.b32.xlu0 %v2571, 32
        %v2670 = vpop.permute.xlu0 %2669
        %2671 = vrot.lane.b32.xlu0 %v2572, 32
        %v2672 = vpop.permute.xlu0 %2671
        %2673 = vrot.lane.b32.xlu0 %v2573, 32
        %v2674 = vpop.permute.xlu0 %2673
        %2675 = vrot.lane.b32.xlu0 %v2574, 32
        %v2676 = vpop.permute.xlu0 %2675
        %2677 = vrot.lane.b32.xlu0 %v2575, 32
        %v2678 = vpop.permute.xlu0 %2677
        %2679 = vrot.lane.b32.xlu0 %v2576, 32
        %v2680 = vpop.permute.xlu0 %2679
        %2681 = vrot.lane.b32.xlu0 %v2577, 32
        %v2682 = vpop.permute.xlu0 %2681
        %2683 = vrot.lane.b32.xlu0 %v2578, 32
        %v2684 = vpop.permute.xlu0 %2683
        %2685 = vrot.lane.b32.xlu0 %v2579, 32
        %v2686 = vpop.permute.xlu0 %2685
        %2687 = vrot.lane.b32.xlu0 %v2580, 32
        %v2688 = vpop.permute.xlu0 %2687
        %2713 = vrot.lane.b32.xlu0 %v2581, 48
        %v2714 = vpop.permute.xlu0 %2713
        %2715 = vrot.lane.b32.xlu0 %v2582, 48
        %v2716 = vpop.permute.xlu0 %2715
        %2717 = vrot.lane.b32.xlu0 %v2583, 48
        %v2718 = vpop.permute.xlu0 %2717
        %2719 = vrot.lane.b32.xlu0 %v2584, 48
        %v2720 = vpop.permute.xlu0 %2719
        %2721 = vrot.lane.b32.xlu0 %v2585, 48
        %v2722 = vpop.permute.xlu0 %2721
        %2723 = vrot.lane.b32.xlu0 %v2586, 48
        %v2724 = vpop.permute.xlu0 %2723
        %2725 = vrot.lane.b32.xlu0 %v2587, 48
        %v2726 = vpop.permute.xlu0 %2725
        %2727 = vrot.lane.b32.xlu0 %v2588, 48
        %v2728 = vpop.permute.xlu0 %2727
        %2729 = vrot.lane.b32.xlu0 %v2589, 48
        %v2730 = vpop.permute.xlu0 %2729
        %2731 = vrot.lane.b32.xlu0 %v2590, 48
        %v2732 = vpop.permute.xlu0 %2731
        %2733 = vrot.lane.b32.xlu0 %v2591, 48
        %v2734 = vpop.permute.xlu0 %2733
        %2735 = vrot.lane.b32.xlu0 %v2592, 48
        %v2736 = vpop.permute.xlu0 %2735
        %2761 = vrot.lane.b32.xlu0 %v2593, 64
        %v2762 = vpop.permute.xlu0 %2761
        %2763 = vrot.lane.b32.xlu0 %v2594, 64
        %v2764 = vpop.permute.xlu0 %2763
        %2765 = vrot.lane.b32.xlu0 %v2595, 64
        %v2766 = vpop.permute.xlu0 %2765
        %2767 = vrot.lane.b32.xlu0 %v2596, 64
        %v2768 = vpop.permute.xlu0 %2767
        %2769 = vrot.lane.b32.xlu0 %v2597, 64
        %v2770 = vpop.permute.xlu0 %2769
        %2771 = vrot.lane.b32.xlu0 %v2598, 64
        %v2772 = vpop.permute.xlu0 %2771
        %2773 = vrot.lane.b32.xlu0 %v2599, 64
        %v2774 = vpop.permute.xlu0 %2773
        %2775 = vrot.lane.b32.xlu0 %v2600, 64
        %v2776 = vpop.permute.xlu0 %2775
        %2777 = vrot.lane.b32.xlu0 %v2601, 64
        %v2778 = vpop.permute.xlu0 %2777
        %2779 = vrot.lane.b32.xlu0 %v2602, 64
        %v2780 = vpop.permute.xlu0 %2779
        %2781 = vrot.lane.b32.xlu0 %v2603, 64
        %v2782 = vpop.permute.xlu0 %2781
        %2783 = vrot.lane.b32.xlu0 %v2604, 64
        %v2784 = vpop.permute.xlu0 %2783
        %v2797 = vsel %vm2091, %v2545, %v2618
        %v2798 = vsel %vm2091, %v2546, %v2620
        %v2799 = vsel %vm2091, %v2547, %v2622
        %v2800 = vsel %vm2091, %v2548, %v2624
        %v2801 = vsel %vm2091, %v2549, %v2626
        %v2802 = vsel %vm2091, %v2550, %v2628
        %v2803 = vsel %vm2091, %v2551, %v2630
        %v2804 = vsel %vm2091, %v2552, %v2632
        %v2805 = vsel %vm2091, %v2553, %v2634
        %v2806 = vsel %vm2091, %v2554, %v2636
        %v2807 = vsel %vm2091, %v2555, %v2638
        %v2808 = vsel %vm2091, %v2556, %v2640
        %v2809 = vsel %vm2135, %v2797, %v2666
        %v2810 = vsel %vm2135, %v2798, %v2668
        %v2811 = vsel %vm2135, %v2799, %v2670
        %v2812 = vsel %vm2135, %v2800, %v2672
        %v2813 = vsel %vm2135, %v2801, %v2674
        %v2814 = vsel %vm2135, %v2802, %v2676
        %v2815 = vsel %vm2135, %v2803, %v2678
        %v2816 = vsel %vm2135, %v2804, %v2680
        %v2817 = vsel %vm2135, %v2805, %v2682
        %v2818 = vsel %vm2135, %v2806, %v2684
        %v2819 = vsel %vm2135, %v2807, %v2686
        %v2820 = vsel %vm2135, %v2808, %v2688
        %vm2821 = vcmask 392192
        %v2822 = vsel %vm2821, %v2809, %v2714
        %v2823 = vsel %vm2821, %v2810, %v2716
        %v2824 = vsel %vm2821, %v2811, %v2718
        %v2825 = vsel %vm2821, %v2812, %v2720
        %v2826 = vsel %vm2821, %v2813, %v2722
        %v2827 = vsel %vm2821, %v2814, %v2724
        %v2828 = vsel %vm2821, %v2815, %v2726
        %v2829 = vsel %vm2821, %v2816, %v2728
        %v2830 = vsel %vm2821, %v2817, %v2730
        %v2831 = vsel %vm2821, %v2818, %v2732
        %v2832 = vsel %vm2821, %v2819, %v2734
        %v2833 = vsel %vm2821, %v2820, %v2736
        %vm2834 = vcmask 523264
        %v2835 = vsel %vm2834, %v2822, %v2762
        %v2836 = vsel %vm2834, %v2823, %v2764
        %v2837 = vsel %vm2834, %v2824, %v2766
        %v2838 = vsel %vm2834, %v2825, %v2768
        %v2839 = vsel %vm2834, %v2826, %v2770
        %v2840 = vsel %vm2834, %v2827, %v2772
        %v2841 = vsel %vm2834, %v2828, %v2774
        %v2842 = vsel %vm2834, %v2829, %v2776
        %v2843 = vsel %vm2834, %v2830, %v2778
        %v2844 = vsel %vm2834, %v2831, %v2780
        %v2845 = vsel %vm2834, %v2832, %v2782
        %v2846 = vsel %vm2834, %v2833, %v2784
        %v2847 = vld [vmem:[%s5] sm:$0xff]
        %v2848 = vld [vmem:[%s5 + $0x8] sm:$0xff]
        %v2849 = vld [vmem:[%s5 + $0x10] sm:$0xff]
        %v2850 = vld [vmem:[%s5 + $0x18] sm:$0xff]
        %v2851 = vld [vmem:[%s5 + $0x20] sm:$0xff]
        %v2852 = vld [vmem:[%s5 + $0x28] sm:$0xff]
        %v2853 = vld [vmem:[%s5 + $0x30] sm:$0xff]
        %v2854 = vld [vmem:[%s5 + $0x38] sm:$0xff]
        %v2855 = vld [vmem:[%s5 + $0x40] sm:$0xff]
        %v2856 = vld [vmem:[%s5 + $0x48] sm:$0xff]
        %v2857 = vld [vmem:[%s6] sm:$0x1]
        %v2859 = vlaneseq
        %v2860 = vshrl.u32 %v2859, 7
        %v2861 = vsub.s32 0, %v2860
        %v2862 = vrot.slane %v2857, %v2861
        %vm2864 = vcmask 654336
        %v2866 = vsel %vm2864, %v2835, 0
        %v2869 = vsel %vm2864, %v2836, 0
        %v2872 = vsel %vm2864, %v2837, 0
        %v2875 = vsel %vm2864, %v2838, 0
        %v2878 = vsel %vm2864, %v2839, 0
        %v2881 = vsel %vm2864, %v2840, 0
        %v2884 = vsel %vm2864, %v2841, 0
        %v2887 = vsel %vm2864, %v2842, 0
        %v2890 = vsel %vm2864, %v2843, 0
        %v2893 = vsel %vm2864, %v2844, 0
        %v2896 = vsel %vm2864, %v2845, 0
        %v2899 = vsel %vm2864, %v2846, 0
        %2901 = vmatprep.subr.mxu0 0.0
        %2902 = vmatpush1.msra.mxu0 %v2847
        %2903 = vmatprep.subr.mxu0 0.0
        %2904 = vmatpush1.msra.mxu0 %v2848
        %2905 = vmatprep.subr.mxu0 0.0
        %2906 = vmatpush1.msra.mxu0 %v2849
        %2907 = vmatprep.subr.mxu0 0.0
        %2908 = vmatpush1.msra.mxu0 %v2850
        %2909 = vmatprep.subr.mxu0 0.0
        %2910 = vmatpush1.msra.mxu0 %v2851
        %2911 = vmatprep.subr.mxu0 0.0
        %2912 = vmatpush1.msra.mxu0 %v2852
        %2913 = vmatprep.subr.mxu0 0.0
        %2914 = vmatpush1.msra.mxu0 %v2853
        %2915 = vmatprep.subr.mxu0 0.0
        %2916 = vmatpush1.msra.mxu0 %v2854
        %2917 = vmatprep.subr.mxu0 0.0
        %2918 = vmatpush1.msra.mxu0 %v2855
        %2919 = vmatprep.subr.mxu0 0.0
        %2920 = vmatpush1.msra.mxu0 %v2856
        %2921 = vmatprep.subr.mxu0 0.0
        %2922 = vmatpush1.msra.mxu0 0.0
        %2923 = vmatprep.subr.mxu0 0.0
        %2924 = vmatpush1.msra.mxu0 0.0
        %2925 = vmatprep.subr.mxu0 0.0
        %2926 = vmatpush1.msra.mxu0 0.0
        %2927 = vmatprep.subr.mxu0 0.0
        %2928 = vmatpush1.msra.mxu0 0.0
        %2929 = vmatprep.subr.mxu0 0.0
        %2930 = vmatpush1.msra.mxu0 0.0
        %2931 = vmatprep.subr.mxu0 0.0
        %2932 = vmatpush1.msra.mxu0 0.0
        %2933 = vmatprep.subr.mxu0 0.0
        %2934 = vmatpush1.msra.mxu0 0.0
        %2935 = vmatprep.subr.mxu0 0.0
        %2936 = vmatpush1.msra.mxu0 0.0
        %2937 = vmatprep.subr.mxu0 0.0
        %2938 = vmatpush1.msra.mxu0 0.0
        %2939 = vmatprep.subr.mxu0 0.0
        %2940 = vmatpush1.msra.mxu0 0.0
        %2941 = vmatprep.subr.mxu0 0.0
        %2942 = vmatpush1.msra.mxu0 0.0
        %2943 = vmatprep.subr.mxu0 0.0
        %2944 = vmatpush1.msra.mxu0 0.0
        %2945 = vmatprep.subr.mxu0 0.0
        %2946 = vmatpush1.msra.mxu0 0.0
        %2947 = vmatprep.subr.mxu0 0.0
        %2948 = vmatpush1.msra.mxu0 0.0
        %2949 = vmatprep.subr.mxu0 0.0
        %2950 = vmatpush1.msra.mxu0 0.0
        %2951 = vmatprep.subr.mxu0 0.0
        %2952 = vmatpush1.msra.mxu0 0.0
        %2953 = vmatprep.subr.mxu0 0.0
        %2954 = vmatpush1.msra.mxu0 0.0
        %2955 = vmatprep.subr.mxu0 0.0
        %2956 = vmatpush1.msra.mxu0 0.0
        %2957 = vmatprep.subr.mxu0 0.0
        %2958 = vmatpush1.msra.mxu0 0.0
        %2959 = vmatprep.subr.mxu0 0.0
        %2960 = vmatpush1.msra.mxu0 0.0
        %2961 = vmatprep.subr.mxu0 0.0
        %2962 = vmatpush1.msra.mxu0 0.0
        %2963 = vmatprep.subr.mxu0 0.0
        %2964 = vmatpush1.msra.mxu0 0.0
        %2965 = vmatprep.mubr.f32.mxu0 0.0
        %2966 = vmatmul.mubr.f32.gmra.mrb[0].mxu0 %v2866
        %v2967 = vpop.f32.mrb[0].mxu0
        %v2968 = vadd.f32 %v2862, %v2967
        %v2969 = vpop.f32.mrb[0].mxu0
        %2970 = vmatprep.mubr.f32.mxu0 0.0
        %2971 = vmatmul.mubr.f32.gmra.mrb[0].mxu0 %v2869
        %v2972 = vpop.f32.mrb[0].mxu0
        %v2973 = vadd.f32 %v2862, %v2972
        %v2974 = vpop.f32.mrb[0].mxu0
        %2975 = vmatprep.mubr.f32.mxu0 0.0
        %2976 = vmatmul.mubr.f32.gmra.mrb[0].mxu0 %v2872
        %v2977 = vpop.f32.mrb[0].mxu0
        %v2978 = vadd.f32 %v2862, %v2977
        %v2979 = vpop.f32.mrb[0].mxu0
        %2980 = vmatprep.mubr.f32.mxu0 0.0
        %2981 = vmatmul.mubr.f32.gmra.mrb[0].mxu0 %v2875
        %v2982 = vpop.f32.mrb[0].mxu0
        %v2983 = vadd.f32 %v2862, %v2982
        %v2984 = vpop.f32.mrb[0].mxu0
        %2985 = vmatprep.mubr.f32.mxu0 0.0
        %2986 = vmatmul.mubr.f32.gmra.mrb[0].mxu0 %v2878
        %v2987 = vpop.f32.mrb[0].mxu0
        %v2988 = vadd.f32 %v2862, %v2987
        %v2989 = vpop.f32.mrb[0].mxu0
        %2990 = vmatprep.mubr.f32.mxu0 0.0
        %2991 = vmatmul.mubr.f32.gmra.mrb[0].mxu0 %v2881
        %v2992 = vpop.f32.mrb[0].mxu0
        %v2993 = vadd.f32 %v2862, %v2992
        %v2994 = vpop.f32.mrb[0].mxu0
        %2995 = vmatprep.mubr.f32.mxu0 0.0
        %2996 = vmatmul.mubr.f32.gmra.mrb[0].mxu0 %v2884
        %v2997 = vpop.f32.mrb[0].mxu0
        %v2998 = vadd.f32 %v2862, %v2997
        %v2999 = vpop.f32.mrb[0].mxu0
        %3000 = vmatprep.mubr.f32.mxu0 0.0
        %3001 = vmatmul.mubr.f32.gmra.mrb[0].mxu0 %v2887
        %v3002 = vpop.f32.mrb[0].mxu0
        %v3003 = vadd.f32 %v2862, %v3002
        %v3004 = vpop.f32.mrb[0].mxu0
        %3005 = vmatprep.mubr.f32.mxu0 0.0
        %3006 = vmatmul.mubr.f32.gmra.mrb[0].mxu0 %v2890
        %v3007 = vpop.f32.mrb[0].mxu0
        %v3008 = vadd.f32 %v2862, %v3007
        %v3009 = vpop.f32.mrb[0].mxu0
        %3010 = vmatprep.mubr.f32.mxu0 0.0
        %3011 = vmatmul.mubr.f32.gmra.mrb[0].mxu0 %v2893
        %v3012 = vpop.f32.mrb[0].mxu0
        %v3013 = vadd.f32 %v2862, %v3012
        %v3014 = vpop.f32.mrb[0].mxu0
        %3015 = vmatprep.mubr.f32.mxu0 0.0
        %3016 = vmatmul.mubr.f32.gmra.mrb[0].mxu0 %v2896
        %v3017 = vpop.f32.mrb[0].mxu0
        %v3018 = vadd.f32 %v2862, %v3017
        %v3019 = vpop.f32.mrb[0].mxu0
        %3020 = vmatprep.mubr.f32.mxu0 0.0
        %3021 = vmatmul.mubr.f32.gmra.mrb[0].mxu0 %v2899
        %v3022 = vpop.f32.mrb[0].mxu0
        %v3023 = vadd.f32 %v2862, %v3022
        %v3024 = vpop.f32.mrb[0].mxu0
        %3025 = vdwg.mxu0
        %v3026 = vmul.f32 %v2968, 0.01
        %v3027 = vmul.f32 %v2973, 0.01
        %v3028 = vmul.f32 %v2978, 0.01
        %v3029 = vmul.f32 %v2983, 0.01
        %v3030 = vmul.f32 %v2988, 0.01
        %v3031 = vmul.f32 %v2993, 0.01
        %v3032 = vmul.f32 %v2998, 0.01
        %v3033 = vmul.f32 %v3003, 0.01
        %v3034 = vmul.f32 %v3008, 0.01
        %v3035 = vmul.f32 %v3013, 0.01
        %v3036 = vmul.f32 %v3018, 0.01
        %v3037 = vmul.f32 %v3023, 0.01
        %v3038 = vmax.f32 %v2968, %v3026
        %v3039 = vmax.f32 %v2973, %v3027
        %v3040 = vmax.f32 %v2978, %v3028
        %v3041 = vmax.f32 %v2983, %v3029
        %v3042 = vmax.f32 %v2988, %v3030
        %v3043 = vmax.f32 %v2993, %v3031
        %v3044 = vmax.f32 %v2998, %v3032
        %v3045 = vmax.f32 %v3003, %v3033
        %v3046 = vmax.f32 %v3008, %v3034
        %v3047 = vmax.f32 %v3013, %v3035
        %v3048 = vmax.f32 %v3018, %v3036
        %v3049 = vmax.f32 %v3023, %v3037
        %3050 = vst.msk [vmem:[#allocation9] sm:$0xff] %vm2091, %v3038
        %3051 = vst.msk [vmem:[#allocation9 + $0x8] sm:$0xff] %vm2091, %v3039
        %3052 = vst.msk [vmem:[#allocation9 + $0x10] sm:$0xff] %vm2091, %v3040
        %3053 = vst.msk [vmem:[#allocation9 + $0x18] sm:$0xff] %vm2091, %v3041
        %3054 = vst.msk [vmem:[#allocation9 + $0x20] sm:$0xff] %vm2091, %v3042
        %3055 = vst.msk [vmem:[#allocation9 + $0x28] sm:$0xff] %vm2091, %v3043
        %3056 = vst.msk [vmem:[#allocation9 + $0x30] sm:$0xff] %vm2091, %v3044
        %3057 = vst.msk [vmem:[#allocation9 + $0x38] sm:$0xff] %vm2091, %v3045
        %3058 = vst.msk [vmem:[#allocation9 + $0x40] sm:$0xff] %vm2091, %v3046
        %3059 = vst.msk [vmem:[#allocation9 + $0x48] sm:$0xff] %vm2091, %v3047
        %3060 = vst.msk [vmem:[#allocation9 + $0x50] sm:$0xff] %vm2091, %v3048
        %3061 = vst.msk [vmem:[#allocation9 + $0x58] sm:$0xf] %vm2465, %v3049
        %v3062 = vld [vmem:[#allocation9] ss:$2 sm:$0xff]
        %s3063 = scalar_lea.vmem [#allocation9], 16
        %v3064 = vld [vmem:[%s3063] ss:$2 sm:$0x1f]
        %s3065 = scalar_lea.vmem [#allocation9], 1
        %v3066 = vld [vmem:[%s3065] ss:$2 sm:$0xff]
        %s3067 = scalar_lea.vmem [#allocation9], 17
        %v3068 = vld [vmem:[%s3067] ss:$2 sm:$0x1f]
        %v3069 = vmax.f32 %v3062, %v3066
        %v3070 = vmax.f32 %v3064, %v3068
        %3071 = vst.msk [vmem:[#allocation4 + $0x2] sm:$0xff] %vm2091, %v3069
        %vm3072 = vcmask 126976
        %3073 = vst.msk [vmem:[#allocation4 + $0xa] sm:$0x1f] %vm3072, %v3070
        %3074 = vst.msk [vmem:[#allocation4] sm:$0x3] %vm2489, 0.0
        %3075 = vst.msk [vmem:[#allocation4 + $0xf] sm:$0x3] %vm2489, 0.0
        %s3076 = scalar_lea.vmem [#allocation9], 32
        %v3077 = vld [vmem:[%s3076] ss:$2 sm:$0xff]
        %s3078 = scalar_lea.vmem [#allocation9], 48
        %v3079 = vld [vmem:[%s3078] ss:$2 sm:$0x1f]
        %s3080 = scalar_lea.vmem [#allocation9], 33
        %v3081 = vld [vmem:[%s3080] ss:$2 sm:$0xff]
        %s3082 = scalar_lea.vmem [#allocation9], 49
        %v3083 = vld [vmem:[%s3082] ss:$2 sm:$0x1f]
        %v3084 = vmax.f32 %v3077, %v3081
        %v3085 = vmax.f32 %v3079, %v3083
        %3086 = vst.msk [vmem:[#allocation4 + $0x1a] sm:$0xff] %vm2091, %v3084
        %3087 = vst.msk [vmem:[#allocation4 + $0x22] sm:$0x1f] %vm3072, %v3085
        %3088 = vst.msk [vmem:[#allocation4 + $0x18] sm:$0x3] %vm2489, 0.0
        %3089 = vst.msk [vmem:[#allocation4 + $0x27] sm:$0x3] %vm2489, 0.0
        %s3090 = scalar_lea.vmem [#allocation9], 64
        %v3091 = vld [vmem:[%s3090] ss:$2 sm:$0xff]
        %s3092 = scalar_lea.vmem [#allocation9], 80
        %v3093 = vld [vmem:[%s3092] ss:$2 sm:$0x1f]
        %s3094 = scalar_lea.vmem [#allocation9], 65
        %v3095 = vld [vmem:[%s3094] ss:$2 sm:$0xff]
        %s3096 = scalar_lea.vmem [#allocation9], 81
        %v3097 = vld [vmem:[%s3096] ss:$2 sm:$0x1f]
        %v3098 = vmax.f32 %v3091, %v3095
        %v3099 = vmax.f32 %v3093, %v3097
        %3100 = vst.msk [vmem:[#allocation4 + $0x32] sm:$0xff] %vm2091, %v3098
        %3101 = vst.msk [vmem:[#allocation4 + $0x3a] sm:$0x1f] %vm3072, %v3099
        %3102 = vst.msk [vmem:[#allocation4 + $0x30] sm:$0x3] %vm2489, 0.0
        %3103 = vst.msk [vmem:[#allocation4 + $0x3f] sm:$0x3] %vm2489, 0.0
        %v3104 = vld [vmem:[#allocation4] sm:$0xff]
        %v3105 = vld [vmem:[#allocation4 + $0x8] sm:$0xff]
        %v3106 = vld [vmem:[#allocation4 + $0x10] sm:$0xff]
        %v3107 = vld [vmem:[#allocation4 + $0x18] sm:$0xff]
        %v3108 = vld [vmem:[#allocation4 + $0x20] sm:$0xff]
        %v3109 = vld [vmem:[#allocation4 + $0x28] sm:$0xff]
        %v3110 = vld [vmem:[#allocation4 + $0x30] sm:$0xff]
        %v3111 = vld [vmem:[#allocation4 + $0x38] sm:$0xff]
        %v3112 = vld [vmem:[#allocation4 + $0x40] sm:$0x1f]
        %v3113 = vld [vmem:[#allocation4 + $0x1] sm:$0xff]
        %v3114 = vld [vmem:[#allocation4 + $0x9] sm:$0xff]
        %v3115 = vld [vmem:[#allocation4 + $0x11] sm:$0xff]
        %v3116 = vld [vmem:[#allocation4 + $0x19] sm:$0xff]
        %v3117 = vld [vmem:[#allocation4 + $0x21] sm:$0xff]
        %v3118 = vld [vmem:[#allocation4 + $0x29] sm:$0xff]
        %v3119 = vld [vmem:[#allocation4 + $0x31] sm:$0xff]
        %v3120 = vld [vmem:[#allocation4 + $0x39] sm:$0xff]
        %v3121 = vld [vmem:[#allocation4 + $0x41] sm:$0x1f]
        %v3122 = vld [vmem:[#allocation4 + $0x2] sm:$0xff]
        %v3123 = vld [vmem:[#allocation4 + $0xa] sm:$0xff]
        %v3124 = vld [vmem:[#allocation4 + $0x12] sm:$0xff]
        %v3125 = vld [vmem:[#allocation4 + $0x1a] sm:$0xff]
        %v3126 = vld [vmem:[#allocation4 + $0x22] sm:$0xff]
        %v3127 = vld [vmem:[#allocation4 + $0x2a] sm:$0xff]
        %v3128 = vld [vmem:[#allocation4 + $0x32] sm:$0xff]
        %v3129 = vld [vmem:[#allocation4 + $0x3a] sm:$0xff]
        %v3130 = vld [vmem:[#allocation4 + $0x42] sm:$0x1f]
        %v3131 = vld [vmem:[#allocation4 + $0x3] sm:$0xff]
        %v3132 = vld [vmem:[#allocation4 + $0xb] sm:$0xff]
        %v3133 = vld [vmem:[#allocation4 + $0x13] sm:$0xff]
        %v3134 = vld [vmem:[#allocation4 + $0x1b] sm:$0xff]
        %v3135 = vld [vmem:[#allocation4 + $0x23] sm:$0xff]
        %v3136 = vld [vmem:[#allocation4 + $0x2b] sm:$0xff]
        %v3137 = vld [vmem:[#allocation4 + $0x33] sm:$0xff]
        %v3138 = vld [vmem:[#allocation4 + $0x3b] sm:$0xff]
        %v3139 = vld [vmem:[#allocation4 + $0x43] sm:$0x1f]
        %3149 = vrot.lane.b32.xlu0 %v3113, 16
        %v3150 = vpop.permute.xlu0 %3149
        %3151 = vrot.lane.b32.xlu0 %v3114, 16
        %v3152 = vpop.permute.xlu0 %3151
        %3153 = vrot.lane.b32.xlu0 %v3115, 16
        %v3154 = vpop.permute.xlu0 %3153
        %3155 = vrot.lane.b32.xlu0 %v3116, 16
        %v3156 = vpop.permute.xlu0 %3155
        %3157 = vrot.lane.b32.xlu0 %v3117, 16
        %v3158 = vpop.permute.xlu0 %3157
        %3159 = vrot.lane.b32.xlu0 %v3118, 16
        %v3160 = vpop.permute.xlu0 %3159
        %3161 = vrot.lane.b32.xlu0 %v3119, 16
        %v3162 = vpop.permute.xlu0 %3161
        %3163 = vrot.lane.b32.xlu0 %v3120, 16
        %v3164 = vpop.permute.xlu0 %3163
        %3165 = vrot.lane.b32.xlu0 %v3121, 16
        %v3166 = vpop.permute.xlu0 %3165
        %3185 = vrot.lane.b32.xlu0 %v3122, 32
        %v3186 = vpop.permute.xlu0 %3185
        %3187 = vrot.lane.b32.xlu0 %v3123, 32
        %v3188 = vpop.permute.xlu0 %3187
        %3189 = vrot.lane.b32.xlu0 %v3124, 32
        %v3190 = vpop.permute.xlu0 %3189
        %3191 = vrot.lane.b32.xlu0 %v3125, 32
        %v3192 = vpop.permute.xlu0 %3191
        %3193 = vrot.lane.b32.xlu0 %v3126, 32
        %v3194 = vpop.permute.xlu0 %3193
        %3195 = vrot.lane.b32.xlu0 %v3127, 32
        %v3196 = vpop.permute.xlu0 %3195
        %3197 = vrot.lane.b32.xlu0 %v3128, 32
        %v3198 = vpop.permute.xlu0 %3197
        %3199 = vrot.lane.b32.xlu0 %v3129, 32
        %v3200 = vpop.permute.xlu0 %3199
        %3201 = vrot.lane.b32.xlu0 %v3130, 32
        %v3202 = vpop.permute.xlu0 %3201
        %3221 = vrot.lane.b32.xlu0 %v3131, 48
        %v3222 = vpop.permute.xlu0 %3221
        %3223 = vrot.lane.b32.xlu0 %v3132, 48
        %v3224 = vpop.permute.xlu0 %3223
        %3225 = vrot.lane.b32.xlu0 %v3133, 48
        %v3226 = vpop.permute.xlu0 %3225
        %3227 = vrot.lane.b32.xlu0 %v3134, 48
        %v3228 = vpop.permute.xlu0 %3227
        %3229 = vrot.lane.b32.xlu0 %v3135, 48
        %v3230 = vpop.permute.xlu0 %3229
        %3231 = vrot.lane.b32.xlu0 %v3136, 48
        %v3232 = vpop.permute.xlu0 %3231
        %3233 = vrot.lane.b32.xlu0 %v3137, 48
        %v3234 = vpop.permute.xlu0 %3233
        %3235 = vrot.lane.b32.xlu0 %v3138, 48
        %v3236 = vpop.permute.xlu0 %3235
        %3237 = vrot.lane.b32.xlu0 %v3139, 48
        %v3238 = vpop.permute.xlu0 %3237
        %v3248 = vsel %vm2091, %v3104, %v3150
        %v3249 = vsel %vm2091, %v3105, %v3152
        %v3250 = vsel %vm2091, %v3106, %v3154
        %v3251 = vsel %vm2091, %v3107, %v3156
        %v3252 = vsel %vm2091, %v3108, %v3158
        %v3253 = vsel %vm2091, %v3109, %v3160
        %v3254 = vsel %vm2091, %v3110, %v3162
        %v3255 = vsel %vm2091, %v3111, %v3164
        %v3256 = vsel %vm2091, %v3112, %v3166
        %v3257 = vsel %vm2135, %v3248, %v3186
        %v3258 = vsel %vm2135, %v3249, %v3188
        %v3259 = vsel %vm2135, %v3250, %v3190
        %v3260 = vsel %vm2135, %v3251, %v3192
        %v3261 = vsel %vm2135, %v3252, %v3194
        %v3262 = vsel %vm2135, %v3253, %v3196
        %v3263 = vsel %vm2135, %v3254, %v3198
        %v3264 = vsel %vm2135, %v3255, %v3200
        %v3265 = vsel %vm2135, %v3256, %v3202
        %v3266 = vsel %vm2821, %v3257, %v3222
        %v3267 = vsel %vm2821, %v3258, %v3224
        %v3268 = vsel %vm2821, %v3259, %v3226
        %v3269 = vsel %vm2821, %v3260, %v3228
        %v3270 = vsel %vm2821, %v3261, %v3230
        %v3271 = vsel %vm2821, %v3262, %v3232
        %v3272 = vsel %vm2821, %v3263, %v3234
        %v3273 = vsel %vm2821, %v3264, %v3236
        %v3274 = vsel %vm2821, %v3265, %v3238
        %v3275 = vld [vmem:[%s7] sm:$0xff]
        %v3276 = vld [vmem:[%s7 + $0x8] sm:$0xff]
        %v3277 = vld [vmem:[%s7 + $0x10] sm:$0xff]
        %v3278 = vld [vmem:[%s7 + $0x18] sm:$0xff]
        %v3279 = vld [vmem:[%s7 + $0x20] sm:$0xff]
        %v3280 = vld [vmem:[%s7 + $0x28] sm:$0xff]
        %v3281 = vld [vmem:[%s7 + $0x30] sm:$0xff]
        %v3282 = vld [vmem:[%s7 + $0x38] sm:$0xff]
        %v3283 = vld [vmem:[%s8] sm:$0x1]
        %v3285 = vlaneseq
        %v3286 = vshrl.u32 %v3285, 7
        %v3287 = vsub.s32 0, %v3286
        %v3288 = vrot.slane %v3283, %v3287
        %v3291 = vsel %vm2834, %v3266, 0
        %v3294 = vsel %vm2834, %v3267, 0
        %v3297 = vsel %vm2834, %v3268, 0
        %v3300 = vsel %vm2834, %v3269, 0
        %v3303 = vsel %vm2834, %v3270, 0
        %v3306 = vsel %vm2834, %v3271, 0
        %v3309 = vsel %vm2834, %v3272, 0
        %v3312 = vsel %vm2834, %v3273, 0
        %v3315 = vsel %vm2834, %v3274, 0
        %3317 = vmatprep.subr.mxu0 0.0
        %3318 = vmatpush1.msra.mxu0 %v3275
        %3319 = vmatprep.subr.mxu0 0.0
        %3320 = vmatpush1.msra.mxu0 %v3276
        %3321 = vmatprep.subr.mxu0 0.0
        %3322 = vmatpush1.msra.mxu0 %v3277
        %3323 = vmatprep.subr.mxu0 0.0
        %3324 = vmatpush1.msra.mxu0 %v3278
        %3325 = vmatprep.subr.mxu0 0.0
        %3326 = vmatpush1.msra.mxu0 %v3279
        %3327 = vmatprep.subr.mxu0 0.0
        %3328 = vmatpush1.msra.mxu0 %v3280
        %3329 = vmatprep.subr.mxu0 0.0
        %3330 = vmatpush1.msra.mxu0 %v3281
        %3331 = vmatprep.subr.mxu0 0.0
        %3332 = vmatpush1.msra.mxu0 %v3282
        %3333 = vmatprep.subr.mxu0 0.0
        %3334 = vmatpush1.msra.mxu0 0.0
        %3335 = vmatprep.subr.mxu0 0.0
        %3336 = vmatpush1.msra.mxu0 0.0
        %3337 = vmatprep.subr.mxu0 0.0
        %3338 = vmatpush1.msra.mxu0 0.0
        %3339 = vmatprep.subr.mxu0 0.0
        %3340 = vmatpush1.msra.mxu0 0.0
        %3341 = vmatprep.subr.mxu0 0.0
        %3342 = vmatpush1.msra.mxu0 0.0
        %3343 = vmatprep.subr.mxu0 0.0
        %3344 = vmatpush1.msra.mxu0 0.0
        %3345 = vmatprep.subr.mxu0 0.0
        %3346 = vmatpush1.msra.mxu0 0.0
        %3347 = vmatprep.subr.mxu0 0.0
        %3348 = vmatpush1.msra.mxu0 0.0
        %3349 = vmatprep.subr.mxu0 0.0
        %3350 = vmatpush1.msra.mxu0 0.0
        %3351 = vmatprep.subr.mxu0 0.0
        %3352 = vmatpush1.msra.mxu0 0.0
        %3353 = vmatprep.subr.mxu0 0.0
        %3354 = vmatpush1.msra.mxu0 0.0
        %3355 = vmatprep.subr.mxu0 0.0
        %3356 = vmatpush1.msra.mxu0 0.0
        %3357 = vmatprep.subr.mxu0 0.0
        %3358 = vmatpush1.msra.mxu0 0.0
        %3359 = vmatprep.subr.mxu0 0.0
        %3360 = vmatpush1.msra.mxu0 0.0
        %3361 = vmatprep.subr.mxu0 0.0
        %3362 = vmatpush1.msra.mxu0 0.0
        %3363 = vmatprep.subr.mxu0 0.0
        %3364 = vmatpush1.msra.mxu0 0.0
        %3365 = vmatprep.subr.mxu0 0.0
        %3366 = vmatpush1.msra.mxu0 0.0
        %3367 = vmatprep.subr.mxu0 0.0
        %3368 = vmatpush1.msra.mxu0 0.0
        %3369 = vmatprep.subr.mxu0 0.0
        %3370 = vmatpush1.msra.mxu0 0.0
        %3371 = vmatprep.subr.mxu0 0.0
        %3372 = vmatpush1.msra.mxu0 0.0
        %3373 = vmatprep.subr.mxu0 0.0
        %3374 = vmatpush1.msra.mxu0 0.0
        %3375 = vmatprep.subr.mxu0 0.0
        %3376 = vmatpush1.msra.mxu0 0.0
        %3377 = vmatprep.subr.mxu0 0.0
        %3378 = vmatpush1.msra.mxu0 0.0
        %3379 = vmatprep.subr.mxu0 0.0
        %3380 = vmatpush1.msra.mxu0 0.0
        %3381 = vmatprep.mubr.f32.mxu0 0.0
        %3382 = vmatmul.mubr.f32.gmra.mrb[0].mxu0 %v3291
        %v3383 = vpop.f32.mrb[0].mxu0
        %v3384 = vadd.f32 %v3288, %v3383
        %v3385 = vpop.f32.mrb[0].mxu0
        %3386 = vmatprep.mubr.f32.mxu0 0.0
        %3387 = vmatmul.mubr.f32.gmra.mrb[0].mxu0 %v3294
        %v3388 = vpop.f32.mrb[0].mxu0
        %v3389 = vadd.f32 %v3288, %v3388
        %v3390 = vpop.f32.mrb[0].mxu0
        %3391 = vmatprep.mubr.f32.mxu0 0.0
        %3392 = vmatmul.mubr.f32.gmra.mrb[0].mxu0 %v3297
        %v3393 = vpop.f32.mrb[0].mxu0
        %v3394 = vadd.f32 %v3288, %v3393
        %v3395 = vpop.f32.mrb[0].mxu0
        %3396 = vmatprep.mubr.f32.mxu0 0.0
        %3397 = vmatmul.mubr.f32.gmra.mrb[0].mxu0 %v3300
        %v3398 = vpop.f32.mrb[0].mxu0
        %v3399 = vadd.f32 %v3288, %v3398
        %v3400 = vpop.f32.mrb[0].mxu0
        %3401 = vmatprep.mubr.f32.mxu0 0.0
        %3402 = vmatmul.mubr.f32.gmra.mrb[0].mxu0 %v3303
        %v3403 = vpop.f32.mrb[0].mxu0
        %v3404 = vadd.f32 %v3288, %v3403
        %v3405 = vpop.f32.mrb[0].mxu0
        %3406 = vmatprep.mubr.f32.mxu0 0.0
        %3407 = vmatmul.mubr.f32.gmra.mrb[0].mxu0 %v3306
        %v3408 = vpop.f32.mrb[0].mxu0
        %v3409 = vadd.f32 %v3288, %v3408
        %v3410 = vpop.f32.mrb[0].mxu0
        %3411 = vmatprep.mubr.f32.mxu0 0.0
        %3412 = vmatmul.mubr.f32.gmra.mrb[0].mxu0 %v3309
        %v3413 = vpop.f32.mrb[0].mxu0
        %v3414 = vadd.f32 %v3288, %v3413
        %v3415 = vpop.f32.mrb[0].mxu0
        %3416 = vmatprep.mubr.f32.mxu0 0.0
        %3417 = vmatmul.mubr.f32.gmra.mrb[0].mxu0 %v3312
        %v3418 = vpop.f32.mrb[0].mxu0
        %v3419 = vadd.f32 %v3288, %v3418
        %v3420 = vpop.f32.mrb[0].mxu0
        %3421 = vmatprep.mubr.f32.mxu0 0.0
        %3422 = vmatmul.mubr.f32.gmra.mrb[0].mxu0 %v3315
        %v3423 = vpop.f32.mrb[0].mxu0
        %v3424 = vadd.f32 %v3288, %v3423
        %v3425 = vpop.f32.mrb[0].mxu0
        %3426 = vdwg.mxu0
        %v3427 = vmul.f32 %v3384, 0.01
        %v3428 = vmul.f32 %v3389, 0.01
        %v3429 = vmul.f32 %v3394, 0.01
        %v3430 = vmul.f32 %v3399, 0.01
        %v3431 = vmul.f32 %v3404, 0.01
        %v3432 = vmul.f32 %v3409, 0.01
        %v3433 = vmul.f32 %v3414, 0.01
        %v3434 = vmul.f32 %v3419, 0.01
        %v3435 = vmul.f32 %v3424, 0.01
        %v3436 = vmax.f32 %v3384, %v3427
        %v3437 = vmax.f32 %v3389, %v3428
        %v3438 = vmax.f32 %v3394, %v3429
        %v3439 = vmax.f32 %v3399, %v3430
        %v3440 = vmax.f32 %v3404, %v3431
        %v3441 = vmax.f32 %v3409, %v3432
        %v3442 = vmax.f32 %v3414, %v3433
        %v3443 = vmax.f32 %v3419, %v3434
        %v3444 = vmax.f32 %v3424, %v3435
        %3445 = vst.msk [vmem:[#allocation10] sm:$0xff] %vm2135, %v3436
        %3446 = vst.msk [vmem:[#allocation10 + $0x8] sm:$0xff] %vm2135, %v3437
        %3447 = vst.msk [vmem:[#allocation10 + $0x10] sm:$0xff] %vm2135, %v3438
        %3448 = vst.msk [vmem:[#allocation10 + $0x18] sm:$0xff] %vm2135, %v3439
        %3449 = vst.msk [vmem:[#allocation10 + $0x20] sm:$0xff] %vm2135, %v3440
        %3450 = vst.msk [vmem:[#allocation10 + $0x28] sm:$0xff] %vm2135, %v3441
        %3451 = vst.msk [vmem:[#allocation10 + $0x30] sm:$0xff] %vm2135, %v3442
        %3452 = vst.msk [vmem:[#allocation10 + $0x38] sm:$0xff] %vm2135, %v3443
        %vm3453 = vcmask 258048
        %3454 = vst.msk [vmem:[#allocation10 + $0x40] sm:$0x1f] %vm3453, %v3444
        %v3455 = vld [vmem:[#allocation10] sm:$0xff]
        %v3456 = vld [vmem:[#allocation10 + $0x8] sm:$0x3f]
        %3457 = vst.msk [vmem:[#allocation5] sm:$0xff] %vm2135, %v3455
        %vm3458 = vcmask 259072
        %3459 = vst.msk [vmem:[#allocation5 + $0x8] sm:$0x3f] %vm3458, %v3456
        %v3460 = vld [vmem:[#allocation10 + $0x18] sm:$0xff]
        %v3461 = vld [vmem:[#allocation10 + $0x20] sm:$0x3f]
        %3462 = vst.msk [vmem:[#allocation5 + $0x10] sm:$0xff] %vm2135, %v3460
        %3463 = vst.msk [vmem:[#allocation5 + $0x18] sm:$0x3f] %vm3458, %v3461
        %v3464 = vld [vmem:[#allocation10 + $0x30] sm:$0xff]
        %v3465 = vld [vmem:[#allocation10 + $0x38] sm:$0x3f]
        %3466 = vst.msk [vmem:[#allocation5 + $0x20] sm:$0xff] %vm2135, %v3464
        %3467 = vst.msk [vmem:[#allocation5 + $0x28] sm:$0x3f] %vm3458, %v3465
        %v3468 = vld [vmem:[#allocation5] sm:$0xff]
        %v3469 = vld [vmem:[#allocation5 + $0x8] sm:$0xff]
        %v3470 = vld [vmem:[#allocation5 + $0x10] sm:$0xff]
        %v3471 = vld [vmem:[#allocation5 + $0x18] sm:$0xff]
        %v3472 = vld [vmem:[#allocation5 + $0x20] sm:$0xff]
        %v3473 = vld [vmem:[#allocation5 + $0x28] sm:$0x3f]
        %v3474 = vld [vmem:[#allocation5 + $0x1] sm:$0xff]
        %v3475 = vld [vmem:[#allocation5 + $0x9] sm:$0xff]
        %v3476 = vld [vmem:[#allocation5 + $0x11] sm:$0xff]
        %v3477 = vld [vmem:[#allocation5 + $0x19] sm:$0xff]
        %v3478 = vld [vmem:[#allocation5 + $0x21] sm:$0xff]
        %v3479 = vld [vmem:[#allocation5 + $0x29] sm:$0x3f]
        %v3480 = vld [vmem:[#allocation5 + $0x2] sm:$0xff]
        %v3481 = vld [vmem:[#allocation5 + $0xa] sm:$0xff]
        %v3482 = vld [vmem:[#allocation5 + $0x12] sm:$0xff]
        %v3483 = vld [vmem:[#allocation5 + $0x1a] sm:$0xff]
        %v3484 = vld [vmem:[#allocation5 + $0x22] sm:$0xff]
        %v3485 = vld [vmem:[#allocation5 + $0x2a] sm:$0x3f]
        %3492 = vrot.lane.b32.xlu0 %v3474, 32
        %v3493 = vpop.permute.xlu0 %3492
        %3494 = vrot.lane.b32.xlu0 %v3475, 32
        %v3495 = vpop.permute.xlu0 %3494
        %3496 = vrot.lane.b32.xlu0 %v3476, 32
        %v3497 = vpop.permute.xlu0 %3496
        %3498 = vrot.lane.b32.xlu0 %v3477, 32
        %v3499 = vpop.permute.xlu0 %3498
        %3500 = vrot.lane.b32.xlu0 %v3478, 32
        %v3501 = vpop.permute.xlu0 %3500
        %3502 = vrot.lane.b32.xlu0 %v3479, 32
        %v3503 = vpop.permute.xlu0 %3502
        %3516 = vrot.lane.b32.xlu0 %v3480, 64
        %v3517 = vpop.permute.xlu0 %3516
        %3518 = vrot.lane.b32.xlu0 %v3481, 64
        %v3519 = vpop.permute.xlu0 %3518
        %3520 = vrot.lane.b32.xlu0 %v3482, 64
        %v3521 = vpop.permute.xlu0 %3520
        %3522 = vrot.lane.b32.xlu0 %v3483, 64
        %v3523 = vpop.permute.xlu0 %3522
        %3524 = vrot.lane.b32.xlu0 %v3484, 64
        %v3525 = vpop.permute.xlu0 %3524
        %3526 = vrot.lane.b32.xlu0 %v3485, 64
        %v3527 = vpop.permute.xlu0 %3526
        %v3534 = vsel %vm2135, %v3468, %v3493
        %v3535 = vsel %vm2135, %v3469, %v3495
        %v3536 = vsel %vm2135, %v3470, %v3497
        %v3537 = vsel %vm2135, %v3471, %v3499
        %v3538 = vsel %vm2135, %v3472, %v3501
        %v3539 = vsel %vm2135, %v3473, %v3503
        %v3540 = vsel %vm2834, %v3534, %v3517
        %v3541 = vsel %vm2834, %v3535, %v3519
        %v3542 = vsel %vm2834, %v3536, %v3521
        %v3543 = vsel %vm2834, %v3537, %v3523
        %v3544 = vsel %vm2834, %v3538, %v3525
        %v3545 = vsel %vm2834, %v3539, %v3527
        %v3546 = vld [vmem:[%s9] sm:$0xff]
        %v3547 = vld [vmem:[%s9 + $0x8] sm:$0xff]
        %v3548 = vld [vmem:[%s9 + $0x10] sm:$0xff]
        %v3549 = vld [vmem:[%s9 + $0x18] sm:$0xff]
        %v3550 = vld [vmem:[%s9 + $0x20] sm:$0xff]
        %v3551 = vld [vmem:[%s9 + $0x28] sm:$0xff]
        %v3552 = vld [vmem:[%s9 + $0x30] sm:$0xff]
        %v3553 = vld [vmem:[%s9 + $0x38] sm:$0xff]
        %v3554 = vld [vmem:[%s9 + $0x40] sm:$0xff]
        %v3555 = vld [vmem:[%s9 + $0x48] sm:$0xff]
        %v3556 = vld [vmem:[%s9 + $0x50] sm:$0xff]
        %v3557 = vld [vmem:[%s9 + $0x58] sm:$0xff]
        %v3558 = vld [vmem:[%s10] sm:$0x1]
        %v3560 = vlaneseq
        %v3561 = vshrl.u32 %v3560, 7
        %v3562 = vsub.s32 0, %v3561
        %v3563 = vrot.slane %v3558, %v3562
        %vm3565 = vcmask 785408
        %v3567 = vsel %vm3565, %v3540, 0
        %v3570 = vsel %vm3565, %v3541, 0
        %v3573 = vsel %vm3565, %v3542, 0
        %v3576 = vsel %vm3565, %v3543, 0
        %v3579 = vsel %vm3565, %v3544, 0
        %v3582 = vsel %vm3565, %v3545, 0
        %3584 = vmatprep.subr.mxu0 0.0
        %3585 = vmatpush1.msra.mxu0 %v3546
        %3586 = vmatprep.subr.mxu0 0.0
        %3587 = vmatpush1.msra.mxu0 %v3547
        %3588 = vmatprep.subr.mxu0 0.0
        %3589 = vmatpush1.msra.mxu0 %v3548
        %3590 = vmatprep.subr.mxu0 0.0
        %3591 = vmatpush1.msra.mxu0 %v3549
        %3592 = vmatprep.subr.mxu0 0.0
        %3593 = vmatpush1.msra.mxu0 %v3550
        %3594 = vmatprep.subr.mxu0 0.0
        %3595 = vmatpush1.msra.mxu0 %v3551
        %3596 = vmatprep.subr.mxu0 0.0
        %3597 = vmatpush1.msra.mxu0 %v3552
        %3598 = vmatprep.subr.mxu0 0.0
        %3599 = vmatpush1.msra.mxu0 %v3553
        %3600 = vmatprep.subr.mxu0 0.0
        %3601 = vmatpush1.msra.mxu0 %v3554
        %3602 = vmatprep.subr.mxu0 0.0
        %3603 = vmatpush1.msra.mxu0 %v3555
        %3604 = vmatprep.subr.mxu0 0.0
        %3605 = vmatpush1.msra.mxu0 %v3556
        %3606 = vmatprep.subr.mxu0 0.0
        %3607 = vmatpush1.msra.mxu0 %v3557
        %3608 = vmatprep.subr.mxu0 0.0
        %3609 = vmatpush1.msra.mxu0 0.0
        %3610 = vmatprep.subr.mxu0 0.0
        %3611 = vmatpush1.msra.mxu0 0.0
        %3612 = vmatprep.subr.mxu0 0.0
        %3613 = vmatpush1.msra.mxu0 0.0
        %3614 = vmatprep.subr.mxu0 0.0
        %3615 = vmatpush1.msra.mxu0 0.0
        %3616 = vmatprep.subr.mxu0 0.0
        %3617 = vmatpush1.msra.mxu0 0.0
        %3618 = vmatprep.subr.mxu0 0.0
        %3619 = vmatpush1.msra.mxu0 0.0
        %3620 = vmatprep.subr.mxu0 0.0
        %3621 = vmatpush1.msra.mxu0 0.0
        %3622 = vmatprep.subr.mxu0 0.0
        %3623 = vmatpush1.msra.mxu0 0.0
        %3624 = vmatprep.subr.mxu0 0.0
        %3625 = vmatpush1.msra.mxu0 0.0
        %3626 = vmatprep.subr.mxu0 0.0
        %3627 = vmatpush1.msra.mxu0 0.0
        %3628 = vmatprep.subr.mxu0 0.0
        %3629 = vmatpush1.msra.mxu0 0.0
        %3630 = vmatprep.subr.mxu0 0.0
        %3631 = vmatpush1.msra.mxu0 0.0
        %3632 = vmatprep.subr.mxu0 0.0
        %3633 = vmatpush1.msra.mxu0 0.0
        %3634 = vmatprep.subr.mxu0 0.0
        %3635 = vmatpush1.msra.mxu0 0.0
        %3636 = vmatprep.subr.mxu0 0.0
        %3637 = vmatpush1.msra.mxu0 0.0
        %3638 = vmatprep.subr.mxu0 0.0
        %3639 = vmatpush1.msra.mxu0 0.0
        %3640 = vmatprep.subr.mxu0 0.0
        %3641 = vmatpush1.msra.mxu0 0.0
        %3642 = vmatprep.subr.mxu0 0.0
        %3643 = vmatpush1.msra.mxu0 0.0
        %3644 = vmatprep.subr.mxu0 0.0
        %3645 = vmatpush1.msra.mxu0 0.0
        %3646 = vmatprep.subr.mxu0 0.0
        %3647 = vmatpush1.msra.mxu0 0.0
        %3648 = vmatprep.mubr.f32.mxu0 0.0
        %3649 = vmatmul.mubr.f32.gmra.mrb[0].mxu0 %v3567
        %v3650 = vpop.f32.mrb[0].mxu0
        %v3651 = vadd.f32 %v3563, %v3650
        %v3652 = vpop.f32.mrb[0].mxu0
        %3653 = vmatprep.mubr.f32.mxu0 0.0
        %3654 = vmatmul.mubr.f32.gmra.mrb[0].mxu0 %v3570
        %v3655 = vpop.f32.mrb[0].mxu0
        %v3656 = vadd.f32 %v3563, %v3655
        %v3657 = vpop.f32.mrb[0].mxu0
        %3658 = vmatprep.mubr.f32.mxu0 0.0
        %3659 = vmatmul.mubr.f32.gmra.mrb[0].mxu0 %v3573
        %v3660 = vpop.f32.mrb[0].mxu0
        %v3661 = vadd.f32 %v3563, %v3660
        %v3662 = vpop.f32.mrb[0].mxu0
        %3663 = vmatprep.mubr.f32.mxu0 0.0
        %3664 = vmatmul.mubr.f32.gmra.mrb[0].mxu0 %v3576
        %v3665 = vpop.f32.mrb[0].mxu0
        %v3666 = vadd.f32 %v3563, %v3665
        %v3667 = vpop.f32.mrb[0].mxu0
        %3668 = vmatprep.mubr.f32.mxu0 0.0
        %3669 = vmatmul.mubr.f32.gmra.mrb[0].mxu0 %v3579
        %v3670 = vpop.f32.mrb[0].mxu0
        %v3671 = vadd.f32 %v3563, %v3670
        %v3672 = vpop.f32.mrb[0].mxu0
        %3673 = vmatprep.mubr.f32.mxu0 0.0
        %3674 = vmatmul.mubr.f32.gmra.mrb[0].mxu0 %v3582
        %v3675 = vpop.f32.mrb[0].mxu0
        %v3676 = vadd.f32 %v3563, %v3675
        %v3677 = vpop.f32.mrb[0].mxu0
        %3678 = vdwg.mxu0
        %v3679 = vmul.f32 %v3651, 0.01
        %v3680 = vmul.f32 %v3656, 0.01
        %v3681 = vmul.f32 %v3661, 0.01
        %v3682 = vmul.f32 %v3666, 0.01
        %v3683 = vmul.f32 %v3671, 0.01
        %v3684 = vmul.f32 %v3676, 0.01
        %v3685 = vmax.f32 %v3651, %v3679
        %v3686 = vmax.f32 %v3656, %v3680
        %v3687 = vmax.f32 %v3661, %v3681
        %v3688 = vmax.f32 %v3666, %v3682
        %v3689 = vmax.f32 %v3671, %v3683
        %v3690 = vmax.f32 %v3676, %v3684
        %3691 = vst.msk [vmem:[#allocation11] sm:$0xff] %vm2135, %v3685
        %3692 = vst.msk [vmem:[#allocation11 + $0x8] sm:$0xff] %vm2135, %v3686
        %3693 = vst.msk [vmem:[#allocation11 + $0x10] sm:$0xff] %vm2135, %v3687
        %3694 = vst.msk [vmem:[#allocation11 + $0x18] sm:$0xff] %vm2135, %v3688
        %3695 = vst.msk [vmem:[#allocation11 + $0x20] sm:$0xff] %vm2135, %v3689
        %3696 = vst.msk [vmem:[#allocation11 + $0x28] sm:$0x3f] %vm3458, %v3690
        %v3697 = vld [vmem:[#allocation11] ss:$2 sm:$0x3f]
        %s3698 = scalar_lea.vmem [#allocation11], 1
        %v3699 = vld [vmem:[%s3698] ss:$2 sm:$0x3f]
        %v3700 = vmax.f32 %v3697, %v3699
        %3701 = vst.msk [vmem:[#allocation6 + $0x1] sm:$0x3f] %vm3458, %v3700
        %vm3702 = vcmask 253952
        %3703 = vst.msk [vmem:[#allocation6] sm:$0x1] %vm3702, 0.0
        %3704 = vst.msk [vmem:[#allocation6 + $0x7] sm:$0x1] %vm3702, 0.0
        %s3705 = scalar_lea.vmem [#allocation11], 16
        %v3706 = vld [vmem:[%s3705] ss:$2 sm:$0x3f]
        %s3707 = scalar_lea.vmem [#allocation11], 17
        %v3708 = vld [vmem:[%s3707] ss:$2 sm:$0x3f]
        %v3709 = vmax.f32 %v3706, %v3708
        %3710 = vst.msk [vmem:[#allocation6 + $0x9] sm:$0x3f] %vm3458, %v3709
        %3711 = vst.msk [vmem:[#allocation6 + $0x8] sm:$0x1] %vm3702, 0.0
        %3712 = vst.msk [vmem:[#allocation6 + $0xf] sm:$0x1] %vm3702, 0.0
        %s3713 = scalar_lea.vmem [#allocation11], 32
        %v3714 = vld [vmem:[%s3713] ss:$2 sm:$0x3f]
        %s3715 = scalar_lea.vmem [#allocation11], 33
        %v3716 = vld [vmem:[%s3715] ss:$2 sm:$0x3f]
        %v3717 = vmax.f32 %v3714, %v3716
        %3718 = vst.msk [vmem:[#allocation6 + $0x11] sm:$0x3f] %vm3458, %v3717
        %3719 = vst.msk [vmem:[#allocation6 + $0x10] sm:$0x1] %vm3702, 0.0
        %3720 = vst.msk [vmem:[#allocation6 + $0x17] sm:$0x1] %vm3702, 0.0
        %v3721 = vld [vmem:[#allocation6] sm:$0xff]
        %v3722 = vld [vmem:[#allocation6 + $0x8] sm:$0xff]
        %v3723 = vld [vmem:[#allocation6 + $0x10] sm:$0x3f]
        %v3724 = vld [vmem:[#allocation6 + $0x1] sm:$0xff]
        %v3725 = vld [vmem:[#allocation6 + $0x9] sm:$0xff]
        %v3726 = vld [vmem:[#allocation6 + $0x11] sm:$0x3f]
        %v3727 = vld [vmem:[#allocation6 + $0x2] sm:$0xff]
        %v3728 = vld [vmem:[#allocation6 + $0xa] sm:$0xff]
        %v3729 = vld [vmem:[#allocation6 + $0x12] sm:$0x3f]
        %3733 = vrot.lane.b32.xlu0 %v3724, 32
        %v3734 = vpop.permute.xlu0 %3733
        %3735 = vrot.lane.b32.xlu0 %v3725, 32
        %v3736 = vpop.permute.xlu0 %3735
        %3737 = vrot.lane.b32.xlu0 %v3726, 32
        %v3738 = vpop.permute.xlu0 %3737
        %3745 = vrot.lane.b32.xlu0 %v3727, 64
        %v3746 = vpop.permute.xlu0 %3745
        %3747 = vrot.lane.b32.xlu0 %v3728, 64
        %v3748 = vpop.permute.xlu0 %3747
        %3749 = vrot.lane.b32.xlu0 %v3729, 64
        %v3750 = vpop.permute.xlu0 %3749
        %v3754 = vsel %vm2135, %v3721, %v3734
        %v3755 = vsel %vm2135, %v3722, %v3736
        %v3756 = vsel %vm2135, %v3723, %v3738
        %v3757 = vsel %vm2834, %v3754, %v3746
        %v3758 = vsel %vm2834, %v3755, %v3748
        %v3759 = vsel %vm2834, %v3756, %v3750
        %v3760 = vld [vmem:[%s11] sm:$0xff]
        %v3761 = vld [vmem:[%s11 + $0x8] sm:$0xff]
        %v3762 = vld [vmem:[%s11 + $0x10] sm:$0xff]
        %v3763 = vld [vmem:[%s11 + $0x18] sm:$0xff]
        %v3764 = vld [vmem:[%s11 + $0x20] sm:$0xff]
        %v3765 = vld [vmem:[%s11 + $0x28] sm:$0xff]
        %v3766 = vld [vmem:[%s11 + $0x30] sm:$0xff]
        %v3767 = vld [vmem:[%s11 + $0x38] sm:$0xff]
        %v3768 = vld [vmem:[%s11 + $0x40] sm:$0xff]
        %v3769 = vld [vmem:[%s11 + $0x48] sm:$0xff]
        %v3770 = vld [vmem:[%s11 + $0x50] sm:$0xff]
        %v3771 = vld [vmem:[%s11 + $0x58] sm:$0xff]
        %v3772 = vld [vmem:[%s12] sm:$0x1]
        %v3774 = vlaneseq
        %v3775 = vshrl.u32 %v3774, 7
        %v3776 = vsub.s32 0, %v3775
        %v3777 = vrot.slane %v3772, %v3776
        %v3780 = vsel %vm3565, %v3757, 0
        %v3783 = vsel %vm3565, %v3758, 0
        %v3786 = vsel %vm3565, %v3759, 0
        %3788 = vmatprep.subr.mxu0 0.0
        %3789 = vmatpush1.msra.mxu0 %v3760
        %3790 = vmatprep.subr.mxu0 0.0
        %3791 = vmatpush1.msra.mxu0 %v3761
        %3792 = vmatprep.subr.mxu0 0.0
        %3793 = vmatpush1.msra.mxu0 %v3762
        %3794 = vmatprep.subr.mxu0 0.0
        %3795 = vmatpush1.msra.mxu0 %v3763
        %3796 = vmatprep.subr.mxu0 0.0
        %3797 = vmatpush1.msra.mxu0 %v3764
        %3798 = vmatprep.subr.mxu0 0.0
        %3799 = vmatpush1.msra.mxu0 %v3765
        %3800 = vmatprep.subr.mxu0 0.0
        %3801 = vmatpush1.msra.mxu0 %v3766
        %3802 = vmatprep.subr.mxu0 0.0
        %3803 = vmatpush1.msra.mxu0 %v3767
        %3804 = vmatprep.subr.mxu0 0.0
        %3805 = vmatpush1.msra.mxu0 %v3768
        %3806 = vmatprep.subr.mxu0 0.0
        %3807 = vmatpush1.msra.mxu0 %v3769
        %3808 = vmatprep.subr.mxu0 0.0
        %3809 = vmatpush1.msra.mxu0 %v3770
        %3810 = vmatprep.subr.mxu0 0.0
        %3811 = vmatpush1.msra.mxu0 %v3771
        %3812 = vmatprep.subr.mxu0 0.0
        %3813 = vmatpush1.msra.mxu0 0.0
        %3814 = vmatprep.subr.mxu0 0.0
        %3815 = vmatpush1.msra.mxu0 0.0
        %3816 = vmatprep.subr.mxu0 0.0
        %3817 = vmatpush1.msra.mxu0 0.0
        %3818 = vmatprep.subr.mxu0 0.0
        %3819 = vmatpush1.msra.mxu0 0.0
        %3820 = vmatprep.subr.mxu0 0.0
        %3821 = vmatpush1.msra.mxu0 0.0
        %3822 = vmatprep.subr.mxu0 0.0
        %3823 = vmatpush1.msra.mxu0 0.0
        %3824 = vmatprep.subr.mxu0 0.0
        %3825 = vmatpush1.msra.mxu0 0.0
        %3826 = vmatprep.subr.mxu0 0.0
        %3827 = vmatpush1.msra.mxu0 0.0
        %3828 = vmatprep.subr.mxu0 0.0
        %3829 = vmatpush1.msra.mxu0 0.0
        %3830 = vmatprep.subr.mxu0 0.0
        %3831 = vmatpush1.msra.mxu0 0.0
        %3832 = vmatprep.subr.mxu0 0.0
        %3833 = vmatpush1.msra.mxu0 0.0
        %3834 = vmatprep.subr.mxu0 0.0
        %3835 = vmatpush1.msra.mxu0 0.0
        %3836 = vmatprep.subr.mxu0 0.0
        %3837 = vmatpush1.msra.mxu0 0.0
        %3838 = vmatprep.subr.mxu0 0.0
        %3839 = vmatpush1.msra.mxu0 0.0
        %3840 = vmatprep.subr.mxu0 0.0
        %3841 = vmatpush1.msra.mxu0 0.0
        %3842 = vmatprep.subr.mxu0 0.0
        %3843 = vmatpush1.msra.mxu0 0.0
        %3844 = vmatprep.subr.mxu0 0.0
        %3845 = vmatpush1.msra.mxu0 0.0
        %3846 = vmatprep.subr.mxu0 0.0
        %3847 = vmatpush1.msra.mxu0 0.0
        %3848 = vmatprep.subr.mxu0 0.0
        %3849 = vmatpush1.msra.mxu0 0.0
        %3850 = vmatprep.subr.mxu0 0.0
        %3851 = vmatpush1.msra.mxu0 0.0
        %3852 = vmatprep.mubr.f32.mxu0 0.0
        %3853 = vmatmul.mubr.f32.gmra.mrb[0].mxu0 %v3780
        %v3854 = vpop.f32.mrb[0].mxu0
        %v3855 = vadd.f32 %v3777, %v3854
        %v3856 = vpop.f32.mrb[0].mxu0
        %3857 = vmatprep.mubr.f32.mxu0 0.0
        %3858 = vmatmul.mubr.f32.gmra.mrb[0].mxu0 %v3783
        %v3859 = vpop.f32.mrb[0].mxu0
        %v3860 = vadd.f32 %v3777, %v3859
        %v3861 = vpop.f32.mrb[0].mxu0
        %3862 = vmatprep.mubr.f32.mxu0 0.0
        %3863 = vmatmul.mubr.f32.gmra.mrb[0].mxu0 %v3786
        %v3864 = vpop.f32.mrb[0].mxu0
        %v3865 = vadd.f32 %v3777, %v3864
        %v3866 = vpop.f32.mrb[0].mxu0
        %3867 = vdwg.mxu0
        %v3868 = vmul.f32 %v3855, 0.01
        %v3869 = vmul.f32 %v3860, 0.01
        %v3870 = vmul.f32 %v3865, 0.01
        %v3871 = vmax.f32 %v3855, %v3868
        %v3872 = vmax.f32 %v3860, %v3869
        %v3873 = vmax.f32 %v3865, %v3870
        %3874 = vst.msk [vmem:[#allocation12] sm:$0xff] %vm2135, %v3871
        %3875 = vst.msk [vmem:[#allocation12 + $0x8] sm:$0xff] %vm2135, %v3872
        %3876 = vst.msk [vmem:[#allocation12 + $0x10] sm:$0x3f] %vm3458, %v3873
        %v3877 = vld [vmem:[#allocation12] sm:$0x1]
        %v3878 = vld [vmem:[#allocation12 + $0x1] sm:$0x1]
        %v3879 = vld [vmem:[#allocation12 + $0x2] sm:$0x1]
        %v3880 = vld [vmem:[#allocation12 + $0x3] sm:$0x1]
        %v3881 = vld [vmem:[#allocation12 + $0x4] sm:$0x1]
        %v3882 = vld [vmem:[#allocation12 + $0x5] sm:$0x1]
        %v3883 = vld [vmem:[#allocation12 + $0x8] sm:$0x1]
        %v3884 = vld [vmem:[#allocation12 + $0x9] sm:$0x1]
        %v3885 = vld [vmem:[#allocation12 + $0xa] sm:$0x1]
        %v3886 = vld [vmem:[#allocation12 + $0xb] sm:$0x1]
        %v3887 = vld [vmem:[#allocation12 + $0xc] sm:$0x1]
        %v3888 = vld [vmem:[#allocation12 + $0xd] sm:$0x1]
        %v3889 = vld [vmem:[#allocation12 + $0x10] sm:$0x1]
        %v3890 = vld [vmem:[#allocation12 + $0x11] sm:$0x1]
        %v3891 = vld [vmem:[#allocation12 + $0x12] sm:$0x1]
        %v3892 = vld [vmem:[#allocation12 + $0x13] sm:$0x1]
        %v3893 = vld [vmem:[#allocation12 + $0x14] sm:$0x1]
        %v3894 = vld [vmem:[#allocation12 + $0x15] sm:$0x1]
        %3896 = vrot.lane.b32.xlu0 %v3878, 32
        %v3897 = vpop.permute.xlu0 %3896
        %3900 = vrot.lane.b32.xlu0 %v3879, 64
        %v3901 = vpop.permute.xlu0 %3900
        %3904 = vrot.lane.b32.xlu0 %v3880, 96
        %v3905 = vpop.permute.xlu0 %3904
        %3908 = vrot.lane.b32.xlu0 %v3882, 32
        %v3909 = vpop.permute.xlu0 %3908
        %3912 = vrot.lane.b32.xlu0 %v3883, 64
        %v3913 = vpop.permute.xlu0 %3912
        %3916 = vrot.lane.b32.xlu0 %v3884, 96
        %v3917 = vpop.permute.xlu0 %3916
        %3920 = vrot.lane.b32.xlu0 %v3886, 32
        %v3921 = vpop.permute.xlu0 %3920
        %3924 = vrot.lane.b32.xlu0 %v3887, 64
        %v3925 = vpop.permute.xlu0 %3924
        %3928 = vrot.lane.b32.xlu0 %v3888, 96
        %v3929 = vpop.permute.xlu0 %3928
        %3932 = vrot.lane.b32.xlu0 %v3890, 32
        %v3933 = vpop.permute.xlu0 %3932
        %3936 = vrot.lane.b32.xlu0 %v3891, 64
        %v3937 = vpop.permute.xlu0 %3936
        %3940 = vrot.lane.b32.xlu0 %v3892, 96
        %v3941 = vpop.permute.xlu0 %3940
        %v3943 = vsel %vm2135, %v3877, %v3897
        %v3944 = vsel %vm2834, %v3943, %v3901
        %v3945 = vsel %vm3565, %v3944, %v3905
        %v3946 = vsel %vm2135, %v3881, %v3909
        %v3947 = vsel %vm2834, %v3946, %v3913
        %v3948 = vsel %vm3565, %v3947, %v3917
        %v3949 = vsel %vm2135, %v3885, %v3921
        %v3950 = vsel %vm2834, %v3949, %v3925
        %v3951 = vsel %vm3565, %v3950, %v3929
        %v3952 = vsel %vm2135, %v3889, %v3933
        %v3953 = vsel %vm2834, %v3952, %v3937
        %v3954 = vsel %vm3565, %v3953, %v3941
        %3956 = vrot.lane.b32.xlu0 %v3894, 32
        %v3957 = vpop.permute.xlu0 %3956
        %v3959 = vsel %vm2135, %v3893, %v3957
        %v3960 = vld [vmem:[%s13] sm:$0xff]
        %v3961 = vld [vmem:[%s13 + $0x8] sm:$0xff]
        %v3962 = vld [vmem:[%s13 + $0x10] sm:$0xff]
        %v3963 = vld [vmem:[%s13 + $0x18] sm:$0xff]
        %v3964 = vld [vmem:[%s13 + $0x20] sm:$0xff]
        %v3965 = vld [vmem:[%s13 + $0x28] sm:$0xff]
        %v3966 = vld [vmem:[%s13 + $0x30] sm:$0xff]
        %v3967 = vld [vmem:[%s13 + $0x38] sm:$0xff]
        %v3968 = vld [vmem:[%s13 + $0x40] sm:$0xff]
        %v3969 = vld [vmem:[%s13 + $0x48] sm:$0xff]
        %v3970 = vld [vmem:[%s13 + $0x50] sm:$0xff]
        %v3971 = vld [vmem:[%s13 + $0x58] sm:$0xff]
        %v3972 = vld [vmem:[%s13 + $0x60] sm:$0xff]
        %v3973 = vld [vmem:[%s13 + $0x68] sm:$0xff]
        %v3974 = vld [vmem:[%s13 + $0x70] sm:$0xff]
        %v3975 = vld [vmem:[%s13 + $0x78] sm:$0xff]
        %v3976 = vld [vmem:[%s13 + $0x80] sm:$0xff]
        %v3977 = vld [vmem:[%s13 + $0x88] sm:$0xff]
        %v3978 = vld [vmem:[%s13 + $0x90] sm:$0xff]
        %v3979 = vld [vmem:[%s13 + $0x98] sm:$0xff]
        %v3980 = vld [vmem:[%s13 + $0xa0] sm:$0xff]
        %v3981 = vld [vmem:[%s13 + $0xa8] sm:$0xff]
        %v3982 = vld [vmem:[%s13 + $0xb0] sm:$0xff]
        %v3983 = vld [vmem:[%s13 + $0xb8] sm:$0xff]
        %v3984 = vld [vmem:[%s13 + $0xc0] sm:$0xff]
        %v3985 = vld [vmem:[%s13 + $0xc8] sm:$0xff]
        %v3986 = vld [vmem:[%s13 + $0xd0] sm:$0xff]
        %v3987 = vld [vmem:[%s13 + $0xd8] sm:$0xff]
        %v3988 = vld [vmem:[%s13 + $0xe0] sm:$0xff]
        %v3989 = vld [vmem:[%s13 + $0xe8] sm:$0xff]
        %v3990 = vld [vmem:[%s13 + $0xf0] sm:$0xff]
        %v3991 = vld [vmem:[%s13 + $0xf8] sm:$0xff]
        %v3992 = vld [vmem:[%s13 + $0x100] sm:$0xff]
        %v3993 = vld [vmem:[%s13 + $0x108] sm:$0xff]
        %v3994 = vld [vmem:[%s13 + $0x110] sm:$0xff]
        %v3995 = vld [vmem:[%s13 + $0x118] sm:$0xff]
        %v3996 = vld [vmem:[%s13 + $0x120] sm:$0xff]
        %v3997 = vld [vmem:[%s13 + $0x128] sm:$0xff]
        %v3998 = vld [vmem:[%s13 + $0x130] sm:$0xff]
        %v3999 = vld [vmem:[%s13 + $0x138] sm:$0xff]
        %v4000 = vld [vmem:[%s13 + $0x140] sm:$0xff]
        %v4001 = vld [vmem:[%s13 + $0x148] sm:$0xff]
        %v4002 = vld [vmem:[%s13 + $0x150] sm:$0xff]
        %v4003 = vld [vmem:[%s13 + $0x158] sm:$0xff]
        %v4004 = vld [vmem:[%s13 + $0x160] sm:$0xff]
        %v4005 = vld [vmem:[%s13 + $0x168] sm:$0xff]
        %v4006 = vld [vmem:[%s13 + $0x170] sm:$0xff]
        %v4007 = vld [vmem:[%s13 + $0x178] sm:$0xff]
        %v4008 = vld [vmem:[%s13 + $0x180] sm:$0xff]
        %v4009 = vld [vmem:[%s13 + $0x188] sm:$0xff]
        %v4010 = vld [vmem:[%s13 + $0x190] sm:$0xff]
        %v4011 = vld [vmem:[%s13 + $0x198] sm:$0xff]
        %v4012 = vld [vmem:[%s13 + $0x1a0] sm:$0xff]
        %v4013 = vld [vmem:[%s13 + $0x1a8] sm:$0xff]
        %v4014 = vld [vmem:[%s13 + $0x1b0] sm:$0xff]
        %v4015 = vld [vmem:[%s13 + $0x1b8] sm:$0xff]
        %v4016 = vld [vmem:[%s13 + $0x1c0] sm:$0xff]
        %v4017 = vld [vmem:[%s13 + $0x1c8] sm:$0xff]
        %v4018 = vld [vmem:[%s13 + $0x1d0] sm:$0xff]
        %v4019 = vld [vmem:[%s13 + $0x1d8] sm:$0xff]
        %v4020 = vld [vmem:[%s13 + $0x1e0] sm:$0xff]
        %v4021 = vld [vmem:[%s13 + $0x1e8] sm:$0xff]
        %v4022 = vld [vmem:[%s13 + $0x1f0] sm:$0xff]
        %v4023 = vld [vmem:[%s13 + $0x1f8] sm:$0xff]
        %v4024 = vld [vmem:[%s13 + $0x200] sm:$0xff]
        %v4025 = vld [vmem:[%s13 + $0x208] sm:$0xff]
        %v4026 = vld [vmem:[%s13 + $0x210] sm:$0xff]
        %v4027 = vld [vmem:[%s13 + $0x218] sm:$0xff]
        %v4028 = vld [vmem:[%s13 + $0x220] sm:$0xff]
        %v4029 = vld [vmem:[%s13 + $0x228] sm:$0xff]
        %v4030 = vld [vmem:[%s13 + $0x230] sm:$0xff]
        %v4031 = vld [vmem:[%s13 + $0x238] sm:$0xff]
        %v4032 = vld [vmem:[%s14] sm:$0x1]
        %v4034 = vsel %vm2834, %v3959, 0
        %4036 = vmatprep.subr.mxu0 0.0
        %4037 = vmatpush1.msra.mxu0 %v3960
        %4038 = vmatprep.subr.mxu0 0.0
        %4039 = vmatpush1.msra.mxu0 %v3961
        %4040 = vmatprep.subr.mxu0 0.0
        %4041 = vmatpush1.msra.mxu0 %v3962
        %4042 = vmatprep.subr.mxu0 0.0
        %4043 = vmatpush1.msra.mxu0 %v3963
        %4044 = vmatprep.subr.mxu0 0.0
        %4045 = vmatpush1.msra.mxu0 %v3964
        %4046 = vmatprep.subr.mxu0 0.0
        %4047 = vmatpush1.msra.mxu0 %v3965
        %4048 = vmatprep.subr.mxu0 0.0
        %4049 = vmatpush1.msra.mxu0 %v3966
        %4050 = vmatprep.subr.mxu0 0.0
        %4051 = vmatpush1.msra.mxu0 %v3967
        %4052 = vmatprep.subr.mxu0 0.0
        %4053 = vmatpush1.msra.mxu0 %v3968
        %4054 = vmatprep.subr.mxu0 0.0
        %4055 = vmatpush1.msra.mxu0 %v3969
        %4056 = vmatprep.subr.mxu0 0.0
        %4057 = vmatpush1.msra.mxu0 %v3970
        %4058 = vmatprep.subr.mxu0 0.0
        %4059 = vmatpush1.msra.mxu0 %v3971
        %4060 = vmatprep.subr.mxu0 0.0
        %4061 = vmatpush1.msra.mxu0 %v3972
        %4062 = vmatprep.subr.mxu0 0.0
        %4063 = vmatpush1.msra.mxu0 %v3973
        %4064 = vmatprep.subr.mxu0 0.0
        %4065 = vmatpush1.msra.mxu0 %v3974
        %4066 = vmatprep.subr.mxu0 0.0
        %4067 = vmatpush1.msra.mxu0 %v3975
        %4068 = vmatprep.subr.mxu0 0.0
        %4069 = vmatpush1.msra.mxu0 %v3976
        %4070 = vmatprep.subr.mxu0 0.0
        %4071 = vmatpush1.msra.mxu0 %v3977
        %4072 = vmatprep.subr.mxu0 0.0
        %4073 = vmatpush1.msra.mxu0 %v3978
        %4074 = vmatprep.subr.mxu0 0.0
        %4075 = vmatpush1.msra.mxu0 %v3979
        %4076 = vmatprep.subr.mxu0 0.0
        %4077 = vmatpush1.msra.mxu0 %v3980
        %4078 = vmatprep.subr.mxu0 0.0
        %4079 = vmatpush1.msra.mxu0 %v3981
        %4080 = vmatprep.subr.mxu0 0.0
        %4081 = vmatpush1.msra.mxu0 %v3982
        %4082 = vmatprep.subr.mxu0 0.0
        %4083 = vmatpush1.msra.mxu0 %v3983
        %4084 = vmatprep.subr.mxu0 0.0
        %4085 = vmatpush1.msra.mxu0 %v3984
        %4086 = vmatprep.subr.mxu0 0.0
        %4087 = vmatpush1.msra.mxu0 %v3985
        %4088 = vmatprep.subr.mxu0 0.0
        %4089 = vmatpush1.msra.mxu0 %v3986
        %4090 = vmatprep.subr.mxu0 0.0
        %4091 = vmatpush1.msra.mxu0 %v3987
        %4092 = vmatprep.subr.mxu0 0.0
        %4093 = vmatpush1.msra.mxu0 %v3988
        %4094 = vmatprep.subr.mxu0 0.0
        %4095 = vmatpush1.msra.mxu0 %v3989
        %4096 = vmatprep.subr.mxu0 0.0
        %4097 = vmatpush1.msra.mxu0 %v3990
        %4098 = vmatprep.subr.mxu0 0.0
        %4099 = vmatpush1.msra.mxu0 %v3991
        %4100 = vmatprep.mubr.f32.mxu0 %v3948
        %4101 = vmatmul.mubr.f32.gmra.mrb[0].mxu0 %v3945
        %v4102 = vpop.f32.mrb[0].mxu0
        %v4103 = vadd.f32 %v4032, %v4102
        %v4104 = vpop.f32.mrb[0].mxu0
        %4105 = vdwg.mxu0
        %4106 = vmatprep.subr.mxu0 0.0
        %4107 = vmatpush1.msra.mxu0 %v3992
        %4108 = vmatprep.subr.mxu0 0.0
        %4109 = vmatpush1.msra.mxu0 %v3993
        %4110 = vmatprep.subr.mxu0 0.0
        %4111 = vmatpush1.msra.mxu0 %v3994
        %4112 = vmatprep.subr.mxu0 0.0
        %4113 = vmatpush1.msra.mxu0 %v3995
        %4114 = vmatprep.subr.mxu0 0.0
        %4115 = vmatpush1.msra.mxu0 %v3996
        %4116 = vmatprep.subr.mxu0 0.0
        %4117 = vmatpush1.msra.mxu0 %v3997
        %4118 = vmatprep.subr.mxu0 0.0
        %4119 = vmatpush1.msra.mxu0 %v3998
        %4120 = vmatprep.subr.mxu0 0.0
        %4121 = vmatpush1.msra.mxu0 %v3999
        %4122 = vmatprep.subr.mxu0 0.0
        %4123 = vmatpush1.msra.mxu0 %v4000
        %4124 = vmatprep.subr.mxu0 0.0
        %4125 = vmatpush1.msra.mxu0 %v4001
        %4126 = vmatprep.subr.mxu0 0.0
        %4127 = vmatpush1.msra.mxu0 %v4002
        %4128 = vmatprep.subr.mxu0 0.0
        %4129 = vmatpush1.msra.mxu0 %v4003
        %4130 = vmatprep.subr.mxu0 0.0
        %4131 = vmatpush1.msra.mxu0 %v4004
        %4132 = vmatprep.subr.mxu0 0.0
        %4133 = vmatpush1.msra.mxu0 %v4005
        %4134 = vmatprep.subr.mxu0 0.0
        %4135 = vmatpush1.msra.mxu0 %v4006
        %4136 = vmatprep.subr.mxu0 0.0
        %4137 = vmatpush1.msra.mxu0 %v4007
        %4138 = vmatprep.subr.mxu0 0.0
        %4139 = vmatpush1.msra.mxu0 %v4008
        %4140 = vmatprep.subr.mxu0 0.0
        %4141 = vmatpush1.msra.mxu0 %v4009
        %4142 = vmatprep.subr.mxu0 0.0
        %4143 = vmatpush1.msra.mxu0 %v4010
        %4144 = vmatprep.subr.mxu0 0.0
        %4145 = vmatpush1.msra.mxu0 %v4011
        %4146 = vmatprep.subr.mxu0 0.0
        %4147 = vmatpush1.msra.mxu0 %v4012
        %4148 = vmatprep.subr.mxu0 0.0
        %4149 = vmatpush1.msra.mxu0 %v4013
        %4150 = vmatprep.subr.mxu0 0.0
        %4151 = vmatpush1.msra.mxu0 %v4014
        %4152 = vmatprep.subr.mxu0 0.0
        %4153 = vmatpush1.msra.mxu0 %v4015
        %4154 = vmatprep.subr.mxu0 0.0
        %4155 = vmatpush1.msra.mxu0 %v4016
        %4156 = vmatprep.subr.mxu0 0.0
        %4157 = vmatpush1.msra.mxu0 %v4017
        %4158 = vmatprep.subr.mxu0 0.0
        %4159 = vmatpush1.msra.mxu0 %v4018
        %4160 = vmatprep.subr.mxu0 0.0
        %4161 = vmatpush1.msra.mxu0 %v4019
        %4162 = vmatprep.subr.mxu0 0.0
        %4163 = vmatpush1.msra.mxu0 %v4020
        %4164 = vmatprep.subr.mxu0 0.0
        %4165 = vmatpush1.msra.mxu0 %v4021
        %4166 = vmatprep.subr.mxu0 0.0
        %4167 = vmatpush1.msra.mxu0 %v4022
        %4168 = vmatprep.subr.mxu0 0.0
        %4169 = vmatpush1.msra.mxu0 %v4023
        %4170 = vmatprep.mubr.f32.mxu0 %v3954
        %4171 = vmatmul.mubr.f32.gmra.mrb[0].mxu0 %v3951
        %v4172 = vpop.f32.mrb[0].mxu0
        %v4173 = vadd.f32 %v4103, %v4172
        %v4174 = vpop.f32.mrb[0].mxu0
        %4175 = vdwg.mxu0
        %4176 = vmatprep.subr.mxu0 0.0
        %4177 = vmatpush1.msra.mxu0 %v4024
        %4178 = vmatprep.subr.mxu0 0.0
        %4179 = vmatpush1.msra.mxu0 %v4025
        %4180 = vmatprep.subr.mxu0 0.0
        %4181 = vmatpush1.msra.mxu0 %v4026
        %4182 = vmatprep.subr.mxu0 0.0
        %4183 = vmatpush1.msra.mxu0 %v4027
        %4184 = vmatprep.subr.mxu0 0.0
        %4185 = vmatpush1.msra.mxu0 %v4028
        %4186 = vmatprep.subr.mxu0 0.0
        %4187 = vmatpush1.msra.mxu0 %v4029
        %4188 = vmatprep.subr.mxu0 0.0
        %4189 = vmatpush1.msra.mxu0 %v4030
        %4190 = vmatprep.subr.mxu0 0.0
        %4191 = vmatpush1.msra.mxu0 %v4031
        %4192 = vmatprep.subr.mxu0 0.0
        %4193 = vmatpush1.msra.mxu0 0.0
        %4194 = vmatprep.subr.mxu0 0.0
        %4195 = vmatpush1.msra.mxu0 0.0
        %4196 = vmatprep.subr.mxu0 0.0
        %4197 = vmatpush1.msra.mxu0 0.0
        %4198 = vmatprep.subr.mxu0 0.0
        %4199 = vmatpush1.msra.mxu0 0.0
        %4200 = vmatprep.subr.mxu0 0.0
        %4201 = vmatpush1.msra.mxu0 0.0
        %4202 = vmatprep.subr.mxu0 0.0
        %4203 = vmatpush1.msra.mxu0 0.0
        %4204 = vmatprep.subr.mxu0 0.0
        %4205 = vmatpush1.msra.mxu0 0.0
        %4206 = vmatprep.subr.mxu0 0.0
        %4207 = vmatpush1.msra.mxu0 0.0
        %4208 = vmatprep.subr.mxu0 0.0
        %4209 = vmatpush1.msra.mxu0 0.0
        %4210 = vmatprep.subr.mxu0 0.0
        %4211 = vmatpush1.msra.mxu0 0.0
        %4212 = vmatprep.subr.mxu0 0.0
        %4213 = vmatpush1.msra.mxu0 0.0
        %4214 = vmatprep.subr.mxu0 0.0
        %4215 = vmatpush1.msra.mxu0 0.0
        %4216 = vmatprep.subr.mxu0 0.0
        %4217 = vmatpush1.msra.mxu0 0.0
        %4218 = vmatprep.subr.mxu0 0.0
        %4219 = vmatpush1.msra.mxu0 0.0
        %4220 = vmatprep.subr.mxu0 0.0
        %4221 = vmatpush1.msra.mxu0 0.0
        %4222 = vmatprep.subr.mxu0 0.0
        %4223 = vmatpush1.msra.mxu0 0.0
        %4224 = vmatprep.subr.mxu0 0.0
        %4225 = vmatpush1.msra.mxu0 0.0
        %4226 = vmatprep.subr.mxu0 0.0
        %4227 = vmatpush1.msra.mxu0 0.0
        %4228 = vmatprep.subr.mxu0 0.0
        %4229 = vmatpush1.msra.mxu0 0.0
        %4230 = vmatprep.subr.mxu0 0.0
        %4231 = vmatpush1.msra.mxu0 0.0
        %4232 = vmatprep.subr.mxu0 0.0
        %4233 = vmatpush1.msra.mxu0 0.0
        %4234 = vmatprep.subr.mxu0 0.0
        %4235 = vmatpush1.msra.mxu0 0.0
        %4236 = vmatprep.subr.mxu0 0.0
        %4237 = vmatpush1.msra.mxu0 0.0
        %4238 = vmatprep.subr.mxu0 0.0
        %4239 = vmatpush1.msra.mxu0 0.0
        %4240 = vmatprep.mubr.f32.mxu0 0.0
        %4241 = vmatmul.mubr.f32.gmra.mrb[0].mxu0 %v4034
        %v4242 = vpop.f32.mrb[0].mxu0
        %v4243 = vadd.f32 %v4173, %v4242
        %v4244 = vpop.f32.mrb[0].mxu0
        %4245 = vdwg.mxu0
        %vm4246 = vcmask 385024
        %4247 = vst.msk [vmem:[%s486] sm:$0x1] %vm4246, %v4243
        %s4248 = sand.u32 %s357, 1
        %s4249 = scalar_lea.sflag [#allocation14], %s4248
        %s4250 = sand.u32 %s357, 1
        %s4251 = scalar_lea.vmem [#allocation13], %s4250
        // Predicated region
        $region81: #{cnn_small_forward.1} parent=79 // pred_check
          %p4252 = pneg %p367
        $region82: #{cnn_small_forward.1} parent=79 // pred_check_branch
          %4254 = sbr.rel (%p4252) target = $region84
        $region83: #{cnn_small_forward.1} parent=79 // pred_region
          %s4256 = ssub.s32 16, 16
          %4257 = vsyncadd %s4249, %s4256
          %s4258 = smul.addr %s29, 16
          %s4259 = scalar_lea.hbm %s15, %s4258
          %s4261 = sshll.u32 %s4251, 4
          %s4262 = int_to_ptr.vmem [resolvable:$true] %s4261
          %4264 = dma.vmem_to_hbm [thread:$0]  %s4262, 16, %s4259, %s4249
        $region84: #{cnn_small_forward.1} parent=79 // pred_fallthru
          _
      $region80: #{cnn_small_forward.1} parent=5 // pred_fallthru
        _
      %p4265 = scmp.le.s32.totalorder 2, %s24
      // Predicated region
      $region85: #{cnn_small_forward.1} parent=5 // pred_check
        %p4266 = pneg %p4265
      $region86: #{cnn_small_forward.1} parent=5 // pred_check_branch
        %4268 = sbr.rel (%p4266) target = $region88
      $region87: #{cnn_small_forward.1} parent=5 // pred_region
        %s4269 = ssub.s32 %s24, 2
        // Predicated region
        $region89: #{cnn_small_forward.1} parent=87 // pred_check
          %p4270 = pneg %p373
        $region90: #{cnn_small_forward.1} parent=87 // pred_check_branch
          %4272 = sbr.rel (%p4270) target = $region92
        $region91: #{cnn_small_forward.1} parent=87 // pred_region
          %s4273 = sand.u32 %s358, 1
          %s4274 = scalar_lea.sflag [#allocation14], %s4273
          %s4275 = sand.u32 %s358, 1
          %s4276 = scalar_lea.vmem [#allocation13], %s4275
          %4277 = dma.done %s4274, 16
        $region92: #{cnn_small_forward.1} parent=87 // pred_fallthru
          _
      $region88: #{cnn_small_forward.1} parent=5 // pred_fallthru
        _
    $region6: #{cnn_small_forward.1} parent=1 // loop_footer
      %s28 = sadd.s32 1, %s24
    $region7: #{cnn_small_forward.1} parent=1 // loop_footer_branch
      %23 = sbr.rel target = $region3
    $region8: #{cnn_small_forward.1} parent=1 // loop_exit
      _
    %4278 = vsyncpa [#allocation14], 1
    %s4279 = scalar_lea.sflag [#allocation14], 1
    %4280 = vsyncpa %s4279, 1

</llo_original>
